<compile_context>
chip_gen: v5e
topology: v5e:2x2
jax: 0.10.0
libtpu: 0.0.40
codegen_flags: <defaults>
</compile_context>

<pallas_src>
import functools

import jax
import jax.numpy as jnp
from jax.experimental import pallas as pl
from jax.experimental.pallas import tpu as pltpu


def _round_up(x, m):
    return (x + m - 1) // m * m


# ----------------------------------------------------------------------------
# Fused residual-block kernel: one grid step = (sample i, temporal chunk j)
# ----------------------------------------------------------------------------
def _resblock_kernel(x_ref, mask_ref, w1a_ref, b1a_ref, w2_ref, b2_ref,
                     w1b_ref, b1b_ref, w1c_ref, b1c_ref, o_ref,
                     hpad_ref, stage_ref, *, wp, p_pad, lead, tc):
    cmid = hpad_ref.shape[0]
    chunk_flat = (tc + 2) * p_pad          # Tc central frames + 1 halo frame each side
    flat_c = tc * p_pad                    # central (output) frames
    base = lead + p_pad                    # start of output frame 0 inside hpad scratch

    x = x_ref[0, 0]                        # (Cin, chunk_flat), compute dtype

    # ---- conv1a (1x1x1) + folded BN + ReLU over the Tc+2 halo-inclusive frames ----
    h = jnp.dot(w1a_ref[...], x, preferred_element_type=jnp.float32) + b1a_ref[...]
    h = jnp.maximum(h, 0.0) * mask_ref[...]       # spatial halo / lane tail -> exactly 0

    # ---- stage h into the temporally padded VMEM scratch --------------------------
    # Only the small guard bands (lead columns each side, needed by the shifted reads
    # below) are zeroed; the interior is fully overwritten every step, so no full
    # (cmid x flat_h) zero-store pass is needed.
    zeros_guard = jnp.zeros((cmid, lead), hpad_ref.dtype)
    hpad_ref[:, :lead] = zeros_guard
    hpad_ref[:, lead + chunk_flat:] = zeros_guard
    hpad_ref[:, lead:lead + chunk_flat] = h.astype(hpad_ref.dtype)

    # Sequence-boundary chunks: the temporal halo frame lies outside [0, T); conv1b
    # zero-pads temporally, so that frame must be exactly zero (relu(bias) is not).
    zeros_frame = jnp.zeros((cmid, p_pad), hpad_ref.dtype)

    @pl.when(pl.program_id(1) == 0)
    def _():
        hpad_ref[:, lead:lead + p_pad] = zeros_frame

    @pl.when(pl.program_id(1) == pl.num_programs(1) - 1)
    def _():
        hpad_ref[:, lead + chunk_flat - p_pad:lead + chunk_flat] = zeros_frame

    # ---- conv1b (3x3x3, pad 1, stride 1) + folded BN + ReLU ------------------------
    # Per kt: stack the 9 spatially shifted views once into a (9*cmid, flat_c) staging
    # buffer, then one MXU dot with contraction depth K = 9*cmid.
    acc = None
    for kt in range(3):
        for kh in range(3):
            for kw in range(3):
                tap = kh * 3 + kw
                off = base + (kt - 1) * p_pad + (kh - 1) * wp + (kw - 1)
                stage_ref[tap * cmid:(tap + 1) * cmid, :] = hpad_ref[:, off:off + flat_c]
        part = jnp.dot(w1b_ref[kt], stage_ref[...],
                       preferred_element_type=jnp.float32)
        acc = part if acc is None else acc + part
    y = jnp.maximum(acc + b1b_ref[...], 0.0)

    # ---- conv1c (1x1x1) + folded BN + ReLU -----------------------------------------
    z = jnp.dot(w1c_ref[...], y.astype(w1c_ref.dtype),
                preferred_element_type=jnp.float32) + b1c_ref[...]
    z = jnp.maximum(z, 0.0)

    # ---- residual branch conv2 (1x1x1) + folded BN + ReLU, add, outer ReLU ----------
    xc = x[:, p_pad:p_pad + flat_c]               # central Tc frames of the input
    res = jnp.dot(w2_ref[...], xc, preferred_element_type=jnp.float32) + b2_ref[...]
    res = jnp.maximum(res, 0.0)

    o_ref[0] = jnp.maximum(z + res, 0.0).astype(o_ref.dtype)


# ----------------------------------------------------------------------------
# Layout / weight-folding helpers (plain JAX, wrapper side)
# ----------------------------------------------------------------------------
def _to_padded_flat(x, p_pad):
    """(N, C, T, H, W) -> (N, C, T*p_pad); each frame spatially zero-padded + flattened."""
    n, c, t, h, w = x.shape
    hp, wp = h + 2, w + 2
    xp = jnp.pad(x, ((0, 0), (0, 0), (0, 0), (1, 1), (1, 1)))
    xp = xp.reshape(n, c, t, hp * wp)
    xp = jnp.pad(xp, ((0, 0), (0, 0), (0, 0), (0, p_pad - hp * wp)))
    return xp.reshape(n, c, t * p_pad)


def _from_padded_flat(y, t, h, w, p_pad):
    """(N, C, T*p_pad) -> (N, C, T, H, W) (drop spatial halo + lane padding)."""
    n, c, _ = y.shape
    hp, wp = h + 2, w + 2
    y = y.reshape(n, c, t, p_pad)[..., : hp * wp].reshape(n, c, t, hp, wp)
    return y[..., 1:h + 1, 1:w + 1]


def _fold_pointwise(w, scale, shift, dtype):
    """1x1x1 conv weight (1,1,1,Cin,Cout) + BN(scale,shift) -> (Cout,Cin), (Cout,1)."""
    w2d = w.reshape(w.shape[-2], w.shape[-1])            # (Cin, Cout)
    wm = (w2d * scale[None, :]).T                         # (Cout, Cin), BN scale folded
    return wm.astype(dtype), shift.reshape(-1, 1).astype(jnp.float32)


def _fold_conv3(w, scale, shift, dtype):
    """3x3x3 conv weight (3,3,3,Cin,Cout) + BN -> stacked (3, Cout, 9*Cin), (Cout,1)."""
    cin, cout = w.shape[-2], w.shape[-1]
    wf = w * scale                                        # scale over output channels
    wm = jnp.transpose(wf, (0, 4, 1, 2, 3)).reshape(3, cout, 9 * cin)
    return wm.astype(dtype), shift.reshape(-1, 1).astype(jnp.float32)


def _per_step_vmem_bytes(cin, cmid, cout, tc, p_pad, lead, compute_dtype, out_dtype):
    cb = jnp.dtype(compute_dtype).itemsize
    ob = jnp.dtype(out_dtype).itemsize
    chunk_flat = (tc + 2) * p_pad
    flat_c = tc * p_pad
    dbuf = 2 * (cin * chunk_flat * cb         # input block (double-buffered)
                + cout * flat_c * ob          # output block
                + chunk_flat * 4)             # mask block
    scratch = cmid * (2 * lead + chunk_flat) * cb + 9 * cmid * flat_c * cb
    weights = (cmid * cin + cout * cin + 27 * cmid * cmid + cout * cmid) * cb \
        + 2 * (cmid + cout) * 4
    return dbuf + scratch + 2 * weights


# ----------------------------------------------------------------------------
# Block forward (Pallas)
# ----------------------------------------------------------------------------
def spatio_temporal_resblock_a(x, p, *, tc=None, compute_dtype=jnp.float32,
                               vmem_budget_bytes=24 * 1024 * 1024):
    """Pallas forward of SpatioTemporalResBlocka (downsample=False), NCDHW layout."""
    n, cin, t, h, w = x.shape
    cmid = p["w1a"].shape[-1]
    cout = p["w1c"].shape[-1]
    hp, wp = h + 2, w + 2
    p_pad = _round_up(hp * wp, 128)           # per-frame length, lane-aligned
    lead = 128                                 # guard band for shifted lane reads
    assert lead >= wp + 1

    if tc is None:
        # largest temporal chunk whose per-step working set fits the VMEM budget
        tc = 1
        for cand in range(1, t + 1):
            if t % cand == 0 and _per_step_vmem_bytes(
                    cin, cmid, cout, cand, p_pad, lead, compute_dtype, x.dtype
            ) <= vmem_budget_bytes:
                tc = cand
    assert t % tc == 0
    nt = t // tc
    chunk_flat = (tc + 2) * p_pad
    flat_c = tc * p_pad

    # fold BN (inference form) into the conv weights / biases
    w1a_m, b1a = _fold_pointwise(p["w1a"], *p["bn1a"], dtype=compute_dtype)
    w2_m, b2 = _fold_pointwise(p["w2"], *p["bn2"], dtype=compute_dtype)
    w1c_m, b1c = _fold_pointwise(p["w1c"], *p["bn1c"], dtype=compute_dtype)
    w1b_m, b1b = _fold_conv3(p["w1b"], *p["bn1b"], dtype=compute_dtype)

    # lane-dense padded-flat input, temporally zero-padded, cut into overlapping
    # (Tc + 2)-frame chunks so each grid step carries its own temporal halo.
    xf = _to_padded_flat(x, p_pad).astype(compute_dtype)             # (N, Cin, T*p_pad)
    xfp = jnp.pad(xf, ((0, 0), (0, 0), (p_pad, p_pad)))
    x_chunks = jnp.stack(
        [xfp[:, :, j * tc * p_pad: j * tc * p_pad + chunk_flat] for j in range(nt)],
        axis=1)                                                      # (N, NT, Cin, chunk_flat)

    frame_mask = jnp.pad(
        jnp.pad(jnp.ones((h, w), jnp.float32), ((1, 1), (1, 1))).reshape(1, hp * wp),
        ((0, 0), (0, p_pad - hp * wp)))
    mask = jnp.tile(frame_mask, (1, tc + 2))                         # (1, chunk_flat)

    kernel = functools.partial(_resblock_kernel, wp=wp, p_pad=p_pad, lead=lead, tc=tc)

    vmem_need = _per_step_vmem_bytes(cin, cmid, cout, tc, p_pad, lead,
                                     compute_dtype, x.dtype)
    vmem_limit = int(min(100 * 1024 * 1024, max(32 * 1024 * 1024, 2 * vmem_need)))

    flops = 2 * (cin * cmid + 27 * cmid * cmid + cmid * cout + cin * cout) * n * t * h * w
    bytes_accessed = int(
        x_chunks.size * x_chunks.dtype.itemsize
        + n * cout * t * p_pad * jnp.dtype(x.dtype).itemsize
        + sum(a.size * a.dtype.itemsize
              for a in (mask, w1a_m, b1a, w2_m, b2, w1b_m, b1b, w1c_m, b1c)))

    out_flat = pl.pallas_call(
        kernel,
        out_shape=jax.ShapeDtypeStruct((n, cout, t * p_pad), x.dtype),
        grid=(n, nt),
        in_specs=[
            pl.BlockSpec((1, 1, cin, chunk_flat), lambda i, j: (i, j, 0, 0)),
            pl.BlockSpec((1, chunk_flat), lambda i, j: (0, 0)),
            pl.BlockSpec((cmid, cin), lambda i, j: (0, 0)),
            pl.BlockSpec((cmid, 1), lambda i, j: (0, 0)),
            pl.BlockSpec((cout, cin), lambda i, j: (0, 0)),
            pl.BlockSpec((cout, 1), lambda i, j: (0, 0)),
            pl.BlockSpec((3, cmid, 9 * cmid), lambda i, j: (0, 0, 0)),
            pl.BlockSpec((cmid, 1), lambda i, j: (0, 0)),
            pl.BlockSpec((cout, cmid), lambda i, j: (0, 0)),
            pl.BlockSpec((cout, 1), lambda i, j: (0, 0)),
        ],
        out_specs=pl.BlockSpec((1, cout, flat_c), lambda i, j: (i, 0, j)),
        scratch_shapes=[
            pltpu.VMEM((cmid, lead + chunk_flat + lead), compute_dtype),   # hpad
            pltpu.VMEM((9 * cmid, flat_c), compute_dtype),                 # stacked-K stage
        ],
        compiler_params=pltpu.CompilerParams(
            dimension_semantics=("parallel", "parallel"),
            vmem_limit_bytes=vmem_limit),
        cost_estimate=pl.CostEstimate(flops=flops, transcendentals=0,
                                      bytes_accessed=bytes_accessed),
    )(x_chunks, mask, w1a_m, b1a, w2_m, b2, w1b_m, b1b, w1c_m, b1c)

    return _from_padded_flat(out_flat, t, h, w, p_pad)


# ----------------------------------------------------------------------------
# Parameter setup (deterministic, synthetic)
# ----------------------------------------------------------------------------
def fold_bn(gamma, beta, mean, var, eps=1e-5):
    scale = gamma / jnp.sqrt(var + eps)
    shift = beta - mean * scale
    return scale, shift


def make_params(key, in_channels, out_channels):
    c_mid, c_out = out_channels
    ks = jax.random.split(key, 16)

    def bn(k, c):
        k1, k2, k3, k4 = jax.random.split(k, 4)
        gamma = 0.5 + jax.random.uniform(k1, (c,), jnp.float32)
        beta = 0.1 * jax.random.normal(k2, (c,), jnp.float32)
        mean = 0.1 * jax.random.normal(k3, (c,), jnp.float32)
        var = 0.5 + jax.random.uniform(k4, (c,), jnp.float32)
        return fold_bn(gamma, beta, mean, var)

    p = {}
    p["w1a"] = 0.2 * jax.random.normal(ks[0], (1, 1, 1, in_channels, c_mid), jnp.float32)
    p["bn1a"] = bn(ks[1], c_mid)
    p["w1b"] = 0.2 * jax.random.normal(ks[2], (3, 3, 3, c_mid, c_mid), jnp.float32)
    p["bn1b"] = bn(ks[3], c_mid)
    p["w1c"] = 0.2 * jax.random.normal(ks[4], (1, 1, 1, c_mid, c_out), jnp.float32)
    p["bn1c"] = bn(ks[5], c_out)
    p["w2"] = 0.2 * jax.random.normal(ks[6], (1, 1, 1, in_channels, c_out), jnp.float32)
    p["bn2"] = bn(ks[7], c_out)
    return p


# ----------------------------------------------------------------------------
# Pure-JAX reference (NCDHW) for validation
# ----------------------------------------------------------------------------
def reference_forward(x, p):
    hi = jax.lax.Precision.HIGHEST

    def pw(x, w, sc, sh):
        w2d = w.reshape(w.shape[-2], w.shape[-1])
        y = jnp.einsum("ncthw,co->nothw", x, w2d, precision=hi)
        y = y * sc[None, :, None, None, None] + sh[None, :, None, None, None]
        return jnp.maximum(y, 0.0)

    def c3(x, w, sc, sh):
        y = jax.lax.conv_general_dilated(
            x, w, window_strides=(1, 1, 1),
            padding=((1, 1), (1, 1), (1, 1)),
            dimension_numbers=("NCDHW", "DHWIO", "NCDHW"),
            precision=hi)
        y = y * sc[None, :, None, None, None] + sh[None, :, None, None, None]
        return jnp.maximum(y, 0.0)

    res = pw(x, p["w2"], *p["bn2"])
    h = pw(x, p["w1a"], *p["bn1a"])
    h = c3(h, p["w1b"], *p["bn1b"])
    h = pw(h, p["w1c"], *p["bn1c"])
    return jnp.maximum(h + res, 0.0)


if __name__ == "__main__":
    key = jax.random.PRNGKey(0)
    kx, kp = jax.random.split(key)

    # demo shapes: batch=2, in_channels=4, seq(T)=8, spatial=16x16, out_channels=(4, 8)
    # NOTE: at these channel counts the kernel is overhead-bound, not MXU-bound;
    # tune Tc / dtypes at real R3DNet channel counts (C=64..256, H=W=56, T=16).
    N, Cin, T, H, W = 2, 4, 8, 16, 16
    out_channels = (4, 8)

    x = jax.random.normal(kx, (N, Cin, T, H, W), jnp.float32)
    params = make_params(kp, Cin, out_channels)

    ref = jax.block_until_ready(reference_forward(x, params))

    # f32-operand path (tight tolerance); tc=4 exercises T-chunking + 2 parallel axes
    out = jax.block_until_ready(spatio_temporal_resblock_a(x, params, tc=4))
    assert out.shape == (N, out_channels[1], T, H, W)
    err = float(jnp.max(jnp.abs(out - ref)))
    assert jnp.allclose(out, ref, atol=2e-3, rtol=2e-3), err

    # bf16-operand path (f32 MXU accumulation + f32 VPU math); generous tolerance
    # appropriate for bf16 inputs/weights vs an f32 HIGHEST reference.
    out_bf16 = jax.block_until_ready(
        spatio_temporal_resblock_a(x, params, tc=4, compute_dtype=jnp.bfloat16))
    err_bf16 = float(jnp.max(jnp.abs(out_bf16.astype(jnp.float32) - ref)))
    assert jnp.allclose(out_bf16.astype(jnp.float32), ref,
                        atol=3.5e-1, rtol=5e-2), err_bf16

    print("KERNEL_OK")
</pallas_src>

<mosaic_0001>
module attributes {stable_mosaic.version = 11 : i64} {
  func.func @_resblock_kernel(%arg0: i32, %arg1: i32, %arg2: memref<1x1x4x2304xf32, #tpu.memory_space<vmem>>, %arg3: memref<1x2304xf32, #tpu.memory_space<vmem>>, %arg4: memref<4x4xf32, #tpu.memory_space<vmem>>, %arg5: memref<4x1xf32, #tpu.memory_space<vmem>>, %arg6: memref<8x4xf32, #tpu.memory_space<vmem>>, %arg7: memref<8x1xf32, #tpu.memory_space<vmem>>, %arg8: memref<3x4x36xf32, #tpu.memory_space<vmem>>, %arg9: memref<4x1xf32, #tpu.memory_space<vmem>>, %arg10: memref<8x4xf32, #tpu.memory_space<vmem>>, %arg11: memref<8x1xf32, #tpu.memory_space<vmem>>, %arg12: memref<1x8x1536xf32, #tpu.memory_space<vmem>>, %arg13: memref<4x2560xf32, #tpu.memory_space<vmem>>, %arg14: memref<36x1536xf32, #tpu.memory_space<vmem>>) attributes {dimension_semantics = [#tpu.dimension_semantics<parallel>, #tpu.dimension_semantics<parallel>], iteration_bounds = array<i64: 2, 2>, scalar_prefetch = 0 : i64, scratch_operands = 2 : i64, tpu.core_type = #tpu.core_type<tc>, window_params = [{transform_indices = @transform_0, window_bounds = array<i64: 1, 1, 4, 2304>}, {pipeline_mode = #tpu.pipeline_mode<synchronous>, transform_indices = @transform_1, window_bounds = array<i64: 1, 2304>}, {pipeline_mode = #tpu.pipeline_mode<synchronous>, transform_indices = @transform_2, window_bounds = array<i64: 4, 4>}, {pipeline_mode = #tpu.pipeline_mode<synchronous>, transform_indices = @transform_3, window_bounds = array<i64: 4, 1>}, {pipeline_mode = #tpu.pipeline_mode<synchronous>, transform_indices = @transform_4, window_bounds = array<i64: 8, 4>}, {pipeline_mode = #tpu.pipeline_mode<synchronous>, transform_indices = @transform_5, window_bounds = array<i64: 8, 1>}, {pipeline_mode = #tpu.pipeline_mode<synchronous>, transform_indices = @transform_6, window_bounds = array<i64: 3, 4, 36>}, {pipeline_mode = #tpu.pipeline_mode<synchronous>, transform_indices = @transform_7, window_bounds = array<i64: 4, 1>}, {pipeline_mode = #tpu.pipeline_mode<synchronous>, transform_indices = @transform_8, window_bounds = array<i64: 8, 4>}, {pipeline_mode = #tpu.pipeline_mode<synchronous>, transform_indices = @transform_9, window_bounds = array<i64: 8, 1>}, {transform_indices = @transform_10, window_bounds = array<i64: 1, 8, 1536>}]} {
    %c0 = arith.constant 0 : index
    %c0_0 = arith.constant 0 : index
    %c0_1 = arith.constant 0 : index
    %c0_2 = arith.constant 0 : index
    %0 = vector.load %arg2[%c0, %c0_0, %c0_1, %c0_2] : memref<1x1x4x2304xf32, #tpu.memory_space<vmem>>, vector<1x1x4x2304xf32>
    %1 = vector.shape_cast %0 : vector<1x1x4x2304xf32> to vector<4x2304xf32>
    %c0_3 = arith.constant 0 : index
    %c0_4 = arith.constant 0 : index
    %2 = vector.load %arg4[%c0_3, %c0_4] : memref<4x4xf32, #tpu.memory_space<vmem>>, vector<4x4xf32>
    %cst = arith.constant dense<0.000000e+00> : vector<4x2304xf32>
    %3 = tpu.matmul %2, %1, %cst {dimension_numbers = #tpu.dot_dimension_numbers<[1], [0], [0], [1], [0, 0, 1, 1], [], []>} : vector<4x4xf32>, vector<4x2304xf32>, vector<4x2304xf32> -> vector<4x2304xf32>
    %c0_5 = arith.constant 0 : index
    %c0_6 = arith.constant 0 : index
    %4 = vector.load %arg5[%c0_5, %c0_6] : memref<4x1xf32, #tpu.memory_space<vmem>>, vector<4x1xf32>
    %5 = vector.broadcast %4 : vector<4x1xf32> to vector<4x2304xf32>
    %6 = arith.addf %3, %5 : vector<4x2304xf32>
    %cst_7 = arith.constant 0.000000e+00 : f32
    %7 = vector.broadcast %cst_7 : f32 to vector<4x2304xf32>
    %8 = arith.maximumf %6, %7 : vector<4x2304xf32>
    %c0_8 = arith.constant 0 : index
    %c0_9 = arith.constant 0 : index
    %9 = vector.load %arg3[%c0_8, %c0_9] : memref<1x2304xf32, #tpu.memory_space<vmem>>, vector<1x2304xf32>
    %10 = vector.broadcast %9 : vector<1x2304xf32> to vector<4x2304xf32>
    %11 = arith.mulf %8, %10 : vector<4x2304xf32>
    %cst_10 = arith.constant 0.000000e+00 : f32
    %12 = vector.broadcast %cst_10 : f32 to vector<4x128xf32>
    %c0_11 = arith.constant 0 : index
    %c0_12 = arith.constant 0 : index
    %13 = vector.load %arg13[%c0_11, %c0_12] : memref<4x2560xf32, #tpu.memory_space<vmem>>, vector<4x128xf32>
    tpu.vector_store %arg13[%c0_11, %c0_12], %12 {strides = array<i32>} : memref<4x2560xf32, #tpu.memory_space<vmem>>, vector<4x128xf32>,
    %c0_13 = arith.constant 0 : index
    %c2432 = arith.constant 2432 : index
    %14 = vector.load %arg13[%c0_13, %c2432] : memref<4x2560xf32, #tpu.memory_space<vmem>>, vector<4x128xf32>
    tpu.vector_store %arg13[%c0_13, %c2432], %12 {strides = array<i32>} : memref<4x2560xf32, #tpu.memory_space<vmem>>, vector<4x128xf32>,
    %c0_14 = arith.constant 0 : index
    %c128 = arith.constant 128 : index
    %15 = vector.load %arg13[%c0_14, %c128] : memref<4x2560xf32, #tpu.memory_space<vmem>>, vector<4x2304xf32>
    tpu.vector_store %arg13[%c0_14, %c128], %11 {strides = array<i32>} : memref<4x2560xf32, #tpu.memory_space<vmem>>, vector<4x2304xf32>,
    %cst_15 = arith.constant 0.000000e+00 : f32
    %16 = vector.broadcast %cst_15 : f32 to vector<4x384xf32>
    %c0_i32 = arith.constant 0 : i32
    %17 = arith.cmpi eq, %arg1, %c0_i32 : i32
    %18 = arith.extui %17 : i1 to i32
    %c0_i32_16 = arith.constant 0 : i32
    %19 = arith.cmpi ne, %18, %c0_i32_16 : i32
    scf.if %19 {
      %c0_127 = arith.constant 0 : index
      %c128_128 = arith.constant 128 : index
      %117 = vector.load %arg13[%c0_127, %c128_128] : memref<4x2560xf32, #tpu.memory_space<vmem>>, vector<4x384xf32>
      tpu.vector_store %arg13[%c0_127, %c128_128], %16 {strides = array<i32>} : memref<4x2560xf32, #tpu.memory_space<vmem>>, vector<4x384xf32>,
    } else {
    }
    %c1_i32 = arith.constant 1 : i32
    %20 = arith.cmpi eq, %arg1, %c1_i32 : i32
    %21 = arith.extui %20 : i1 to i32
    %c0_i32_17 = arith.constant 0 : i32
    %22 = arith.cmpi ne, %21, %c0_i32_17 : i32
    scf.if %22 {
      %c0_127 = arith.constant 0 : index
      %c2048 = arith.constant 2048 : index
      %117 = vector.load %arg13[%c0_127, %c2048] : memref<4x2560xf32, #tpu.memory_space<vmem>>, vector<4x384xf32>
      tpu.vector_store %arg13[%c0_127, %c2048], %16 {strides = array<i32>} : memref<4x2560xf32, #tpu.memory_space<vmem>>, vector<4x384xf32>,
    } else {
    }
    %c0_18 = arith.constant 0 : index
    %c109 = arith.constant 109 : index
    %23 = vector.load %arg13[%c0_18, %c109] : memref<4x2560xf32, #tpu.memory_space<vmem>>, vector<4x1536xf32>
    %c0_19 = arith.constant 0 : index
    %c0_20 = arith.constant 0 : index
    %24 = vector.load %arg14[%c0_19, %c0_20] : memref<36x1536xf32, #tpu.memory_space<vmem>>, vector<4x1536xf32>
    tpu.vector_store %arg14[%c0_19, %c0_20], %23 {strides = array<i32>} : memref<36x1536xf32, #tpu.memory_space<vmem>>, vector<4x1536xf32>,
    %c0_21 = arith.constant 0 : index
    %c110 = arith.constant 110 : index
    %25 = vector.load %arg13[%c0_21, %c110] : memref<4x2560xf32, #tpu.memory_space<vmem>>, vector<4x1536xf32>
    %c4 = arith.constant 4 : index
    %c0_22 = arith.constant 0 : index
    %26 = vector.load %arg14[%c4, %c0_22] : memref<36x1536xf32, #tpu.memory_space<vmem>>, vector<4x1536xf32>
    tpu.vector_store %arg14[%c4, %c0_22], %25 {strides = array<i32>} : memref<36x1536xf32, #tpu.memory_space<vmem>>, vector<4x1536xf32>,
    %c0_23 = arith.constant 0 : index
    %c111 = arith.constant 111 : index
    %27 = vector.load %arg13[%c0_23, %c111] : memref<4x2560xf32, #tpu.memory_space<vmem>>, vector<4x1536xf32>
    %c8 = arith.constant 8 : index
    %c0_24 = arith.constant 0 : index
    %28 = vector.load %arg14[%c8, %c0_24] : memref<36x1536xf32, #tpu.memory_space<vmem>>, vector<4x1536xf32>
    tpu.vector_store %arg14[%c8, %c0_24], %27 {strides = array<i32>} : memref<36x1536xf32, #tpu.memory_space<vmem>>, vector<4x1536xf32>,
    %c0_25 = arith.constant 0 : index
    %c127 = arith.constant 127 : index
    %29 = vector.load %arg13[%c0_25, %c127] : memref<4x2560xf32, #tpu.memory_space<vmem>>, vector<4x1536xf32>
    %c12 = arith.constant 12 : index
    %c0_26 = arith.constant 0 : index
    %30 = vector.load %arg14[%c12, %c0_26] : memref<36x1536xf32, #tpu.memory_space<vmem>>, vector<4x1536xf32>
    tpu.vector_store %arg14[%c12, %c0_26], %29 {strides = array<i32>} : memref<36x1536xf32, #tpu.memory_space<vmem>>, vector<4x1536xf32>,
    %c0_27 = arith.constant 0 : index
    %c128_28 = arith.constant 128 : index
    %31 = vector.load %arg13[%c0_27, %c128_28] : memref<4x2560xf32, #tpu.memory_space<vmem>>, vector<4x1536xf32>
    %c16 = arith.constant 16 : index
    %c0_29 = arith.constant 0 : index
    %32 = vector.load %arg14[%c16, %c0_29] : memref<36x1536xf32, #tpu.memory_space<vmem>>, vector<4x1536xf32>
    tpu.vector_store %arg14[%c16, %c0_29], %31 {strides = array<i32>} : memref<36x1536xf32, #tpu.memory_space<vmem>>, vector<4x1536xf32>,
    %c0_30 = arith.constant 0 : index
    %c129 = arith.constant 129 : index
    %33 = vector.load %arg13[%c0_30, %c129] : memref<4x2560xf32, #tpu.memory_space<vmem>>, vector<4x1536xf32>
    %c20 = arith.constant 20 : index
    %c0_31 = arith.constant 0 : index
    %34 = vector.load %arg14[%c20, %c0_31] : memref<36x1536xf32, #tpu.memory_space<vmem>>, vector<4x1536xf32>
    tpu.vector_store %arg14[%c20, %c0_31], %33 {strides = array<i32>} : memref<36x1536xf32, #tpu.memory_space<vmem>>, vector<4x1536xf32>,
    %c0_32 = arith.constant 0 : index
    %c145 = arith.constant 145 : index
    %35 = vector.load %arg13[%c0_32, %c145] : memref<4x2560xf32, #tpu.memory_space<vmem>>, vector<4x1536xf32>
    %c24 = arith.constant 24 : index
    %c0_33 = arith.constant 0 : index
    %36 = vector.load %arg14[%c24, %c0_33] : memref<36x1536xf32, #tpu.memory_space<vmem>>, vector<4x1536xf32>
    tpu.vector_store %arg14[%c24, %c0_33], %35 {strides = array<i32>} : memref<36x1536xf32, #tpu.memory_space<vmem>>, vector<4x1536xf32>,
    %c0_34 = arith.constant 0 : index
    %c146 = arith.constant 146 : index
    %37 = vector.load %arg13[%c0_34, %c146] : memref<4x2560xf32, #tpu.memory_space<vmem>>, vector<4x1536xf32>
    %c28 = arith.constant 28 : index
    %c0_35 = arith.constant 0 : index
    %38 = vector.load %arg14[%c28, %c0_35] : memref<36x1536xf32, #tpu.memory_space<vmem>>, vector<4x1536xf32>
    tpu.vector_store %arg14[%c28, %c0_35], %37 {strides = array<i32>} : memref<36x1536xf32, #tpu.memory_space<vmem>>, vector<4x1536xf32>,
    %c0_36 = arith.constant 0 : index
    %c147 = arith.constant 147 : index
    %39 = vector.load %arg13[%c0_36, %c147] : memref<4x2560xf32, #tpu.memory_space<vmem>>, vector<4x1536xf32>
    %c32 = arith.constant 32 : index
    %c0_37 = arith.constant 0 : index
    %40 = vector.load %arg14[%c32, %c0_37] : memref<36x1536xf32, #tpu.memory_space<vmem>>, vector<4x1536xf32>
    tpu.vector_store %arg14[%c32, %c0_37], %39 {strides = array<i32>} : memref<36x1536xf32, #tpu.memory_space<vmem>>, vector<4x1536xf32>,
    %c0_38 = arith.constant 0 : index
    %c0_39 = arith.constant 0 : index
    %c0_40 = arith.constant 0 : index
    %41 = vector.load %arg8[%c0_38, %c0_39, %c0_40] : memref<3x4x36xf32, #tpu.memory_space<vmem>>, vector<1x4x36xf32>
    %42 = vector.shape_cast %41 : vector<1x4x36xf32> to vector<4x36xf32>
    %c0_41 = arith.constant 0 : index
    %c0_42 = arith.constant 0 : index
    %43 = vector.load %arg14[%c0_41, %c0_42] : memref<36x1536xf32, #tpu.memory_space<vmem>>, vector<36x1536xf32>
    %cst_43 = arith.constant dense<0.000000e+00> : vector<4x1536xf32>
    %44 = tpu.matmul %42, %43, %cst_43 {dimension_numbers = #tpu.dot_dimension_numbers<[1], [0], [0], [1], [0, 0, 1, 1], [], []>} : vector<4x36xf32>, vector<36x1536xf32>, vector<4x1536xf32> -> vector<4x1536xf32>
    %c0_44 = arith.constant 0 : index
    %c493 = arith.constant 493 : index
    %45 = vector.load %arg13[%c0_44, %c493] : memref<4x2560xf32, #tpu.memory_space<vmem>>, vector<4x1536xf32>
    %c0_45 = arith.constant 0 : index
    %c0_46 = arith.constant 0 : index
    %46 = vector.load %arg14[%c0_45, %c0_46] : memref<36x1536xf32, #tpu.memory_space<vmem>>, vector<4x1536xf32>
    tpu.vector_store %arg14[%c0_45, %c0_46], %45 {strides = array<i32>} : memref<36x1536xf32, #tpu.memory_space<vmem>>, vector<4x1536xf32>,
    %c0_47 = arith.constant 0 : index
    %c494 = arith.constant 494 : index
    %47 = vector.load %arg13[%c0_47, %c494] : memref<4x2560xf32, #tpu.memory_space<vmem>>, vector<4x1536xf32>
    %c4_48 = arith.constant 4 : index
    %c0_49 = arith.constant 0 : index
    %48 = vector.load %arg14[%c4_48, %c0_49] : memref<36x1536xf32, #tpu.memory_space<vmem>>, vector<4x1536xf32>
    tpu.vector_store %arg14[%c4_48, %c0_49], %47 {strides = array<i32>} : memref<36x1536xf32, #tpu.memory_space<vmem>>, vector<4x1536xf32>,
    %c0_50 = arith.constant 0 : index
    %c495 = arith.constant 495 : index
    %49 = vector.load %arg13[%c0_50, %c495] : memref<4x2560xf32, #tpu.memory_space<vmem>>, vector<4x1536xf32>
    %c8_51 = arith.constant 8 : index
    %c0_52 = arith.constant 0 : index
    %50 = vector.load %arg14[%c8_51, %c0_52] : memref<36x1536xf32, #tpu.memory_space<vmem>>, vector<4x1536xf32>
    tpu.vector_store %arg14[%c8_51, %c0_52], %49 {strides = array<i32>} : memref<36x1536xf32, #tpu.memory_space<vmem>>, vector<4x1536xf32>,
    %c0_53 = arith.constant 0 : index
    %c511 = arith.constant 511 : index
    %51 = vector.load %arg13[%c0_53, %c511] : memref<4x2560xf32, #tpu.memory_space<vmem>>, vector<4x1536xf32>
    %c12_54 = arith.constant 12 : index
    %c0_55 = arith.constant 0 : index
    %52 = vector.load %arg14[%c12_54, %c0_55] : memref<36x1536xf32, #tpu.memory_space<vmem>>, vector<4x1536xf32>
    tpu.vector_store %arg14[%c12_54, %c0_55], %51 {strides = array<i32>} : memref<36x1536xf32, #tpu.memory_space<vmem>>, vector<4x1536xf32>,
    %c0_56 = arith.constant 0 : index
    %c512 = arith.constant 512 : index
    %53 = vector.load %arg13[%c0_56, %c512] : memref<4x2560xf32, #tpu.memory_space<vmem>>, vector<4x1536xf32>
    %c16_57 = arith.constant 16 : index
    %c0_58 = arith.constant 0 : index
    %54 = vector.load %arg14[%c16_57, %c0_58] : memref<36x1536xf32, #tpu.memory_space<vmem>>, vector<4x1536xf32>
    tpu.vector_store %arg14[%c16_57, %c0_58], %53 {strides = array<i32>} : memref<36x1536xf32, #tpu.memory_space<vmem>>, vector<4x1536xf32>,
    %c0_59 = arith.constant 0 : index
    %c513 = arith.constant 513 : index
    %55 = vector.load %arg13[%c0_59, %c513] : memref<4x2560xf32, #tpu.memory_space<vmem>>, vector<4x1536xf32>
    %c20_60 = arith.constant 20 : index
    %c0_61 = arith.constant 0 : index
    %56 = vector.load %arg14[%c20_60, %c0_61] : memref<36x1536xf32, #tpu.memory_space<vmem>>, vector<4x1536xf32>
    tpu.vector_store %arg14[%c20_60, %c0_61], %55 {strides = array<i32>} : memref<36x1536xf32, #tpu.memory_space<vmem>>, vector<4x1536xf32>,
    %c0_62 = arith.constant 0 : index
    %c529 = arith.constant 529 : index
    %57 = vector.load %arg13[%c0_62, %c529] : memref<4x2560xf32, #tpu.memory_space<vmem>>, vector<4x1536xf32>
    %c24_63 = arith.constant 24 : index
    %c0_64 = arith.constant 0 : index
    %58 = vector.load %arg14[%c24_63, %c0_64] : memref<36x1536xf32, #tpu.memory_space<vmem>>, vector<4x1536xf32>
    tpu.vector_store %arg14[%c24_63, %c0_64], %57 {strides = array<i32>} : memref<36x1536xf32, #tpu.memory_space<vmem>>, vector<4x1536xf32>,
    %c0_65 = arith.constant 0 : index
    %c530 = arith.constant 530 : index
    %59 = vector.load %arg13[%c0_65, %c530] : memref<4x2560xf32, #tpu.memory_space<vmem>>, vector<4x1536xf32>
    %c28_66 = arith.constant 28 : index
    %c0_67 = arith.constant 0 : index
    %60 = vector.load %arg14[%c28_66, %c0_67] : memref<36x1536xf32, #tpu.memory_space<vmem>>, vector<4x1536xf32>
    tpu.vector_store %arg14[%c28_66, %c0_67], %59 {strides = array<i32>} : memref<36x1536xf32, #tpu.memory_space<vmem>>, vector<4x1536xf32>,
    %c0_68 = arith.constant 0 : index
    %c531 = arith.constant 531 : index
    %61 = vector.load %arg13[%c0_68, %c531] : memref<4x2560xf32, #tpu.memory_space<vmem>>, vector<4x1536xf32>
    %c32_69 = arith.constant 32 : index
    %c0_70 = arith.constant 0 : index
    %62 = vector.load %arg14[%c32_69, %c0_70] : memref<36x1536xf32, #tpu.memory_space<vmem>>, vector<4x1536xf32>
    tpu.vector_store %arg14[%c32_69, %c0_70], %61 {strides = array<i32>} : memref<36x1536xf32, #tpu.memory_space<vmem>>, vector<4x1536xf32>,
    %c1 = arith.constant 1 : index
    %c0_71 = arith.constant 0 : index
    %c0_72 = arith.constant 0 : index
    %63 = vector.load %arg8[%c1, %c0_71, %c0_72] : memref<3x4x36xf32, #tpu.memory_space<vmem>>, vector<1x4x36xf32>
    %64 = vector.shape_cast %63 : vector<1x4x36xf32> to vector<4x36xf32>
    %c0_73 = arith.constant 0 : index
    %c0_74 = arith.constant 0 : index
    %65 = vector.load %arg14[%c0_73, %c0_74] : memref<36x1536xf32, #tpu.memory_space<vmem>>, vector<36x1536xf32>
    %cst_75 = arith.constant dense<0.000000e+00> : vector<4x1536xf32>
    %66 = tpu.matmul %64, %65, %cst_75 {dimension_numbers = #tpu.dot_dimension_numbers<[1], [0], [0], [1], [0, 0, 1, 1], [], []>} : vector<4x36xf32>, vector<36x1536xf32>, vector<4x1536xf32> -> vector<4x1536xf32>
    %67 = arith.addf %44, %66 : vector<4x1536xf32>
    %c0_76 = arith.constant 0 : index
    %c877 = arith.constant 877 : index
    %68 = vector.load %arg13[%c0_76, %c877] : memref<4x2560xf32, #tpu.memory_space<vmem>>, vector<4x1536xf32>
    %c0_77 = arith.constant 0 : index
    %c0_78 = arith.constant 0 : index
    %69 = vector.load %arg14[%c0_77, %c0_78] : memref<36x1536xf32, #tpu.memory_space<vmem>>, vector<4x1536xf32>
    tpu.vector_store %arg14[%c0_77, %c0_78], %68 {strides = array<i32>} : memref<36x1536xf32, #tpu.memory_space<vmem>>, vector<4x1536xf32>,
    %c0_79 = arith.constant 0 : index
    %c878 = arith.constant 878 : index
    %70 = vector.load %arg13[%c0_79, %c878] : memref<4x2560xf32, #tpu.memory_space<vmem>>, vector<4x1536xf32>
    %c4_80 = arith.constant 4 : index
    %c0_81 = arith.constant 0 : index
    %71 = vector.load %arg14[%c4_80, %c0_81] : memref<36x1536xf32, #tpu.memory_space<vmem>>, vector<4x1536xf32>
    tpu.vector_store %arg14[%c4_80, %c0_81], %70 {strides = array<i32>} : memref<36x1536xf32, #tpu.memory_space<vmem>>, vector<4x1536xf32>,
    %c0_82 = arith.constant 0 : index
    %c879 = arith.constant 879 : index
    %72 = vector.load %arg13[%c0_82, %c879] : memref<4x2560xf32, #tpu.memory_space<vmem>>, vector<4x1536xf32>
    %c8_83 = arith.constant 8 : index
    %c0_84 = arith.constant 0 : index
    %73 = vector.load %arg14[%c8_83, %c0_84] : memref<36x1536xf32, #tpu.memory_space<vmem>>, vector<4x1536xf32>
    tpu.vector_store %arg14[%c8_83, %c0_84], %72 {strides = array<i32>} : memref<36x1536xf32, #tpu.memory_space<vmem>>, vector<4x1536xf32>,
    %c0_85 = arith.constant 0 : index
    %c895 = arith.constant 895 : index
    %74 = vector.load %arg13[%c0_85, %c895] : memref<4x2560xf32, #tpu.memory_space<vmem>>, vector<4x1536xf32>
    %c12_86 = arith.constant 12 : index
    %c0_87 = arith.constant 0 : index
    %75 = vector.load %arg14[%c12_86, %c0_87] : memref<36x1536xf32, #tpu.memory_space<vmem>>, vector<4x1536xf32>
    tpu.vector_store %arg14[%c12_86, %c0_87], %74 {strides = array<i32>} : memref<36x1536xf32, #tpu.memory_space<vmem>>, vector<4x1536xf32>,
    %c0_88 = arith.constant 0 : index
    %c896 = arith.constant 896 : index
    %76 = vector.load %arg13[%c0_88, %c896] : memref<4x2560xf32, #tpu.memory_space<vmem>>, vector<4x1536xf32>
    %c16_89 = arith.constant 16 : index
    %c0_90 = arith.constant 0 : index
    %77 = vector.load %arg14[%c16_89, %c0_90] : memref<36x1536xf32, #tpu.memory_space<vmem>>, vector<4x1536xf32>
    tpu.vector_store %arg14[%c16_89, %c0_90], %76 {strides = array<i32>} : memref<36x1536xf32, #tpu.memory_space<vmem>>, vector<4x1536xf32>,
    %c0_91 = arith.constant 0 : index
    %c897 = arith.constant 897 : index
    %78 = vector.load %arg13[%c0_91, %c897] : memref<4x2560xf32, #tpu.memory_space<vmem>>, vector<4x1536xf32>
    %c20_92 = arith.constant 20 : index
    %c0_93 = arith.constant 0 : index
    %79 = vector.load %arg14[%c20_92, %c0_93] : memref<36x1536xf32, #tpu.memory_space<vmem>>, vector<4x1536xf32>
    tpu.vector_store %arg14[%c20_92, %c0_93], %78 {strides = array<i32>} : memref<36x1536xf32, #tpu.memory_space<vmem>>, vector<4x1536xf32>,
    %c0_94 = arith.constant 0 : index
    %c913 = arith.constant 913 : index
    %80 = vector.load %arg13[%c0_94, %c913] : memref<4x2560xf32, #tpu.memory_space<vmem>>, vector<4x1536xf32>
    %c24_95 = arith.constant 24 : index
    %c0_96 = arith.constant 0 : index
    %81 = vector.load %arg14[%c24_95, %c0_96] : memref<36x1536xf32, #tpu.memory_space<vmem>>, vector<4x1536xf32>
    tpu.vector_store %arg14[%c24_95, %c0_96], %80 {strides = array<i32>} : memref<36x1536xf32, #tpu.memory_space<vmem>>, vector<4x1536xf32>,
    %c0_97 = arith.constant 0 : index
    %c914 = arith.constant 914 : index
    %82 = vector.load %arg13[%c0_97, %c914] : memref<4x2560xf32, #tpu.memory_space<vmem>>, vector<4x1536xf32>
    %c28_98 = arith.constant 28 : index
    %c0_99 = arith.constant 0 : index
    %83 = vector.load %arg14[%c28_98, %c0_99] : memref<36x1536xf32, #tpu.memory_space<vmem>>, vector<4x1536xf32>
    tpu.vector_store %arg14[%c28_98, %c0_99], %82 {strides = array<i32>} : memref<36x1536xf32, #tpu.memory_space<vmem>>, vector<4x1536xf32>,
    %c0_100 = arith.constant 0 : index
    %c915 = arith.constant 915 : index
    %84 = vector.load %arg13[%c0_100, %c915] : memref<4x2560xf32, #tpu.memory_space<vmem>>, vector<4x1536xf32>
    %c32_101 = arith.constant 32 : index
    %c0_102 = arith.constant 0 : index
    %85 = vector.load %arg14[%c32_101, %c0_102] : memref<36x1536xf32, #tpu.memory_space<vmem>>, vector<4x1536xf32>
    tpu.vector_store %arg14[%c32_101, %c0_102], %84 {strides = array<i32>} : memref<36x1536xf32, #tpu.memory_space<vmem>>, vector<4x1536xf32>,
    %c2 = arith.constant 2 : index
    %c0_103 = arith.constant 0 : index
    %c0_104 = arith.constant 0 : index
    %86 = vector.load %arg8[%c2, %c0_103, %c0_104] : memref<3x4x36xf32, #tpu.memory_space<vmem>>, vector<1x4x36xf32>
    %87 = vector.shape_cast %86 : vector<1x4x36xf32> to vector<4x36xf32>
    %c0_105 = arith.constant 0 : index
    %c0_106 = arith.constant 0 : index
    %88 = vector.load %arg14[%c0_105, %c0_106] : memref<36x1536xf32, #tpu.memory_space<vmem>>, vector<36x1536xf32>
    %cst_107 = arith.constant dense<0.000000e+00> : vector<4x1536xf32>
    %89 = tpu.matmul %87, %88, %cst_107 {dimension_numbers = #tpu.dot_dimension_numbers<[1], [0], [0], [1], [0, 0, 1, 1], [], []>} : vector<4x36xf32>, vector<36x1536xf32>, vector<4x1536xf32> -> vector<4x1536xf32>
    %90 = arith.addf %67, %89 : vector<4x1536xf32>
    %c0_108 = arith.constant 0 : index
    %c0_109 = arith.constant 0 : index
    %91 = vector.load %arg9[%c0_108, %c0_109] : memref<4x1xf32, #tpu.memory_space<vmem>>, vector<4x1xf32>
    %92 = vector.broadcast %91 : vector<4x1xf32> to vector<4x1536xf32>
    %93 = arith.addf %90, %92 : vector<4x1536xf32>
    %cst_110 = arith.constant 0.000000e+00 : f32
    %94 = vector.broadcast %cst_110 : f32 to vector<4x1536xf32>
    %95 = arith.maximumf %93, %94 : vector<4x1536xf32>
    %c0_111 = arith.constant 0 : index
    %c0_112 = arith.constant 0 : index
    %96 = vector.load %arg10[%c0_111, %c0_112] : memref<8x4xf32, #tpu.memory_space<vmem>>, vector<8x4xf32>
    %cst_113 = arith.constant dense<0.000000e+00> : vector<8x1536xf32>
    %97 = tpu.matmul %96, %95, %cst_113 {dimension_numbers = #tpu.dot_dimension_numbers<[1], [0], [0], [1], [0, 0, 1, 1], [], []>} : vector<8x4xf32>, vector<4x1536xf32>, vector<8x1536xf32> -> vector<8x1536xf32>
    %c0_114 = arith.constant 0 : index
    %c0_115 = arith.constant 0 : index
    %98 = vector.load %arg11[%c0_114, %c0_115] : memref<8x1xf32, #tpu.memory_space<vmem>>, vector<8x1xf32>
    %99 = vector.broadcast %98 : vector<8x1xf32> to vector<8x1536xf32>
    %100 = arith.addf %97, %99 : vector<8x1536xf32>
    %cst_116 = arith.constant 0.000000e+00 : f32
    %101 = vector.broadcast %cst_116 : f32 to vector<8x1536xf32>
    %102 = arith.maximumf %100, %101 : vector<8x1536xf32>
    %103 = vector.extract_strided_slice %1 {offsets = [0, 384], sizes = [4, 1536], strides = [1, 1]} : vector<4x2304xf32> to vector<4x1536xf32>
    %c0_117 = arith.constant 0 : index
    %c0_118 = arith.constant 0 : index
    %104 = vector.load %arg6[%c0_117, %c0_118] : memref<8x4xf32, #tpu.memory_space<vmem>>, vector<8x4xf32>
    %cst_119 = arith.constant dense<0.000000e+00> : vector<8x1536xf32>
    %105 = tpu.matmul %104, %103, %cst_119 {dimension_numbers = #tpu.dot_dimension_numbers<[1], [0], [0], [1], [0, 0, 1, 1], [], []>} : vector<8x4xf32>, vector<4x1536xf32>, vector<8x1536xf32> -> vector<8x1536xf32>
    %c0_120 = arith.constant 0 : index
    %c0_121 = arith.constant 0 : index
    %106 = vector.load %arg7[%c0_120, %c0_121] : memref<8x1xf32, #tpu.memory_space<vmem>>, vector<8x1xf32>
    %107 = vector.broadcast %106 : vector<8x1xf32> to vector<8x1536xf32>
    %108 = arith.addf %105, %107 : vector<8x1536xf32>
    %cst_122 = arith.constant 0.000000e+00 : f32
    %109 = vector.broadcast %cst_122 : f32 to vector<8x1536xf32>
    %110 = arith.maximumf %108, %109 : vector<8x1536xf32>
    %111 = arith.addf %102, %110 : vector<8x1536xf32>
    %cst_123 = arith.constant 0.000000e+00 : f32
    %112 = vector.broadcast %cst_123 : f32 to vector<8x1536xf32>
    %113 = arith.maximumf %111, %112 : vector<8x1536xf32>
    %c0_124 = arith.constant 0 : index
    %c0_125 = arith.constant 0 : index
    %c0_126 = arith.constant 0 : index
    %114 = vector.load %arg12[%c0_124, %c0_125, %c0_126] : memref<1x8x1536xf32, #tpu.memory_space<vmem>>, vector<1x8x1536xf32>
    %115 = vector.shape_cast %114 : vector<1x8x1536xf32> to vector<8x1536xf32>
    %116 = vector.shape_cast %113 : vector<8x1536xf32> to vector<1x8x1536xf32>
    tpu.vector_store %arg12[%c0_124, %c0_125, %c0_126], %116 {strides = array<i32>} : memref<1x8x1536xf32, #tpu.memory_space<vmem>>, vector<1x8x1536xf32>,
    return
  }
  func.func @transform_0(%arg0: i32, %arg1: i32) -> (i32, i32, i32, i32) {
    %c0_i32 = arith.constant 0 : i32
    %c0_i32_0 = arith.constant 0 : i32
    %c0_i32_1 = arith.constant 0 : i32
    return %arg0, %arg1, %c0_i32, %c0_i32_0 : i32, i32, i32, i32
  }
  func.func @transform_1(%arg0: i32, %arg1: i32) -> (i32, i32) {
    %c0_i32 = arith.constant 0 : i32
    %c0_i32_0 = arith.constant 0 : i32
    %c0_i32_1 = arith.constant 0 : i32
    return %c0_i32, %c0_i32_0 : i32, i32
  }
  func.func @transform_2(%arg0: i32, %arg1: i32) -> (i32, i32) {
    %c0_i32 = arith.constant 0 : i32
    %c0_i32_0 = arith.constant 0 : i32
    %c0_i32_1 = arith.constant 0 : i32
    return %c0_i32, %c0_i32_0 : i32, i32
  }
  func.func @transform_3(%arg0: i32, %arg1: i32) -> (i32, i32) {
    %c0_i32 = arith.constant 0 : i32
    %c0_i32_0 = arith.constant 0 : i32
    %c0_i32_1 = arith.constant 0 : i32
    return %c0_i32, %c0_i32_0 : i32, i32
  }
  func.func @transform_4(%arg0: i32, %arg1: i32) -> (i32, i32) {
    %c0_i32 = arith.constant 0 : i32
    %c0_i32_0 = arith.constant 0 : i32
    %c0_i32_1 = arith.constant 0 : i32
    return %c0_i32, %c0_i32_0 : i32, i32
  }
  func.func @transform_5(%arg0: i32, %arg1: i32) -> (i32, i32) {
    %c0_i32 = arith.constant 0 : i32
    %c0_i32_0 = arith.constant 0 : i32
    %c0_i32_1 = arith.constant 0 : i32
    return %c0_i32, %c0_i32_0 : i32, i32
  }
  func.func @transform_6(%arg0: i32, %arg1: i32) -> (i32, i32, i32) {
    %c0_i32 = arith.constant 0 : i32
    %c0_i32_0 = arith.constant 0 : i32
    %c0_i32_1 = arith.constant 0 : i32
    %c0_i32_2 = arith.constant 0 : i32
    return %c0_i32, %c0_i32_0, %c0_i32_1 : i32, i32, i32
  }
  func.func @transform_7(%arg0: i32, %arg1: i32) -> (i32, i32) {
    %c0_i32 = arith.constant 0 : i32
    %c0_i32_0 = arith.constant 0 : i32
    %c0_i32_1 = arith.constant 0 : i32
    return %c0_i32, %c0_i32_0 : i32, i32
  }
  func.func @transform_8(%arg0: i32, %arg1: i32) -> (i32, i32) {
    %c0_i32 = arith.constant 0 : i32
    %c0_i32_0 = arith.constant 0 : i32
    %c0_i32_1 = arith.constant 0 : i32
    return %c0_i32, %c0_i32_0 : i32, i32
  }
  func.func @transform_9(%arg0: i32, %arg1: i32) -> (i32, i32) {
    %c0_i32 = arith.constant 0 : i32
    %c0_i32_0 = arith.constant 0 : i32
    %c0_i32_1 = arith.constant 0 : i32
    return %c0_i32, %c0_i32_0 : i32, i32
  }
  func.func @transform_10(%arg0: i32, %arg1: i32) -> (i32, i32, i32) {
    %c0_i32 = arith.constant 0 : i32
    %c0_i32_0 = arith.constant 0 : i32
    return %arg0, %c0_i32, %arg1 : i32, i32, i32
  }
}

</mosaic_0001>

<llo_original>
// kernel: tpu_custom_call.1
$region0: #{tpu_custom_call.1}
  #allocation0 [shape = 'u32[]', space=smem, size = 0x4, offset = 0x4, fixed_abs, tag = 'smem constant byte address 0x4 - core index']
  #allocation1 [shape = 'u32[72,128]{1,0:T(1,128)}', space=vmem, size = 0x9000, scoped, tag = 'internal scratch']
  #allocation2 [shape = 'f32[4,2560]{1,0:T(4,128)}', space=vmem, size = 0xa000, scoped, tag = 'scratch operand']
  #allocation3 [shape = 'f32[36,1536]{1,0:T(8,128)}', space=vmem, size = 0x3c000, scoped, tag = 'scratch operand']
  %s0 = inlined_call_operand.hbm [shape: f32[2,2,4,2304], index: 0, kind: input, shape index: {}]
  %s1 = inlined_call_operand.vmem [shape: f32[1,2304], index: 1, kind: input, shape index: {}]
  %s2 = inlined_call_operand.vmem [shape: f32[4,4], index: 2, kind: input, shape index: {}]
  %s3 = inlined_call_operand.vmem [shape: f32[4,1], index: 3, kind: input, shape index: {}]
  %s4 = inlined_call_operand.vmem [shape: f32[8,4], index: 4, kind: input, shape index: {}]
  %s5 = inlined_call_operand.vmem [shape: f32[8,1], index: 5, kind: input, shape index: {}]
  %s6 = inlined_call_operand.vmem [shape: f32[3,4,36], index: 6, kind: input, shape index: {}]
  %s7 = inlined_call_operand.vmem [shape: f32[4,1], index: 7, kind: input, shape index: {}]
  %s8 = inlined_call_operand.vmem [shape: f32[8,4], index: 8, kind: input, shape index: {}]
  %s9 = inlined_call_operand.vmem [shape: f32[8,1], index: 9, kind: input, shape index: {}]
  %s10 = inlined_call_operand.hbm [shape: f32[2,8,3072], index: 10, kind: output, shape index: {}]
  %s11 = sld [smem:[#allocation0]]
  $region85: #{tpu_custom_call.1} parent=0
    _
  %s13 = ssub.s32 1, %s11
  %s14 = scalar_select 0, %s13, %s11
  $region1: #{tpu_custom_call.1} parent=0
    #allocation4 [shape = 'u8[73728]{0}', space=vmem, size = 0x12000, scoped, tag = 'input window, operand 0']
    #allocation5 [shape = 's32[2]{0}', space=sflag, size = 0x8, scoped, tag = 'scoped memory for tpu_custom_call.1']
    #allocation6 [shape = 's32[2]{0}', space=sflag, size = 0x8, scoped, tag = 'scoped memory for tpu_custom_call.1']
    #allocation7 [shape = 'u8[98304]{0}', space=vmem, size = 0x18000, scoped, tag = 'output window, operand 0']
    %15 = vsyncpa [#allocation5], 0
    %s16 = scalar_lea.sflag [#allocation5], 1
    %17 = vsyncpa %s16, 0
    %18 = vsyncpa [#allocation6], 0
    %s19 = scalar_lea.sflag [#allocation6], 1
    %20 = vsyncpa %s19, 0
    loop: start=0, step=1, limit=6
    $region2: #{tpu_custom_call.1} parent=1 // loop_pre_header
      _
    $region3: #{tpu_custom_call.1} parent=1 // loop_header
      %s22 = sphi 0, %s26
      %p23 = scmp.ge.s32.totalorder %s22, 6
      %s29 = sphi 0, %s41
      %s30 = sphi 0, %s37
      %s31 = sphi 0, %s29
      %s32 = sphi 0, %s30
      %s33 = sphi 0, %s31
      %s34 = sphi 0, %s32
      %s46 = sphi 0, %s48
      %s49 = sphi 0, %s46
      %s50 = sphi 0, %s49
      %s66 = sphi 0, %s50
      %s70 = sphi 0, %s70
      %s72 = sphi 0, %s70
      %s73 = sphi 0, %s72
      %s87 = sphi 0, %s73
      %s91 = sphi 0, %s91
      %s93 = sphi 0, %s91
      %s94 = sphi 0, %s93
      %s108 = sphi 0, %s94
      %s112 = sphi 0, %s112
      %s114 = sphi 0, %s112
      %s115 = sphi 0, %s114
      %s129 = sphi 0, %s115
      %s133 = sphi 0, %s133
      %s135 = sphi 0, %s133
      %s136 = sphi 0, %s135
      %s150 = sphi 0, %s136
      %s154 = sphi 0, %s154
      %s156 = sphi 0, %s154
      %s157 = sphi 0, %s156
      %s171 = sphi 0, %s157
      %s175 = sphi 0, %s175
      %s177 = sphi 0, %s175
      %s178 = sphi 0, %s177
      %s192 = sphi 0, %s178
      %s196 = sphi 0, %s196
      %s198 = sphi 0, %s196
      %s199 = sphi 0, %s198
      %s213 = sphi 0, %s199
      %s217 = sphi 0, %s217
      %s219 = sphi 0, %s217
      %s220 = sphi 0, %s219
      %s234 = sphi 0, %s220
      %s238 = sphi 0, %s238
      %s240 = sphi 0, %s238
      %s241 = sphi 0, %s240
      %s255 = sphi 0, %s241
      %s263 = sphi 0, %s265
      %s266 = sphi 0, %s263
      %s267 = sphi 0, %s266
      %s283 = sphi 0, %s267
    $region4: #{tpu_custom_call.1} parent=1 // loop_header_branch
      %25 = sbr.rel (%p23) target = $region8
    $region5: #{tpu_custom_call.1} parent=1 // loop_body
      %s27 = ssub.s32 %s22, 1
      %s28 = ssub.s32 %s22, 2
      %s35 = sadd.s32 1, %s30
      %p36 = scmp.ge.s32.totalorder %s35, 2
      %s37 = scalar_select %p36, 0, %s35
      %s38 = sadd.s32 1, %s29
      %s39 = scalar_select %p36, %s38, %s29
      %p40 = scmp.ge.s32.totalorder %s39, 2
      %s41 = scalar_select %p40, 0, %s39
      %s42 = ssub.s32 %s29, %s41
      %s43 = ssub.s32 %s30, %s37
      %s44 = sor.u32 %s42, %s43
      %p45 = scmp.eq.s32.totalorder %s44, 0
      %s47 = sadd.s32 %s46, 1
      %s48 = scalar_select %p45, %s46, %s47
      %p51 = pneg %p45
      %p52 = scmp.eq.s32.totalorder %s22, 3
      %p53 = por %p51, %p52
      %p54 = scmp.ne.s32.totalorder %s46, %s49
      %p55 = scmp.eq.s32.totalorder %s22, 0
      %p56 = por %p54, %p55
      %p57 = scmp.ne.s32.totalorder %s46, %s49
      %p58 = scmp.eq.s32.totalorder %s27, 3
      %p59 = por %p57, %p58
      %p60 = scmp.ne.s32.totalorder %s49, %s50
      %p61 = scmp.eq.s32.totalorder %s27, 0
      %p62 = por %p60, %p61
      %p63 = scmp.ne.s32.totalorder %s49, %s50
      %p64 = scmp.eq.s32.totalorder %s28, 3
      %p65 = por %p63, %p64
      %p67 = scmp.ne.s32.totalorder %s50, %s66
      %p68 = scmp.eq.s32.totalorder %s28, 0
      %p69 = por %p67, %p68
      %s71 = sadd.s32 %s70, 1
      %p74 = scmp.eq.s32.totalorder %s22, 3
      %p75 = scmp.ne.s32.totalorder %s70, %s72
      %p76 = scmp.eq.s32.totalorder %s22, 0
      %p77 = por %p75, %p76
      %p78 = scmp.ne.s32.totalorder %s70, %s72
      %p79 = scmp.eq.s32.totalorder %s27, 3
      %p80 = por %p78, %p79
      %p81 = scmp.ne.s32.totalorder %s72, %s73
      %p82 = scmp.eq.s32.totalorder %s27, 0
      %p83 = por %p81, %p82
      %p84 = scmp.ne.s32.totalorder %s72, %s73
      %p85 = scmp.eq.s32.totalorder %s28, 3
      %p86 = por %p84, %p85
      %p88 = scmp.ne.s32.totalorder %s73, %s87
      %p89 = scmp.eq.s32.totalorder %s28, 0
      %p90 = por %p88, %p89
      %s92 = sadd.s32 %s91, 1
      %p95 = scmp.eq.s32.totalorder %s22, 3
      %p96 = scmp.ne.s32.totalorder %s91, %s93
      %p97 = scmp.eq.s32.totalorder %s22, 0
      %p98 = por %p96, %p97
      %p99 = scmp.ne.s32.totalorder %s91, %s93
      %p100 = scmp.eq.s32.totalorder %s27, 3
      %p101 = por %p99, %p100
      %p102 = scmp.ne.s32.totalorder %s93, %s94
      %p103 = scmp.eq.s32.totalorder %s27, 0
      %p104 = por %p102, %p103
      %p105 = scmp.ne.s32.totalorder %s93, %s94
      %p106 = scmp.eq.s32.totalorder %s28, 3
      %p107 = por %p105, %p106
      %p109 = scmp.ne.s32.totalorder %s94, %s108
      %p110 = scmp.eq.s32.totalorder %s28, 0
      %p111 = por %p109, %p110
      %s113 = sadd.s32 %s112, 1
      %p116 = scmp.eq.s32.totalorder %s22, 3
      %p117 = scmp.ne.s32.totalorder %s112, %s114
      %p118 = scmp.eq.s32.totalorder %s22, 0
      %p119 = por %p117, %p118
      %p120 = scmp.ne.s32.totalorder %s112, %s114
      %p121 = scmp.eq.s32.totalorder %s27, 3
      %p122 = por %p120, %p121
      %p123 = scmp.ne.s32.totalorder %s114, %s115
      %p124 = scmp.eq.s32.totalorder %s27, 0
      %p125 = por %p123, %p124
      %p126 = scmp.ne.s32.totalorder %s114, %s115
      %p127 = scmp.eq.s32.totalorder %s28, 3
      %p128 = por %p126, %p127
      %p130 = scmp.ne.s32.totalorder %s115, %s129
      %p131 = scmp.eq.s32.totalorder %s28, 0
      %p132 = por %p130, %p131
      %s134 = sadd.s32 %s133, 1
      %p137 = scmp.eq.s32.totalorder %s22, 3
      %p138 = scmp.ne.s32.totalorder %s133, %s135
      %p139 = scmp.eq.s32.totalorder %s22, 0
      %p140 = por %p138, %p139
      %p141 = scmp.ne.s32.totalorder %s133, %s135
      %p142 = scmp.eq.s32.totalorder %s27, 3
      %p143 = por %p141, %p142
      %p144 = scmp.ne.s32.totalorder %s135, %s136
      %p145 = scmp.eq.s32.totalorder %s27, 0
      %p146 = por %p144, %p145
      %p147 = scmp.ne.s32.totalorder %s135, %s136
      %p148 = scmp.eq.s32.totalorder %s28, 3
      %p149 = por %p147, %p148
      %p151 = scmp.ne.s32.totalorder %s136, %s150
      %p152 = scmp.eq.s32.totalorder %s28, 0
      %p153 = por %p151, %p152
      %s155 = sadd.s32 %s154, 1
      %p158 = scmp.eq.s32.totalorder %s22, 3
      %p159 = scmp.ne.s32.totalorder %s154, %s156
      %p160 = scmp.eq.s32.totalorder %s22, 0
      %p161 = por %p159, %p160
      %p162 = scmp.ne.s32.totalorder %s154, %s156
      %p163 = scmp.eq.s32.totalorder %s27, 3
      %p164 = por %p162, %p163
      %p165 = scmp.ne.s32.totalorder %s156, %s157
      %p166 = scmp.eq.s32.totalorder %s27, 0
      %p167 = por %p165, %p166
      %p168 = scmp.ne.s32.totalorder %s156, %s157
      %p169 = scmp.eq.s32.totalorder %s28, 3
      %p170 = por %p168, %p169
      %p172 = scmp.ne.s32.totalorder %s157, %s171
      %p173 = scmp.eq.s32.totalorder %s28, 0
      %p174 = por %p172, %p173
      %s176 = sadd.s32 %s175, 1
      %p179 = scmp.eq.s32.totalorder %s22, 3
      %p180 = scmp.ne.s32.totalorder %s175, %s177
      %p181 = scmp.eq.s32.totalorder %s22, 0
      %p182 = por %p180, %p181
      %p183 = scmp.ne.s32.totalorder %s175, %s177
      %p184 = scmp.eq.s32.totalorder %s27, 3
      %p185 = por %p183, %p184
      %p186 = scmp.ne.s32.totalorder %s177, %s178
      %p187 = scmp.eq.s32.totalorder %s27, 0
      %p188 = por %p186, %p187
      %p189 = scmp.ne.s32.totalorder %s177, %s178
      %p190 = scmp.eq.s32.totalorder %s28, 3
      %p191 = por %p189, %p190
      %p193 = scmp.ne.s32.totalorder %s178, %s192
      %p194 = scmp.eq.s32.totalorder %s28, 0
      %p195 = por %p193, %p194
      %s197 = sadd.s32 %s196, 1
      %p200 = scmp.eq.s32.totalorder %s22, 3
      %p201 = scmp.ne.s32.totalorder %s196, %s198
      %p202 = scmp.eq.s32.totalorder %s22, 0
      %p203 = por %p201, %p202
      %p204 = scmp.ne.s32.totalorder %s196, %s198
      %p205 = scmp.eq.s32.totalorder %s27, 3
      %p206 = por %p204, %p205
      %p207 = scmp.ne.s32.totalorder %s198, %s199
      %p208 = scmp.eq.s32.totalorder %s27, 0
      %p209 = por %p207, %p208
      %p210 = scmp.ne.s32.totalorder %s198, %s199
      %p211 = scmp.eq.s32.totalorder %s28, 3
      %p212 = por %p210, %p211
      %p214 = scmp.ne.s32.totalorder %s199, %s213
      %p215 = scmp.eq.s32.totalorder %s28, 0
      %p216 = por %p214, %p215
      %s218 = sadd.s32 %s217, 1
      %p221 = scmp.eq.s32.totalorder %s22, 3
      %p222 = scmp.ne.s32.totalorder %s217, %s219
      %p223 = scmp.eq.s32.totalorder %s22, 0
      %p224 = por %p222, %p223
      %p225 = scmp.ne.s32.totalorder %s217, %s219
      %p226 = scmp.eq.s32.totalorder %s27, 3
      %p227 = por %p225, %p226
      %p228 = scmp.ne.s32.totalorder %s219, %s220
      %p229 = scmp.eq.s32.totalorder %s27, 0
      %p230 = por %p228, %p229
      %p231 = scmp.ne.s32.totalorder %s219, %s220
      %p232 = scmp.eq.s32.totalorder %s28, 3
      %p233 = por %p231, %p232
      %p235 = scmp.ne.s32.totalorder %s220, %s234
      %p236 = scmp.eq.s32.totalorder %s28, 0
      %p237 = por %p235, %p236
      %s239 = sadd.s32 %s238, 1
      %p242 = scmp.eq.s32.totalorder %s22, 3
      %p243 = scmp.ne.s32.totalorder %s238, %s240
      %p244 = scmp.eq.s32.totalorder %s22, 0
      %p245 = por %p243, %p244
      %p246 = scmp.ne.s32.totalorder %s238, %s240
      %p247 = scmp.eq.s32.totalorder %s27, 3
      %p248 = por %p246, %p247
      %p249 = scmp.ne.s32.totalorder %s240, %s241
      %p250 = scmp.eq.s32.totalorder %s27, 0
      %p251 = por %p249, %p250
      %p252 = scmp.ne.s32.totalorder %s240, %s241
      %p253 = scmp.eq.s32.totalorder %s28, 3
      %p254 = por %p252, %p253
      %p256 = scmp.ne.s32.totalorder %s241, %s255
      %p257 = scmp.eq.s32.totalorder %s28, 0
      %p258 = por %p256, %p257
      %s259 = ssub.s32 %s29, %s41
      %s260 = ssub.s32 %s30, %s37
      %s261 = sor.u32 %s259, %s260
      %p262 = scmp.eq.s32.totalorder %s261, 0
      %s264 = sadd.s32 %s263, 1
      %s265 = scalar_select %p262, %s263, %s264
      %p268 = pneg %p262
      %p269 = scmp.eq.s32.totalorder %s22, 3
      %p270 = por %p268, %p269
      %p271 = scmp.ne.s32.totalorder %s263, %s266
      %p272 = scmp.eq.s32.totalorder %s22, 0
      %p273 = por %p271, %p272
      %p274 = scmp.ne.s32.totalorder %s263, %s266
      %p275 = scmp.eq.s32.totalorder %s27, 3
      %p276 = por %p274, %p275
      %p277 = scmp.ne.s32.totalorder %s266, %s267
      %p278 = scmp.eq.s32.totalorder %s27, 0
      %p279 = por %p277, %p278
      %p280 = scmp.ne.s32.totalorder %s266, %s267
      %p281 = scmp.eq.s32.totalorder %s28, 3
      %p282 = por %p280, %p281
      %p284 = scmp.ne.s32.totalorder %s267, %s283
      %p285 = scmp.eq.s32.totalorder %s28, 0
      %p286 = por %p284, %p285
      %p287 = scmp.le.s32.totalorder 1, %s22
      %p288 = scmp.lt.s32.totalorder %s22, 5
      %p289 = pnand %p287, %p288
      %p290 = pneg %p289
      // Predicated region
      $region9: #{tpu_custom_call.1} parent=5 // pred_check
        _
      $region10: #{tpu_custom_call.1} parent=5 // pred_check_branch
        %292 = sbr.rel (%p289) target = $region12
      $region11: #{tpu_custom_call.1} parent=5 // pred_region
        %s293 = ssub.s32 %s22, 1
        // Predicated region
        $region13: #{tpu_custom_call.1} parent=11 // pred_check
          %p294 = pneg %p83
        $region14: #{tpu_custom_call.1} parent=11 // pred_check_branch
          %296 = sbr.rel (%p294) target = $region16
        $region15: #{tpu_custom_call.1} parent=11 // pred_region
          _
        $region16: #{tpu_custom_call.1} parent=11 // pred_fallthru
          _
        // Predicated region
        $region17: #{tpu_custom_call.1} parent=11 // pred_check
          %p297 = pneg %p104
        $region18: #{tpu_custom_call.1} parent=11 // pred_check_branch
          %299 = sbr.rel (%p297) target = $region20
        $region19: #{tpu_custom_call.1} parent=11 // pred_region
          _
        $region20: #{tpu_custom_call.1} parent=11 // pred_fallthru
          _
        // Predicated region
        $region21: #{tpu_custom_call.1} parent=11 // pred_check
          %p300 = pneg %p125
        $region22: #{tpu_custom_call.1} parent=11 // pred_check_branch
          %302 = sbr.rel (%p300) target = $region24
        $region23: #{tpu_custom_call.1} parent=11 // pred_region
          _
        $region24: #{tpu_custom_call.1} parent=11 // pred_fallthru
          _
        // Predicated region
        $region25: #{tpu_custom_call.1} parent=11 // pred_check
          %p303 = pneg %p146
        $region26: #{tpu_custom_call.1} parent=11 // pred_check_branch
          %305 = sbr.rel (%p303) target = $region28
        $region27: #{tpu_custom_call.1} parent=11 // pred_region
          _
        $region28: #{tpu_custom_call.1} parent=11 // pred_fallthru
          _
        // Predicated region
        $region29: #{tpu_custom_call.1} parent=11 // pred_check
          %p306 = pneg %p167
        $region30: #{tpu_custom_call.1} parent=11 // pred_check_branch
          %308 = sbr.rel (%p306) target = $region32
        $region31: #{tpu_custom_call.1} parent=11 // pred_region
          _
        $region32: #{tpu_custom_call.1} parent=11 // pred_fallthru
          _
        // Predicated region
        $region33: #{tpu_custom_call.1} parent=11 // pred_check
          %p309 = pneg %p188
        $region34: #{tpu_custom_call.1} parent=11 // pred_check_branch
          %311 = sbr.rel (%p309) target = $region36
        $region35: #{tpu_custom_call.1} parent=11 // pred_region
          _
        $region36: #{tpu_custom_call.1} parent=11 // pred_fallthru
          _
        // Predicated region
        $region37: #{tpu_custom_call.1} parent=11 // pred_check
          %p312 = pneg %p209
        $region38: #{tpu_custom_call.1} parent=11 // pred_check_branch
          %314 = sbr.rel (%p312) target = $region40
        $region39: #{tpu_custom_call.1} parent=11 // pred_region
          _
        $region40: #{tpu_custom_call.1} parent=11 // pred_fallthru
          _
        // Predicated region
        $region41: #{tpu_custom_call.1} parent=11 // pred_check
          %p315 = pneg %p230
        $region42: #{tpu_custom_call.1} parent=11 // pred_check_branch
          %317 = sbr.rel (%p315) target = $region44
        $region43: #{tpu_custom_call.1} parent=11 // pred_region
          _
        $region44: #{tpu_custom_call.1} parent=11 // pred_fallthru
          _
        // Predicated region
        $region45: #{tpu_custom_call.1} parent=11 // pred_check
          %p318 = pneg %p251
        $region46: #{tpu_custom_call.1} parent=11 // pred_check_branch
          %320 = sbr.rel (%p318) target = $region48
        $region47: #{tpu_custom_call.1} parent=11 // pred_region
          _
        $region48: #{tpu_custom_call.1} parent=11 // pred_fallthru
          _
      $region12: #{tpu_custom_call.1} parent=5 // pred_fallthru
        _
      %p321 = scmp.lt.s32.totalorder %s22, 4
      // Predicated region
      $region49: #{tpu_custom_call.1} parent=5 // pred_check
        %p322 = pneg %p321
      $region50: #{tpu_custom_call.1} parent=5 // pred_check_branch
        %324 = sbr.rel (%p322) target = $region52
      $region51: #{tpu_custom_call.1} parent=5 // pred_region
        // Predicated region
        $region53: #{tpu_custom_call.1} parent=51 // pred_check
          %p325 = pneg %p56
        $region54: #{tpu_custom_call.1} parent=51 // pred_check_branch
          %327 = sbr.rel (%p325) target = $region56
        $region55: #{tpu_custom_call.1} parent=51 // pred_region
          %s328 = sand.u32 %s46, 1
          %s329 = scalar_lea.sflag [#allocation5], %s328
          %s330 = sand.u32 %s46, 1
          %s331 = smul.addr %s330, 72
          %s332 = scalar_lea.vmem [#allocation4], %s331
          %334 = vsyncadd %s329, 0
          %s335 = smul.addr %s30, 18
          %s336 = smul.addr %s29, 36
          %s337 = sadd.s32 %s335, %s336
          %s338 = smul.addr %s337, 4
          %s339 = scalar_lea.hbm %s0, %s338
          %s341 = sshll.u32 %s339, 4
          %s342 = int_to_ptr.hbm [resolvable:$true] %s341
          %s343 = sshll.u32 %s332, 4
          %s344 = int_to_ptr.vmem [resolvable:$true] %s343
          %346 = dma.hbm_to_vmem [thread:$0]  %s342, 1152, %s344, %s329
        $region56: #{tpu_custom_call.1} parent=51 // pred_fallthru
          _
      $region52: #{tpu_custom_call.1} parent=5 // pred_fallthru
        _
      %p347 = scmp.le.s32.totalorder 1, %s22
      %p348 = scmp.lt.s32.totalorder %s22, 5
      %p349 = pnand %p347, %p348
      %p350 = pneg %p349
      // Predicated region
      $region57: #{tpu_custom_call.1} parent=5 // pred_check
        _
      $region58: #{tpu_custom_call.1} parent=5 // pred_check_branch
        %352 = sbr.rel (%p349) target = $region60
      $region59: #{tpu_custom_call.1} parent=5 // pred_region
        %s353 = ssub.s32 %s22, 1
        %s354 = sand.u32 %s49, 1
        %s355 = scalar_lea.sflag [#allocation5], %s354
        %s356 = sand.u32 %s49, 1
        %s357 = smul.addr %s356, 72
        %s358 = scalar_lea.vmem [#allocation4], %s357
        // Predicated region
        $region61: #{tpu_custom_call.1} parent=59 // pred_check
          %p359 = pneg %p62
        $region62: #{tpu_custom_call.1} parent=59 // pred_check_branch
          %361 = sbr.rel (%p359) target = $region64
        $region63: #{tpu_custom_call.1} parent=59 // pred_region
          %363 = dma.done %s355, 1152
        $region64: #{tpu_custom_call.1} parent=59 // pred_fallthru
          _
        %s364 = sand.u32 %s49, 1
        %s365 = scalar_lea.sflag [#allocation5], %s364
        %s366 = sand.u32 %s49, 1
        %s367 = smul.addr %s366, 72
        %s368 = scalar_lea.vmem [#allocation4], %s367
        %p369 = pneg %p62
        %p370 = pneg %p59
        %p371 = pneg %p83
        %p372 = pneg %p80
        %p373 = pneg %p104
        %p374 = pneg %p101
        %p375 = pneg %p125
        %p376 = pneg %p122
        %p377 = pneg %p146
        %p378 = pneg %p143
        %p379 = pneg %p167
        %p380 = pneg %p164
        %p381 = pneg %p188
        %p382 = pneg %p185
        %p383 = pneg %p209
        %p384 = pneg %p206
        %p385 = pneg %p230
        %p386 = pneg %p227
        %p387 = pneg %p251
        %p388 = pneg %p248
        %p389 = pneg %p279
        %p390 = pneg %p276
        %s391 = sand.u32 %s266, 1
        %s392 = scalar_lea.sflag [#allocation6], %s391
        %s393 = sand.u32 %s266, 1
        %s394 = smul.addr %s393, 96
        %s395 = scalar_lea.vmem [#allocation7], %s394
        %s396 = smul.u32 12, %s32
        %v397 = vld [vmem:[%s358] sm:$0xff]
        %v398 = vld [vmem:[%s358 + $0x8] sm:$0xff]
        %v399 = vld [vmem:[%s358 + $0x10] sm:$0xff]
        %v400 = vld [vmem:[%s358 + $0x18] sm:$0xff]
        %v401 = vld [vmem:[%s358 + $0x20] sm:$0xff]
        %v402 = vld [vmem:[%s358 + $0x28] sm:$0xff]
        %v403 = vld [vmem:[%s358 + $0x30] sm:$0xff]
        %v404 = vld [vmem:[%s358 + $0x38] sm:$0xff]
        %v405 = vld [vmem:[%s358 + $0x40] sm:$0xff]
        %v406 = vld [vmem:[%s2] sm:$0xf]
        %v407 = vld [vmem:[%s3] sm:$0xf]
        %409 = vset.pattern.permute.xlu0 0
        %410 = vperm.xlu0 %409, %v407
        %v411 = vpop.permute.xlu0 %410
        %422 = vst [vmem:[#allocation1] ss:$2 sm:$0xff] %v397
        %s423 = scalar_lea.vmem [#allocation1], 16
        %424 = vst [vmem:[%s423] ss:$2 sm:$0xff] %v398
        %s425 = scalar_lea.vmem [#allocation1], 32
        %426 = vst [vmem:[%s425] ss:$2 sm:$0xff] %v399
        %s427 = scalar_lea.vmem [#allocation1], 48
        %428 = vst [vmem:[%s427] ss:$2 sm:$0xff] %v400
        %v429 = vld.sshfl [vmem:[#allocation1] sm:$0xff pattern:$0x75316420]
        %v430 = vld.sshfl [vmem:[#allocation1 + $0x8] sm:$0xff pattern:$0x75316420]
        %v431 = vld.sshfl [vmem:[#allocation1 + $0x10] sm:$0xff pattern:$0x75316420]
        %v432 = vld.sshfl [vmem:[#allocation1 + $0x18] sm:$0xff pattern:$0x75316420]
        %v433 = vld.sshfl [vmem:[#allocation1 + $0x20] sm:$0xff pattern:$0x75316420]
        %v434 = vld.sshfl [vmem:[#allocation1 + $0x28] sm:$0xff pattern:$0x75316420]
        %v435 = vld.sshfl [vmem:[#allocation1 + $0x30] sm:$0xff pattern:$0x75316420]
        %v436 = vld.sshfl [vmem:[#allocation1 + $0x38] sm:$0xff pattern:$0x75316420]
        %437 = vst [vmem:[#allocation1] ss:$2 sm:$0xff] %v401
        %438 = vst [vmem:[%s423] ss:$2 sm:$0xff] %v402
        %439 = vst [vmem:[%s425] ss:$2 sm:$0xff] %v403
        %440 = vst [vmem:[%s427] ss:$2 sm:$0xff] %v404
        %v441 = vld.sshfl [vmem:[#allocation1] sm:$0xff pattern:$0x75316420]
        %v442 = vld.sshfl [vmem:[#allocation1 + $0x8] sm:$0xff pattern:$0x75316420]
        %v443 = vld.sshfl [vmem:[#allocation1 + $0x10] sm:$0xff pattern:$0x75316420]
        %v444 = vld.sshfl [vmem:[#allocation1 + $0x18] sm:$0xff pattern:$0x75316420]
        %v445 = vld.sshfl [vmem:[#allocation1 + $0x20] sm:$0xff pattern:$0x75316420]
        %v446 = vld.sshfl [vmem:[#allocation1 + $0x28] sm:$0xff pattern:$0x75316420]
        %v447 = vld.sshfl [vmem:[#allocation1 + $0x30] sm:$0xff pattern:$0x75316420]
        %v448 = vld.sshfl [vmem:[#allocation1 + $0x38] sm:$0xff pattern:$0x75316420]
        %449 = vst [vmem:[#allocation1] ss:$2 sm:$0xff] %v405
        %v450 = vld.sshfl [vmem:[#allocation1] sm:$0xff pattern:$0x75316420]
        %v451 = vld.sshfl [vmem:[#allocation1 + $0x8] sm:$0xff pattern:$0x75316420]
        %vm452 = vcmask 31744
        %v454 = vsel %vm452, %v406, 0
        %vm456 = vcmask 1043456
        %v457 = vsel %vm456, %v429, 0
        %v459 = vsel %vm456, %v430, 0
        %v461 = vsel %vm456, %v431, 0
        %v463 = vsel %vm456, %v432, 0
        %v465 = vsel %vm456, %v433, 0
        %v467 = vsel %vm456, %v434, 0
        %v469 = vsel %vm456, %v435, 0
        %v471 = vsel %vm456, %v436, 0
        %v473 = vsel %vm456, %v441, 0
        %v475 = vsel %vm456, %v442, 0
        %v477 = vsel %vm456, %v443, 0
        %v479 = vsel %vm456, %v444, 0
        %v481 = vsel %vm456, %v445, 0
        %v483 = vsel %vm456, %v446, 0
        %v485 = vsel %vm456, %v447, 0
        %v487 = vsel %vm456, %v448, 0
        %v489 = vsel %vm456, %v450, 0
        %v491 = vsel %vm456, %v451, 0
        %493 = vmatpush.msra.mxu0 0.0
        %494 = vmatpush.msra.mxu0 0.0
        %495 = vmatpush.msra.mxu0 0.0
        %496 = vmatpush.msra.mxu0 0.0
        %497 = vmatpush.msra.mxu0 0.0
        %498 = vmatpush.msra.mxu0 0.0
        %499 = vmatpush.msra.mxu0 0.0
        %500 = vmatpush.msra.mxu0 0.0
        %501 = vmatpush.msra.mxu0 0.0
        %502 = vmatpush.msra.mxu0 0.0
        %503 = vmatpush.msra.mxu0 0.0
        %504 = vmatpush.msra.mxu0 0.0
        %505 = vmatpush.msra.mxu0 0.0
        %506 = vmatpush.msra.mxu0 0.0
        %507 = vmatpush.msra.mxu0 0.0
        %508 = vmatpush.msra.mxu0 %v457
        %509 = vmatmul.f32.gmra.mxu0 %v454
        %v510 = vpop.f32.mrf.mxu0
        %v511 = vadd.f32 %v411, %v510
        %512 = vdwg.mxu0
        %513 = vmatpush.msra.mxu0 0.0
        %514 = vmatpush.msra.mxu0 0.0
        %515 = vmatpush.msra.mxu0 0.0
        %516 = vmatpush.msra.mxu0 0.0
        %517 = vmatpush.msra.mxu0 0.0
        %518 = vmatpush.msra.mxu0 0.0
        %519 = vmatpush.msra.mxu0 0.0
        %520 = vmatpush.msra.mxu0 0.0
        %521 = vmatpush.msra.mxu0 0.0
        %522 = vmatpush.msra.mxu0 0.0
        %523 = vmatpush.msra.mxu0 0.0
        %524 = vmatpush.msra.mxu0 0.0
        %525 = vmatpush.msra.mxu0 0.0
        %526 = vmatpush.msra.mxu0 0.0
        %527 = vmatpush.msra.mxu0 0.0
        %528 = vmatpush.msra.mxu0 %v459
        %529 = vmatmul.f32.gmra.mxu0 %v454
        %v530 = vpop.f32.mrf.mxu0
        %v531 = vadd.f32 %v411, %v530
        %532 = vdwg.mxu0
        %533 = vmatpush.msra.mxu0 0.0
        %534 = vmatpush.msra.mxu0 0.0
        %535 = vmatpush.msra.mxu0 0.0
        %536 = vmatpush.msra.mxu0 0.0
        %537 = vmatpush.msra.mxu0 0.0
        %538 = vmatpush.msra.mxu0 0.0
        %539 = vmatpush.msra.mxu0 0.0
        %540 = vmatpush.msra.mxu0 0.0
        %541 = vmatpush.msra.mxu0 0.0
        %542 = vmatpush.msra.mxu0 0.0
        %543 = vmatpush.msra.mxu0 0.0
        %544 = vmatpush.msra.mxu0 0.0
        %545 = vmatpush.msra.mxu0 0.0
        %546 = vmatpush.msra.mxu0 0.0
        %547 = vmatpush.msra.mxu0 0.0
        %548 = vmatpush.msra.mxu0 %v461
        %549 = vmatmul.f32.gmra.mxu0 %v454
        %v550 = vpop.f32.mrf.mxu0
        %v551 = vadd.f32 %v411, %v550
        %552 = vdwg.mxu0
        %553 = vmatpush.msra.mxu0 0.0
        %554 = vmatpush.msra.mxu0 0.0
        %555 = vmatpush.msra.mxu0 0.0
        %556 = vmatpush.msra.mxu0 0.0
        %557 = vmatpush.msra.mxu0 0.0
        %558 = vmatpush.msra.mxu0 0.0
        %559 = vmatpush.msra.mxu0 0.0
        %560 = vmatpush.msra.mxu0 0.0
        %561 = vmatpush.msra.mxu0 0.0
        %562 = vmatpush.msra.mxu0 0.0
        %563 = vmatpush.msra.mxu0 0.0
        %564 = vmatpush.msra.mxu0 0.0
        %565 = vmatpush.msra.mxu0 0.0
        %566 = vmatpush.msra.mxu0 0.0
        %567 = vmatpush.msra.mxu0 0.0
        %568 = vmatpush.msra.mxu0 %v463
        %569 = vmatmul.f32.gmra.mxu0 %v454
        %v570 = vpop.f32.mrf.mxu0
        %v571 = vadd.f32 %v411, %v570
        %572 = vdwg.mxu0
        %573 = vmatpush.msra.mxu0 0.0
        %574 = vmatpush.msra.mxu0 0.0
        %575 = vmatpush.msra.mxu0 0.0
        %576 = vmatpush.msra.mxu0 0.0
        %577 = vmatpush.msra.mxu0 0.0
        %578 = vmatpush.msra.mxu0 0.0
        %579 = vmatpush.msra.mxu0 0.0
        %580 = vmatpush.msra.mxu0 0.0
        %581 = vmatpush.msra.mxu0 0.0
        %582 = vmatpush.msra.mxu0 0.0
        %583 = vmatpush.msra.mxu0 0.0
        %584 = vmatpush.msra.mxu0 0.0
        %585 = vmatpush.msra.mxu0 0.0
        %586 = vmatpush.msra.mxu0 0.0
        %587 = vmatpush.msra.mxu0 0.0
        %588 = vmatpush.msra.mxu0 %v465
        %589 = vmatmul.f32.gmra.mxu0 %v454
        %v590 = vpop.f32.mrf.mxu0
        %v591 = vadd.f32 %v411, %v590
        %592 = vdwg.mxu0
        %593 = vmatpush.msra.mxu0 0.0
        %594 = vmatpush.msra.mxu0 0.0
        %595 = vmatpush.msra.mxu0 0.0
        %596 = vmatpush.msra.mxu0 0.0
        %597 = vmatpush.msra.mxu0 0.0
        %598 = vmatpush.msra.mxu0 0.0
        %599 = vmatpush.msra.mxu0 0.0
        %600 = vmatpush.msra.mxu0 0.0
        %601 = vmatpush.msra.mxu0 0.0
        %602 = vmatpush.msra.mxu0 0.0
        %603 = vmatpush.msra.mxu0 0.0
        %604 = vmatpush.msra.mxu0 0.0
        %605 = vmatpush.msra.mxu0 0.0
        %606 = vmatpush.msra.mxu0 0.0
        %607 = vmatpush.msra.mxu0 0.0
        %608 = vmatpush.msra.mxu0 %v467
        %609 = vmatmul.f32.gmra.mxu0 %v454
        %v610 = vpop.f32.mrf.mxu0
        %v611 = vadd.f32 %v411, %v610
        %612 = vdwg.mxu0
        %613 = vmatpush.msra.mxu0 0.0
        %614 = vmatpush.msra.mxu0 0.0
        %615 = vmatpush.msra.mxu0 0.0
        %616 = vmatpush.msra.mxu0 0.0
        %617 = vmatpush.msra.mxu0 0.0
        %618 = vmatpush.msra.mxu0 0.0
        %619 = vmatpush.msra.mxu0 0.0
        %620 = vmatpush.msra.mxu0 0.0
        %621 = vmatpush.msra.mxu0 0.0
        %622 = vmatpush.msra.mxu0 0.0
        %623 = vmatpush.msra.mxu0 0.0
        %624 = vmatpush.msra.mxu0 0.0
        %625 = vmatpush.msra.mxu0 0.0
        %626 = vmatpush.msra.mxu0 0.0
        %627 = vmatpush.msra.mxu0 0.0
        %628 = vmatpush.msra.mxu0 %v469
        %629 = vmatmul.f32.gmra.mxu0 %v454
        %v630 = vpop.f32.mrf.mxu0
        %v631 = vadd.f32 %v411, %v630
        %632 = vdwg.mxu0
        %633 = vmatpush.msra.mxu0 0.0
        %634 = vmatpush.msra.mxu0 0.0
        %635 = vmatpush.msra.mxu0 0.0
        %636 = vmatpush.msra.mxu0 0.0
        %637 = vmatpush.msra.mxu0 0.0
        %638 = vmatpush.msra.mxu0 0.0
        %639 = vmatpush.msra.mxu0 0.0
        %640 = vmatpush.msra.mxu0 0.0
        %641 = vmatpush.msra.mxu0 0.0
        %642 = vmatpush.msra.mxu0 0.0
        %643 = vmatpush.msra.mxu0 0.0
        %644 = vmatpush.msra.mxu0 0.0
        %645 = vmatpush.msra.mxu0 0.0
        %646 = vmatpush.msra.mxu0 0.0
        %647 = vmatpush.msra.mxu0 0.0
        %648 = vmatpush.msra.mxu0 %v471
        %649 = vmatmul.f32.gmra.mxu0 %v454
        %v650 = vpop.f32.mrf.mxu0
        %v651 = vadd.f32 %v411, %v650
        %652 = vdwg.mxu0
        %653 = vmatpush.msra.mxu0 0.0
        %654 = vmatpush.msra.mxu0 0.0
        %655 = vmatpush.msra.mxu0 0.0
        %656 = vmatpush.msra.mxu0 0.0
        %657 = vmatpush.msra.mxu0 0.0
        %658 = vmatpush.msra.mxu0 0.0
        %659 = vmatpush.msra.mxu0 0.0
        %660 = vmatpush.msra.mxu0 0.0
        %661 = vmatpush.msra.mxu0 0.0
        %662 = vmatpush.msra.mxu0 0.0
        %663 = vmatpush.msra.mxu0 0.0
        %664 = vmatpush.msra.mxu0 0.0
        %665 = vmatpush.msra.mxu0 0.0
        %666 = vmatpush.msra.mxu0 0.0
        %667 = vmatpush.msra.mxu0 0.0
        %668 = vmatpush.msra.mxu0 %v473
        %669 = vmatmul.f32.gmra.mxu0 %v454
        %v670 = vpop.f32.mrf.mxu0
        %v671 = vadd.f32 %v411, %v670
        %672 = vdwg.mxu0
        %673 = vmatpush.msra.mxu0 0.0
        %674 = vmatpush.msra.mxu0 0.0
        %675 = vmatpush.msra.mxu0 0.0
        %676 = vmatpush.msra.mxu0 0.0
        %677 = vmatpush.msra.mxu0 0.0
        %678 = vmatpush.msra.mxu0 0.0
        %679 = vmatpush.msra.mxu0 0.0
        %680 = vmatpush.msra.mxu0 0.0
        %681 = vmatpush.msra.mxu0 0.0
        %682 = vmatpush.msra.mxu0 0.0
        %683 = vmatpush.msra.mxu0 0.0
        %684 = vmatpush.msra.mxu0 0.0
        %685 = vmatpush.msra.mxu0 0.0
        %686 = vmatpush.msra.mxu0 0.0
        %687 = vmatpush.msra.mxu0 0.0
        %688 = vmatpush.msra.mxu0 %v475
        %689 = vmatmul.f32.gmra.mxu0 %v454
        %v690 = vpop.f32.mrf.mxu0
        %v691 = vadd.f32 %v411, %v690
        %692 = vdwg.mxu0
        %693 = vmatpush.msra.mxu0 0.0
        %694 = vmatpush.msra.mxu0 0.0
        %695 = vmatpush.msra.mxu0 0.0
        %696 = vmatpush.msra.mxu0 0.0
        %697 = vmatpush.msra.mxu0 0.0
        %698 = vmatpush.msra.mxu0 0.0
        %699 = vmatpush.msra.mxu0 0.0
        %700 = vmatpush.msra.mxu0 0.0
        %701 = vmatpush.msra.mxu0 0.0
        %702 = vmatpush.msra.mxu0 0.0
        %703 = vmatpush.msra.mxu0 0.0
        %704 = vmatpush.msra.mxu0 0.0
        %705 = vmatpush.msra.mxu0 0.0
        %706 = vmatpush.msra.mxu0 0.0
        %707 = vmatpush.msra.mxu0 0.0
        %708 = vmatpush.msra.mxu0 %v477
        %709 = vmatmul.f32.gmra.mxu0 %v454
        %v710 = vpop.f32.mrf.mxu0
        %v711 = vadd.f32 %v411, %v710
        %712 = vdwg.mxu0
        %713 = vmatpush.msra.mxu0 0.0
        %714 = vmatpush.msra.mxu0 0.0
        %715 = vmatpush.msra.mxu0 0.0
        %716 = vmatpush.msra.mxu0 0.0
        %717 = vmatpush.msra.mxu0 0.0
        %718 = vmatpush.msra.mxu0 0.0
        %719 = vmatpush.msra.mxu0 0.0
        %720 = vmatpush.msra.mxu0 0.0
        %721 = vmatpush.msra.mxu0 0.0
        %722 = vmatpush.msra.mxu0 0.0
        %723 = vmatpush.msra.mxu0 0.0
        %724 = vmatpush.msra.mxu0 0.0
        %725 = vmatpush.msra.mxu0 0.0
        %726 = vmatpush.msra.mxu0 0.0
        %727 = vmatpush.msra.mxu0 0.0
        %728 = vmatpush.msra.mxu0 %v479
        %729 = vmatmul.f32.gmra.mxu0 %v454
        %v730 = vpop.f32.mrf.mxu0
        %v731 = vadd.f32 %v411, %v730
        %732 = vdwg.mxu0
        %733 = vmatpush.msra.mxu0 0.0
        %734 = vmatpush.msra.mxu0 0.0
        %735 = vmatpush.msra.mxu0 0.0
        %736 = vmatpush.msra.mxu0 0.0
        %737 = vmatpush.msra.mxu0 0.0
        %738 = vmatpush.msra.mxu0 0.0
        %739 = vmatpush.msra.mxu0 0.0
        %740 = vmatpush.msra.mxu0 0.0
        %741 = vmatpush.msra.mxu0 0.0
        %742 = vmatpush.msra.mxu0 0.0
        %743 = vmatpush.msra.mxu0 0.0
        %744 = vmatpush.msra.mxu0 0.0
        %745 = vmatpush.msra.mxu0 0.0
        %746 = vmatpush.msra.mxu0 0.0
        %747 = vmatpush.msra.mxu0 0.0
        %748 = vmatpush.msra.mxu0 %v481
        %749 = vmatmul.f32.gmra.mxu0 %v454
        %v750 = vpop.f32.mrf.mxu0
        %v751 = vadd.f32 %v411, %v750
        %752 = vdwg.mxu0
        %753 = vmatpush.msra.mxu0 0.0
        %754 = vmatpush.msra.mxu0 0.0
        %755 = vmatpush.msra.mxu0 0.0
        %756 = vmatpush.msra.mxu0 0.0
        %757 = vmatpush.msra.mxu0 0.0
        %758 = vmatpush.msra.mxu0 0.0
        %759 = vmatpush.msra.mxu0 0.0
        %760 = vmatpush.msra.mxu0 0.0
        %761 = vmatpush.msra.mxu0 0.0
        %762 = vmatpush.msra.mxu0 0.0
        %763 = vmatpush.msra.mxu0 0.0
        %764 = vmatpush.msra.mxu0 0.0
        %765 = vmatpush.msra.mxu0 0.0
        %766 = vmatpush.msra.mxu0 0.0
        %767 = vmatpush.msra.mxu0 0.0
        %768 = vmatpush.msra.mxu0 %v483
        %769 = vmatmul.f32.gmra.mxu0 %v454
        %v770 = vpop.f32.mrf.mxu0
        %v771 = vadd.f32 %v411, %v770
        %772 = vdwg.mxu0
        %773 = vmatpush.msra.mxu0 0.0
        %774 = vmatpush.msra.mxu0 0.0
        %775 = vmatpush.msra.mxu0 0.0
        %776 = vmatpush.msra.mxu0 0.0
        %777 = vmatpush.msra.mxu0 0.0
        %778 = vmatpush.msra.mxu0 0.0
        %779 = vmatpush.msra.mxu0 0.0
        %780 = vmatpush.msra.mxu0 0.0
        %781 = vmatpush.msra.mxu0 0.0
        %782 = vmatpush.msra.mxu0 0.0
        %783 = vmatpush.msra.mxu0 0.0
        %784 = vmatpush.msra.mxu0 0.0
        %785 = vmatpush.msra.mxu0 0.0
        %786 = vmatpush.msra.mxu0 0.0
        %787 = vmatpush.msra.mxu0 0.0
        %788 = vmatpush.msra.mxu0 %v485
        %789 = vmatmul.f32.gmra.mxu0 %v454
        %v790 = vpop.f32.mrf.mxu0
        %v791 = vadd.f32 %v411, %v790
        %792 = vdwg.mxu0
        %793 = vmatpush.msra.mxu0 0.0
        %794 = vmatpush.msra.mxu0 0.0
        %795 = vmatpush.msra.mxu0 0.0
        %796 = vmatpush.msra.mxu0 0.0
        %797 = vmatpush.msra.mxu0 0.0
        %798 = vmatpush.msra.mxu0 0.0
        %799 = vmatpush.msra.mxu0 0.0
        %800 = vmatpush.msra.mxu0 0.0
        %801 = vmatpush.msra.mxu0 0.0
        %802 = vmatpush.msra.mxu0 0.0
        %803 = vmatpush.msra.mxu0 0.0
        %804 = vmatpush.msra.mxu0 0.0
        %805 = vmatpush.msra.mxu0 0.0
        %806 = vmatpush.msra.mxu0 0.0
        %807 = vmatpush.msra.mxu0 0.0
        %808 = vmatpush.msra.mxu0 %v487
        %809 = vmatmul.f32.gmra.mxu0 %v454
        %v810 = vpop.f32.mrf.mxu0
        %v811 = vadd.f32 %v411, %v810
        %812 = vdwg.mxu0
        %813 = vmatpush.msra.mxu0 0.0
        %814 = vmatpush.msra.mxu0 0.0
        %815 = vmatpush.msra.mxu0 0.0
        %816 = vmatpush.msra.mxu0 0.0
        %817 = vmatpush.msra.mxu0 0.0
        %818 = vmatpush.msra.mxu0 0.0
        %819 = vmatpush.msra.mxu0 0.0
        %820 = vmatpush.msra.mxu0 0.0
        %821 = vmatpush.msra.mxu0 0.0
        %822 = vmatpush.msra.mxu0 0.0
        %823 = vmatpush.msra.mxu0 0.0
        %824 = vmatpush.msra.mxu0 0.0
        %825 = vmatpush.msra.mxu0 0.0
        %826 = vmatpush.msra.mxu0 0.0
        %827 = vmatpush.msra.mxu0 0.0
        %828 = vmatpush.msra.mxu0 %v489
        %829 = vmatmul.f32.gmra.mxu0 %v454
        %v830 = vpop.f32.mrf.mxu0
        %v831 = vadd.f32 %v411, %v830
        %832 = vdwg.mxu0
        %833 = vmatpush.msra.mxu0 0.0
        %834 = vmatpush.msra.mxu0 0.0
        %835 = vmatpush.msra.mxu0 0.0
        %836 = vmatpush.msra.mxu0 0.0
        %837 = vmatpush.msra.mxu0 0.0
        %838 = vmatpush.msra.mxu0 0.0
        %839 = vmatpush.msra.mxu0 0.0
        %840 = vmatpush.msra.mxu0 0.0
        %841 = vmatpush.msra.mxu0 0.0
        %842 = vmatpush.msra.mxu0 0.0
        %843 = vmatpush.msra.mxu0 0.0
        %844 = vmatpush.msra.mxu0 0.0
        %845 = vmatpush.msra.mxu0 0.0
        %846 = vmatpush.msra.mxu0 0.0
        %847 = vmatpush.msra.mxu0 0.0
        %848 = vmatpush.msra.mxu0 %v491
        %849 = vmatmul.f32.gmra.mxu0 %v454
        %v850 = vpop.f32.mrf.mxu0
        %v851 = vadd.f32 %v411, %v850
        %852 = vdwg.mxu0
        %v853 = vmax.f32 %v511, 0.0
        %v854 = vmax.f32 %v531, 0.0
        %v855 = vmax.f32 %v551, 0.0
        %v856 = vmax.f32 %v571, 0.0
        %v857 = vmax.f32 %v591, 0.0
        %v858 = vmax.f32 %v611, 0.0
        %v859 = vmax.f32 %v631, 0.0
        %v860 = vmax.f32 %v651, 0.0
        %v861 = vmax.f32 %v671, 0.0
        %v862 = vmax.f32 %v691, 0.0
        %v863 = vmax.f32 %v711, 0.0
        %v864 = vmax.f32 %v731, 0.0
        %v865 = vmax.f32 %v751, 0.0
        %v866 = vmax.f32 %v771, 0.0
        %v867 = vmax.f32 %v791, 0.0
        %v868 = vmax.f32 %v811, 0.0
        %v869 = vmax.f32 %v831, 0.0
        %v870 = vmax.f32 %v851, 0.0
        %v871 = vld [vmem:[%s1] sm:$0xff]
        %v872 = vld [vmem:[%s1 + $0x8] sm:$0xff]
        %v873 = vld [vmem:[%s1 + $0x10] sm:$0x3]
        %v877 = vperm.slane %v871, 0
        %v878 = vperm.slane %v871, 1
        %v879 = vperm.slane %v871, 2
        %v880 = vperm.slane %v871, 3
        %v881 = vperm.slane %v871, 4
        %v882 = vperm.slane %v871, 5
        %v883 = vperm.slane %v871, 6
        %v884 = vperm.slane %v871, 7
        %v885 = vperm.slane %v872, 0
        %v886 = vperm.slane %v872, 1
        %v887 = vperm.slane %v872, 2
        %v888 = vperm.slane %v872, 3
        %v889 = vperm.slane %v872, 4
        %v890 = vperm.slane %v872, 5
        %v891 = vperm.slane %v872, 6
        %v892 = vperm.slane %v872, 7
        %v893 = vperm.slane %v873, 0
        %v894 = vperm.slane %v873, 1
        %v913 = vmul.f32 %v853, %v877
        %v914 = vmul.f32 %v854, %v878
        %v915 = vmul.f32 %v855, %v879
        %v916 = vmul.f32 %v856, %v880
        %v917 = vmul.f32 %v857, %v881
        %v918 = vmul.f32 %v858, %v882
        %v919 = vmul.f32 %v859, %v883
        %v920 = vmul.f32 %v860, %v884
        %v921 = vmul.f32 %v861, %v885
        %v922 = vmul.f32 %v862, %v886
        %v923 = vmul.f32 %v863, %v887
        %v924 = vmul.f32 %v864, %v888
        %v925 = vmul.f32 %v865, %v889
        %v926 = vmul.f32 %v866, %v890
        %v927 = vmul.f32 %v867, %v891
        %v928 = vmul.f32 %v868, %v892
        %v929 = vmul.f32 %v869, %v893
        %v930 = vmul.f32 %v870, %v894
        %931 = vst [vmem:[#allocation2] sm:$0xf] 0.0
        %932 = vst [vmem:[#allocation2 + $0x4c] sm:$0xf] 0.0
        %v951 = vrot.slane %v914, 4
        %v952 = vrot.slane %v916, 4
        %v953 = vrot.slane %v918, 4
        %v954 = vrot.slane %v920, 4
        %v955 = vrot.slane %v922, 4
        %v956 = vrot.slane %v924, 4
        %v957 = vrot.slane %v926, 4
        %v958 = vrot.slane %v928, 4
        %v959 = vrot.slane %v930, 4
        %v960 = vsel %vm456, %v913, %v951
        %v961 = vsel %vm456, %v915, %v952
        %v962 = vsel %vm456, %v917, %v953
        %v963 = vsel %vm456, %v919, %v954
        %v964 = vsel %vm456, %v921, %v955
        %v965 = vsel %vm456, %v923, %v956
        %v966 = vsel %vm456, %v925, %v957
        %v967 = vsel %vm456, %v927, %v958
        %v968 = vsel %vm456, %v929, %v959
        %978 = vst [vmem:[#allocation2 + $0x4] sm:$0xff] %v960
        %979 = vst [vmem:[#allocation2 + $0xc] sm:$0xff] %v961
        %980 = vst [vmem:[#allocation2 + $0x14] sm:$0xff] %v962
        %981 = vst [vmem:[#allocation2 + $0x1c] sm:$0xff] %v963
        %982 = vst [vmem:[#allocation2 + $0x24] sm:$0xff] %v964
        %983 = vst [vmem:[#allocation2 + $0x2c] sm:$0xff] %v965
        %984 = vst [vmem:[#allocation2 + $0x34] sm:$0xff] %v966
        %985 = vst [vmem:[#allocation2 + $0x3c] sm:$0xff] %v967
        %986 = vst [vmem:[#allocation2 + $0x44] sm:$0xff] %v968
        %p987 = scmp.eq.s32.totalorder %s32, 0
        // Predicated region
        $region65: #{tpu_custom_call.1} parent=59 // pred_check
          %p988 = pneg %p987
        $region66: #{tpu_custom_call.1} parent=59 // pred_check_branch
          %990 = sbr.rel (%p988) target = $region68
        $region67: #{tpu_custom_call.1} parent=59 // pred_region
          %991 = vst [vmem:[#allocation2 + $0x4] sm:$0xff] 0.0
          %992 = vst [vmem:[#allocation2 + $0xc] sm:$0xf] 0.0
        $region68: #{tpu_custom_call.1} parent=59 // pred_fallthru
          _
        %p993 = scmp.eq.s32.totalorder %s32, 1
        // Predicated region
        $region69: #{tpu_custom_call.1} parent=59 // pred_check
          %p994 = pneg %p993
        $region70: #{tpu_custom_call.1} parent=59 // pred_check_branch
          %996 = sbr.rel (%p994) target = $region72
        $region71: #{tpu_custom_call.1} parent=59 // pred_region
          %997 = vst [vmem:[#allocation2 + $0x40] sm:$0xff] 0.0
          %998 = vst [vmem:[#allocation2 + $0x48] sm:$0xf] 0.0
        $region72: #{tpu_custom_call.1} parent=59 // pred_fallthru
          _
        %v999 = vld [vmem:[#allocation2] sm:$0xff]
        %v1000 = vld [vmem:[#allocation2 + $0x8] sm:$0xff]
        %v1001 = vld [vmem:[#allocation2 + $0x10] sm:$0xff]
        %v1002 = vld [vmem:[#allocation2 + $0x18] sm:$0xff]
        %v1003 = vld [vmem:[#allocation2 + $0x20] sm:$0xff]
        %v1004 = vld [vmem:[#allocation2 + $0x28] sm:$0xff]
        %v1005 = vld [vmem:[#allocation2 + $0x30] sm:$0xf]
        %1013 = vst [vmem:[#allocation1] ss:$2 sm:$0xff] %v999
        %s1014 = scalar_lea.vmem [#allocation1], 16
        %1015 = vst [vmem:[%s1014] ss:$2 sm:$0xff] %v1000
        %s1016 = scalar_lea.vmem [#allocation1], 32
        %1017 = vst [vmem:[%s1016] ss:$2 sm:$0xff] %v1001
        %s1018 = scalar_lea.vmem [#allocation1], 48
        %1019 = vst [vmem:[%s1018] ss:$2 sm:$0xff] %v1002
        %v1020 = vld.sshfl [vmem:[#allocation1] sm:$0xff pattern:$0x75316420]
        %v1021 = vld.sshfl [vmem:[#allocation1 + $0x8] sm:$0xff pattern:$0x75316420]
        %v1022 = vld.sshfl [vmem:[#allocation1 + $0x10] sm:$0xff pattern:$0x75316420]
        %v1023 = vld.sshfl [vmem:[#allocation1 + $0x18] sm:$0xff pattern:$0x75316420]
        %v1024 = vld.sshfl [vmem:[#allocation1 + $0x20] sm:$0xff pattern:$0x75316420]
        %v1025 = vld.sshfl [vmem:[#allocation1 + $0x28] sm:$0xff pattern:$0x75316420]
        %v1026 = vld.sshfl [vmem:[#allocation1 + $0x30] sm:$0xff pattern:$0x75316420]
        %v1027 = vld.sshfl [vmem:[#allocation1 + $0x38] sm:$0xff pattern:$0x75316420]
        %1028 = vst [vmem:[#allocation1] ss:$2 sm:$0xff] %v1003
        %1029 = vst [vmem:[%s1014] ss:$2 sm:$0xff] %v1004
        %1030 = vst [vmem:[%s1016] ss:$2 sm:$0xff] %v1005
        %v1031 = vld.sshfl [vmem:[#allocation1] sm:$0xff pattern:$0x75316420]
        %v1032 = vld.sshfl [vmem:[#allocation1 + $0x8] sm:$0xff pattern:$0x75316420]
        %v1033 = vld.sshfl [vmem:[#allocation1 + $0x10] sm:$0xff pattern:$0x75316420]
        %v1034 = vld.sshfl [vmem:[#allocation1 + $0x18] sm:$0xff pattern:$0x75316420]
        %v1035 = vld.sshfl [vmem:[#allocation1 + $0x20] sm:$0xff pattern:$0x75316420]
        %1036 = vrot.lane.b32.xlu0 %v1020, 19
        %v1037 = vpop.permute.xlu0 %1036
        %1038 = vrot.lane.b32.xlu0 %v1021, 19
        %v1039 = vpop.permute.xlu0 %1038
        %1040 = vrot.lane.b32.xlu0 %v1022, 19
        %v1041 = vpop.permute.xlu0 %1040
        %1042 = vrot.lane.b32.xlu0 %v1023, 19
        %v1043 = vpop.permute.xlu0 %1042
        %1044 = vrot.lane.b32.xlu0 %v1024, 19
        %v1045 = vpop.permute.xlu0 %1044
        %1046 = vrot.lane.b32.xlu0 %v1025, 19
        %v1047 = vpop.permute.xlu0 %1046
        %1048 = vrot.lane.b32.xlu0 %v1026, 19
        %v1049 = vpop.permute.xlu0 %1048
        %1050 = vrot.lane.b32.xlu0 %v1027, 19
        %v1051 = vpop.permute.xlu0 %1050
        %1052 = vrot.lane.b32.xlu0 %v1031, 19
        %v1053 = vpop.permute.xlu0 %1052
        %1054 = vrot.lane.b32.xlu0 %v1032, 19
        %v1055 = vpop.permute.xlu0 %1054
        %1056 = vrot.lane.b32.xlu0 %v1033, 19
        %v1057 = vpop.permute.xlu0 %1056
        %1058 = vrot.lane.b32.xlu0 %v1034, 19
        %v1059 = vpop.permute.xlu0 %1058
        %1060 = vrot.lane.b32.xlu0 %v1035, 19
        %v1061 = vpop.permute.xlu0 %1060
        %vm1062 = vcmask 154624
        %v1063 = vsel %vm1062, %v1037, %v1039
        %v1064 = vsel %vm1062, %v1039, %v1041
        %v1065 = vsel %vm1062, %v1041, %v1043
        %v1066 = vsel %vm1062, %v1043, %v1045
        %v1067 = vsel %vm1062, %v1045, %v1047
        %v1068 = vsel %vm1062, %v1047, %v1049
        %v1069 = vsel %vm1062, %v1049, %v1051
        %v1070 = vsel %vm1062, %v1051, %v1053
        %v1071 = vsel %vm1062, %v1053, %v1055
        %v1072 = vsel %vm1062, %v1055, %v1057
        %v1073 = vsel %vm1062, %v1057, %v1059
        %v1074 = vsel %vm1062, %v1059, %v1061
        %1087 = vst [vmem:[#allocation3] sm:$0xf] %v1063
        %1088 = vst [vmem:[#allocation3 + $0x8] sm:$0xf] %v1064
        %1089 = vst [vmem:[#allocation3 + $0x10] sm:$0xf] %v1065
        %1090 = vst [vmem:[#allocation3 + $0x18] sm:$0xf] %v1066
        %1091 = vst [vmem:[#allocation3 + $0x20] sm:$0xf] %v1067
        %1092 = vst [vmem:[#allocation3 + $0x28] sm:$0xf] %v1068
        %1093 = vst [vmem:[#allocation3 + $0x30] sm:$0xf] %v1069
        %1094 = vst [vmem:[#allocation3 + $0x38] sm:$0xf] %v1070
        %1095 = vst [vmem:[#allocation3 + $0x40] sm:$0xf] %v1071
        %1096 = vst [vmem:[#allocation3 + $0x48] sm:$0xf] %v1072
        %1097 = vst [vmem:[#allocation3 + $0x50] sm:$0xf] %v1073
        %1098 = vst [vmem:[#allocation3 + $0x58] sm:$0xf] %v1074
        %v1099 = vld [vmem:[#allocation2] sm:$0xff]
        %v1100 = vld [vmem:[#allocation2 + $0x8] sm:$0xff]
        %v1101 = vld [vmem:[#allocation2 + $0x10] sm:$0xff]
        %v1102 = vld [vmem:[#allocation2 + $0x18] sm:$0xff]
        %v1103 = vld [vmem:[#allocation2 + $0x20] sm:$0xff]
        %v1104 = vld [vmem:[#allocation2 + $0x28] sm:$0xff]
        %v1105 = vld [vmem:[#allocation2 + $0x30] sm:$0xf]
        %s1113 = scalar_lea.vmem [#allocation1], 1
        %1114 = vst [vmem:[%s1113] ss:$2 sm:$0xff] %v1099
        %s1115 = scalar_lea.vmem [#allocation1], 17
        %1116 = vst [vmem:[%s1115] ss:$2 sm:$0xff] %v1100
        %s1117 = scalar_lea.vmem [#allocation1], 33
        %1118 = vst [vmem:[%s1117] ss:$2 sm:$0xff] %v1101
        %s1119 = scalar_lea.vmem [#allocation1], 49
        %1120 = vst [vmem:[%s1119] ss:$2 sm:$0xff] %v1102
        %v1121 = vld.sshfl [vmem:[#allocation1] sm:$0xff pattern:$0x75316420]
        %v1122 = vld.sshfl [vmem:[#allocation1 + $0x8] sm:$0xff pattern:$0x75316420]
        %v1123 = vld.sshfl [vmem:[#allocation1 + $0x10] sm:$0xff pattern:$0x75316420]
        %v1124 = vld.sshfl [vmem:[#allocation1 + $0x18] sm:$0xff pattern:$0x75316420]
        %v1125 = vld.sshfl [vmem:[#allocation1 + $0x20] sm:$0xff pattern:$0x75316420]
        %v1126 = vld.sshfl [vmem:[#allocation1 + $0x28] sm:$0xff pattern:$0x75316420]
        %v1127 = vld.sshfl [vmem:[#allocation1 + $0x30] sm:$0xff pattern:$0x75316420]
        %v1128 = vld.sshfl [vmem:[#allocation1 + $0x38] sm:$0xff pattern:$0x75316420]
        %1129 = vst [vmem:[%s1113] ss:$2 sm:$0xff] %v1103
        %1130 = vst [vmem:[%s1115] ss:$2 sm:$0xff] %v1104
        %1131 = vst [vmem:[%s1117] ss:$2 sm:$0xff] %v1105
        %v1132 = vld.sshfl [vmem:[#allocation1] sm:$0xff pattern:$0x75316420]
        %v1133 = vld.sshfl [vmem:[#allocation1 + $0x8] sm:$0xff pattern:$0x75316420]
        %v1134 = vld.sshfl [vmem:[#allocation1 + $0x10] sm:$0xff pattern:$0x75316420]
        %v1135 = vld.sshfl [vmem:[#allocation1 + $0x18] sm:$0xff pattern:$0x75316420]
        %v1136 = vld.sshfl [vmem:[#allocation1 + $0x20] sm:$0xff pattern:$0x75316420]
        %1137 = vrot.lane.b32.xlu0 %v1121, 18
        %v1138 = vpop.permute.xlu0 %1137
        %1139 = vrot.lane.b32.xlu0 %v1122, 18
        %v1140 = vpop.permute.xlu0 %1139
        %1141 = vrot.lane.b32.xlu0 %v1123, 18
        %v1142 = vpop.permute.xlu0 %1141
        %1143 = vrot.lane.b32.xlu0 %v1124, 18
        %v1144 = vpop.permute.xlu0 %1143
        %1145 = vrot.lane.b32.xlu0 %v1125, 18
        %v1146 = vpop.permute.xlu0 %1145
        %1147 = vrot.lane.b32.xlu0 %v1126, 18
        %v1148 = vpop.permute.xlu0 %1147
        %1149 = vrot.lane.b32.xlu0 %v1127, 18
        %v1150 = vpop.permute.xlu0 %1149
        %1151 = vrot.lane.b32.xlu0 %v1128, 18
        %v1152 = vpop.permute.xlu0 %1151
        %1153 = vrot.lane.b32.xlu0 %v1132, 18
        %v1154 = vpop.permute.xlu0 %1153
        %1155 = vrot.lane.b32.xlu0 %v1133, 18
        %v1156 = vpop.permute.xlu0 %1155
        %1157 = vrot.lane.b32.xlu0 %v1134, 18
        %v1158 = vpop.permute.xlu0 %1157
        %1159 = vrot.lane.b32.xlu0 %v1135, 18
        %v1160 = vpop.permute.xlu0 %1159
        %1161 = vrot.lane.b32.xlu0 %v1136, 18
        %v1162 = vpop.permute.xlu0 %1161
        %vm1163 = vcmask 146432
        %v1164 = vsel %vm1163, %v1138, %v1140
        %v1165 = vsel %vm1163, %v1140, %v1142
        %v1166 = vsel %vm1163, %v1142, %v1144
        %v1167 = vsel %vm1163, %v1144, %v1146
        %v1168 = vsel %vm1163, %v1146, %v1148
        %v1169 = vsel %vm1163, %v1148, %v1150
        %v1170 = vsel %vm1163, %v1150, %v1152
        %v1171 = vsel %vm1163, %v1152, %v1154
        %v1172 = vsel %vm1163, %v1154, %v1156
        %v1173 = vsel %vm1163, %v1156, %v1158
        %v1174 = vsel %vm1163, %v1158, %v1160
        %v1175 = vsel %vm1163, %v1160, %v1162
        %1188 = vst [vmem:[#allocation3] sm:$0xf0] %v1164
        %1189 = vst [vmem:[#allocation3 + $0x8] sm:$0xf0] %v1165
        %1190 = vst [vmem:[#allocation3 + $0x10] sm:$0xf0] %v1166
        %1191 = vst [vmem:[#allocation3 + $0x18] sm:$0xf0] %v1167
        %1192 = vst [vmem:[#allocation3 + $0x20] sm:$0xf0] %v1168
        %1193 = vst [vmem:[#allocation3 + $0x28] sm:$0xf0] %v1169
        %1194 = vst [vmem:[#allocation3 + $0x30] sm:$0xf0] %v1170
        %1195 = vst [vmem:[#allocation3 + $0x38] sm:$0xf0] %v1171
        %1196 = vst [vmem:[#allocation3 + $0x40] sm:$0xf0] %v1172
        %1197 = vst [vmem:[#allocation3 + $0x48] sm:$0xf0] %v1173
        %1198 = vst [vmem:[#allocation3 + $0x50] sm:$0xf0] %v1174
        %1199 = vst [vmem:[#allocation3 + $0x58] sm:$0xf0] %v1175
        %v1200 = vld [vmem:[#allocation2] sm:$0xff]
        %v1201 = vld [vmem:[#allocation2 + $0x8] sm:$0xff]
        %v1202 = vld [vmem:[#allocation2 + $0x10] sm:$0xff]
        %v1203 = vld [vmem:[#allocation2 + $0x18] sm:$0xff]
        %v1204 = vld [vmem:[#allocation2 + $0x20] sm:$0xff]
        %v1205 = vld [vmem:[#allocation2 + $0x28] sm:$0xff]
        %v1206 = vld [vmem:[#allocation2 + $0x30] sm:$0xf]
        %1214 = vst [vmem:[#allocation1] ss:$2 sm:$0xff] %v1200
        %s1215 = scalar_lea.vmem [#allocation1], 16
        %1216 = vst [vmem:[%s1215] ss:$2 sm:$0xff] %v1201
        %s1217 = scalar_lea.vmem [#allocation1], 32
        %1218 = vst [vmem:[%s1217] ss:$2 sm:$0xff] %v1202
        %s1219 = scalar_lea.vmem [#allocation1], 48
        %1220 = vst [vmem:[%s1219] ss:$2 sm:$0xff] %v1203
        %v1221 = vld.sshfl [vmem:[#allocation1] sm:$0xff pattern:$0x75316420]
        %v1222 = vld.sshfl [vmem:[#allocation1 + $0x8] sm:$0xff pattern:$0x75316420]
        %v1223 = vld.sshfl [vmem:[#allocation1 + $0x10] sm:$0xff pattern:$0x75316420]
        %v1224 = vld.sshfl [vmem:[#allocation1 + $0x18] sm:$0xff pattern:$0x75316420]
        %v1225 = vld.sshfl [vmem:[#allocation1 + $0x20] sm:$0xff pattern:$0x75316420]
        %v1226 = vld.sshfl [vmem:[#allocation1 + $0x28] sm:$0xff pattern:$0x75316420]
        %v1227 = vld.sshfl [vmem:[#allocation1 + $0x30] sm:$0xff pattern:$0x75316420]
        %v1228 = vld.sshfl [vmem:[#allocation1 + $0x38] sm:$0xff pattern:$0x75316420]
        %1229 = vst [vmem:[#allocation1] ss:$2 sm:$0xff] %v1204
        %1230 = vst [vmem:[%s1215] ss:$2 sm:$0xff] %v1205
        %1231 = vst [vmem:[%s1217] ss:$2 sm:$0xff] %v1206
        %v1232 = vld.sshfl [vmem:[#allocation1] sm:$0xff pattern:$0x75316420]
        %v1233 = vld.sshfl [vmem:[#allocation1 + $0x8] sm:$0xff pattern:$0x75316420]
        %v1234 = vld.sshfl [vmem:[#allocation1 + $0x10] sm:$0xff pattern:$0x75316420]
        %v1235 = vld.sshfl [vmem:[#allocation1 + $0x18] sm:$0xff pattern:$0x75316420]
        %v1236 = vld.sshfl [vmem:[#allocation1 + $0x20] sm:$0xff pattern:$0x75316420]
        %1237 = vrot.lane.b32.xlu0 %v1221, 17
        %v1238 = vpop.permute.xlu0 %1237
        %1239 = vrot.lane.b32.xlu0 %v1222, 17
        %v1240 = vpop.permute.xlu0 %1239
        %1241 = vrot.lane.b32.xlu0 %v1223, 17
        %v1242 = vpop.permute.xlu0 %1241
        %1243 = vrot.lane.b32.xlu0 %v1224, 17
        %v1244 = vpop.permute.xlu0 %1243
        %1245 = vrot.lane.b32.xlu0 %v1225, 17
        %v1246 = vpop.permute.xlu0 %1245
        %1247 = vrot.lane.b32.xlu0 %v1226, 17
        %v1248 = vpop.permute.xlu0 %1247
        %1249 = vrot.lane.b32.xlu0 %v1227, 17
        %v1250 = vpop.permute.xlu0 %1249
        %1251 = vrot.lane.b32.xlu0 %v1228, 17
        %v1252 = vpop.permute.xlu0 %1251
        %1253 = vrot.lane.b32.xlu0 %v1232, 17
        %v1254 = vpop.permute.xlu0 %1253
        %1255 = vrot.lane.b32.xlu0 %v1233, 17
        %v1256 = vpop.permute.xlu0 %1255
        %1257 = vrot.lane.b32.xlu0 %v1234, 17
        %v1258 = vpop.permute.xlu0 %1257
        %1259 = vrot.lane.b32.xlu0 %v1235, 17
        %v1260 = vpop.permute.xlu0 %1259
        %1261 = vrot.lane.b32.xlu0 %v1236, 17
        %v1262 = vpop.permute.xlu0 %1261
        %vm1263 = vcmask 138240
        %v1264 = vsel %vm1263, %v1238, %v1240
        %v1265 = vsel %vm1263, %v1240, %v1242
        %v1266 = vsel %vm1263, %v1242, %v1244
        %v1267 = vsel %vm1263, %v1244, %v1246
        %v1268 = vsel %vm1263, %v1246, %v1248
        %v1269 = vsel %vm1263, %v1248, %v1250
        %v1270 = vsel %vm1263, %v1250, %v1252
        %v1271 = vsel %vm1263, %v1252, %v1254
        %v1272 = vsel %vm1263, %v1254, %v1256
        %v1273 = vsel %vm1263, %v1256, %v1258
        %v1274 = vsel %vm1263, %v1258, %v1260
        %v1275 = vsel %vm1263, %v1260, %v1262
        %1288 = vst [vmem:[#allocation3 + $0x60] sm:$0xf] %v1264
        %1289 = vst [vmem:[#allocation3 + $0x68] sm:$0xf] %v1265
        %1290 = vst [vmem:[#allocation3 + $0x70] sm:$0xf] %v1266
        %1291 = vst [vmem:[#allocation3 + $0x78] sm:$0xf] %v1267
        %1292 = vst [vmem:[#allocation3 + $0x80] sm:$0xf] %v1268
        %1293 = vst [vmem:[#allocation3 + $0x88] sm:$0xf] %v1269
        %1294 = vst [vmem:[#allocation3 + $0x90] sm:$0xf] %v1270
        %1295 = vst [vmem:[#allocation3 + $0x98] sm:$0xf] %v1271
        %1296 = vst [vmem:[#allocation3 + $0xa0] sm:$0xf] %v1272
        %1297 = vst [vmem:[#allocation3 + $0xa8] sm:$0xf] %v1273
        %1298 = vst [vmem:[#allocation3 + $0xb0] sm:$0xf] %v1274
        %1299 = vst [vmem:[#allocation3 + $0xb8] sm:$0xf] %v1275
        %v1300 = vld [vmem:[#allocation2] sm:$0xff]
        %v1301 = vld [vmem:[#allocation2 + $0x8] sm:$0xff]
        %v1302 = vld [vmem:[#allocation2 + $0x10] sm:$0xff]
        %v1303 = vld [vmem:[#allocation2 + $0x18] sm:$0xff]
        %v1304 = vld [vmem:[#allocation2 + $0x20] sm:$0xff]
        %v1305 = vld [vmem:[#allocation2 + $0x28] sm:$0xff]
        %v1306 = vld [vmem:[#allocation2 + $0x30] sm:$0xf]
        %s1314 = scalar_lea.vmem [#allocation1], 1
        %1315 = vst [vmem:[%s1314] ss:$2 sm:$0xff] %v1300
        %s1316 = scalar_lea.vmem [#allocation1], 17
        %1317 = vst [vmem:[%s1316] ss:$2 sm:$0xff] %v1301
        %s1318 = scalar_lea.vmem [#allocation1], 33
        %1319 = vst [vmem:[%s1318] ss:$2 sm:$0xff] %v1302
        %s1320 = scalar_lea.vmem [#allocation1], 49
        %1321 = vst [vmem:[%s1320] ss:$2 sm:$0xff] %v1303
        %v1322 = vld.sshfl [vmem:[#allocation1] sm:$0xff pattern:$0x75316420]
        %v1323 = vld.sshfl [vmem:[#allocation1 + $0x8] sm:$0xff pattern:$0x75316420]
        %v1324 = vld.sshfl [vmem:[#allocation1 + $0x10] sm:$0xff pattern:$0x75316420]
        %v1325 = vld.sshfl [vmem:[#allocation1 + $0x18] sm:$0xff pattern:$0x75316420]
        %v1326 = vld.sshfl [vmem:[#allocation1 + $0x20] sm:$0xff pattern:$0x75316420]
        %v1327 = vld.sshfl [vmem:[#allocation1 + $0x28] sm:$0xff pattern:$0x75316420]
        %v1328 = vld.sshfl [vmem:[#allocation1 + $0x30] sm:$0xff pattern:$0x75316420]
        %v1329 = vld.sshfl [vmem:[#allocation1 + $0x38] sm:$0xff pattern:$0x75316420]
        %1330 = vst [vmem:[%s1314] ss:$2 sm:$0xff] %v1304
        %1331 = vst [vmem:[%s1316] ss:$2 sm:$0xff] %v1305
        %1332 = vst [vmem:[%s1318] ss:$2 sm:$0xff] %v1306
        %v1333 = vld.sshfl [vmem:[#allocation1] sm:$0xff pattern:$0x75316420]
        %v1334 = vld.sshfl [vmem:[#allocation1 + $0x8] sm:$0xff pattern:$0x75316420]
        %v1335 = vld.sshfl [vmem:[#allocation1 + $0x10] sm:$0xff pattern:$0x75316420]
        %v1336 = vld.sshfl [vmem:[#allocation1 + $0x18] sm:$0xff pattern:$0x75316420]
        %v1337 = vld.sshfl [vmem:[#allocation1 + $0x20] sm:$0xff pattern:$0x75316420]
        %1338 = vrot.lane.b32.xlu0 %v1322, 1
        %v1339 = vpop.permute.xlu0 %1338
        %1340 = vrot.lane.b32.xlu0 %v1323, 1
        %v1341 = vpop.permute.xlu0 %1340
        %1342 = vrot.lane.b32.xlu0 %v1324, 1
        %v1343 = vpop.permute.xlu0 %1342
        %1344 = vrot.lane.b32.xlu0 %v1325, 1
        %v1345 = vpop.permute.xlu0 %1344
        %1346 = vrot.lane.b32.xlu0 %v1326, 1
        %v1347 = vpop.permute.xlu0 %1346
        %1348 = vrot.lane.b32.xlu0 %v1327, 1
        %v1349 = vpop.permute.xlu0 %1348
        %1350 = vrot.lane.b32.xlu0 %v1328, 1
        %v1351 = vpop.permute.xlu0 %1350
        %1352 = vrot.lane.b32.xlu0 %v1329, 1
        %v1353 = vpop.permute.xlu0 %1352
        %1354 = vrot.lane.b32.xlu0 %v1333, 1
        %v1355 = vpop.permute.xlu0 %1354
        %1356 = vrot.lane.b32.xlu0 %v1334, 1
        %v1357 = vpop.permute.xlu0 %1356
        %1358 = vrot.lane.b32.xlu0 %v1335, 1
        %v1359 = vpop.permute.xlu0 %1358
        %1360 = vrot.lane.b32.xlu0 %v1336, 1
        %v1361 = vpop.permute.xlu0 %1360
        %1362 = vrot.lane.b32.xlu0 %v1337, 1
        %v1363 = vpop.permute.xlu0 %1362
        %vm1364 = vcmask 7168
        %v1365 = vsel %vm1364, %v1339, %v1341
        %v1366 = vsel %vm1364, %v1341, %v1343
        %v1367 = vsel %vm1364, %v1343, %v1345
        %v1368 = vsel %vm1364, %v1345, %v1347
        %v1369 = vsel %vm1364, %v1347, %v1349
        %v1370 = vsel %vm1364, %v1349, %v1351
        %v1371 = vsel %vm1364, %v1351, %v1353
        %v1372 = vsel %vm1364, %v1353, %v1355
        %v1373 = vsel %vm1364, %v1355, %v1357
        %v1374 = vsel %vm1364, %v1357, %v1359
        %v1375 = vsel %vm1364, %v1359, %v1361
        %v1376 = vsel %vm1364, %v1361, %v1363
        %1389 = vst [vmem:[#allocation3 + $0x60] sm:$0xf0] %v1365
        %1390 = vst [vmem:[#allocation3 + $0x68] sm:$0xf0] %v1366
        %1391 = vst [vmem:[#allocation3 + $0x70] sm:$0xf0] %v1367
        %1392 = vst [vmem:[#allocation3 + $0x78] sm:$0xf0] %v1368
        %1393 = vst [vmem:[#allocation3 + $0x80] sm:$0xf0] %v1369
        %1394 = vst [vmem:[#allocation3 + $0x88] sm:$0xf0] %v1370
        %1395 = vst [vmem:[#allocation3 + $0x90] sm:$0xf0] %v1371
        %1396 = vst [vmem:[#allocation3 + $0x98] sm:$0xf0] %v1372
        %1397 = vst [vmem:[#allocation3 + $0xa0] sm:$0xf0] %v1373
        %1398 = vst [vmem:[#allocation3 + $0xa8] sm:$0xf0] %v1374
        %1399 = vst [vmem:[#allocation3 + $0xb0] sm:$0xf0] %v1375
        %1400 = vst [vmem:[#allocation3 + $0xb8] sm:$0xf0] %v1376
        %v1401 = vld [vmem:[#allocation2 + $0x4] sm:$0xff]
        %v1402 = vld [vmem:[#allocation2 + $0xc] sm:$0xff]
        %v1403 = vld [vmem:[#allocation2 + $0x14] sm:$0xff]
        %v1404 = vld [vmem:[#allocation2 + $0x1c] sm:$0xff]
        %v1405 = vld [vmem:[#allocation2 + $0x24] sm:$0xff]
        %v1406 = vld [vmem:[#allocation2 + $0x2c] sm:$0xff]
        %1413 = vst [vmem:[#allocation1] ss:$2 sm:$0xff] %v1401
        %s1414 = scalar_lea.vmem [#allocation1], 16
        %1415 = vst [vmem:[%s1414] ss:$2 sm:$0xff] %v1402
        %s1416 = scalar_lea.vmem [#allocation1], 32
        %1417 = vst [vmem:[%s1416] ss:$2 sm:$0xff] %v1403
        %s1418 = scalar_lea.vmem [#allocation1], 48
        %1419 = vst [vmem:[%s1418] ss:$2 sm:$0xff] %v1404
        %v1420 = vld.sshfl [vmem:[#allocation1] sm:$0xff pattern:$0x75316420]
        %v1421 = vld.sshfl [vmem:[#allocation1 + $0x8] sm:$0xff pattern:$0x75316420]
        %v1422 = vld.sshfl [vmem:[#allocation1 + $0x10] sm:$0xff pattern:$0x75316420]
        %v1423 = vld.sshfl [vmem:[#allocation1 + $0x18] sm:$0xff pattern:$0x75316420]
        %v1424 = vld.sshfl [vmem:[#allocation1 + $0x20] sm:$0xff pattern:$0x75316420]
        %v1425 = vld.sshfl [vmem:[#allocation1 + $0x28] sm:$0xff pattern:$0x75316420]
        %v1426 = vld.sshfl [vmem:[#allocation1 + $0x30] sm:$0xff pattern:$0x75316420]
        %v1427 = vld.sshfl [vmem:[#allocation1 + $0x38] sm:$0xff pattern:$0x75316420]
        %1428 = vst [vmem:[#allocation1] ss:$2 sm:$0xff] %v1405
        %1429 = vst [vmem:[%s1414] ss:$2 sm:$0xff] %v1406
        %v1430 = vld.sshfl [vmem:[#allocation1] sm:$0xff pattern:$0x75316420]
        %v1431 = vld.sshfl [vmem:[#allocation1 + $0x8] sm:$0xff pattern:$0x75316420]
        %v1432 = vld.sshfl [vmem:[#allocation1 + $0x10] sm:$0xff pattern:$0x75316420]
        %v1433 = vld.sshfl [vmem:[#allocation1 + $0x18] sm:$0xff pattern:$0x75316420]
        %1446 = vst [vmem:[#allocation3 + $0xc0] sm:$0xf] %v1420
        %1447 = vst [vmem:[#allocation3 + $0xc8] sm:$0xf] %v1421
        %1448 = vst [vmem:[#allocation3 + $0xd0] sm:$0xf] %v1422
        %1449 = vst [vmem:[#allocation3 + $0xd8] sm:$0xf] %v1423
        %1450 = vst [vmem:[#allocation3 + $0xe0] sm:$0xf] %v1424
        %1451 = vst [vmem:[#allocation3 + $0xe8] sm:$0xf] %v1425
        %1452 = vst [vmem:[#allocation3 + $0xf0] sm:$0xf] %v1426
        %1453 = vst [vmem:[#allocation3 + $0xf8] sm:$0xf] %v1427
        %1454 = vst [vmem:[#allocation3 + $0x100] sm:$0xf] %v1430
        %1455 = vst [vmem:[#allocation3 + $0x108] sm:$0xf] %v1431
        %1456 = vst [vmem:[#allocation3 + $0x110] sm:$0xf] %v1432
        %1457 = vst [vmem:[#allocation3 + $0x118] sm:$0xf] %v1433
        %v1458 = vld [vmem:[#allocation2 + $0x4] sm:$0xff]
        %v1459 = vld [vmem:[#allocation2 + $0xc] sm:$0xff]
        %v1460 = vld [vmem:[#allocation2 + $0x14] sm:$0xff]
        %v1461 = vld [vmem:[#allocation2 + $0x1c] sm:$0xff]
        %v1462 = vld [vmem:[#allocation2 + $0x24] sm:$0xff]
        %v1463 = vld [vmem:[#allocation2 + $0x2c] sm:$0xff]
        %v1464 = vld [vmem:[#allocation2 + $0x34] sm:$0xf]
        %s1472 = scalar_lea.vmem [#allocation1], 1
        %1473 = vst [vmem:[%s1472] ss:$2 sm:$0xff] %v1458
        %s1474 = scalar_lea.vmem [#allocation1], 17
        %1475 = vst [vmem:[%s1474] ss:$2 sm:$0xff] %v1459
        %s1476 = scalar_lea.vmem [#allocation1], 33
        %1477 = vst [vmem:[%s1476] ss:$2 sm:$0xff] %v1460
        %s1478 = scalar_lea.vmem [#allocation1], 49
        %1479 = vst [vmem:[%s1478] ss:$2 sm:$0xff] %v1461
        %v1480 = vld.sshfl [vmem:[#allocation1] sm:$0xff pattern:$0x75316420]
        %v1481 = vld.sshfl [vmem:[#allocation1 + $0x8] sm:$0xff pattern:$0x75316420]
        %v1482 = vld.sshfl [vmem:[#allocation1 + $0x10] sm:$0xff pattern:$0x75316420]
        %v1483 = vld.sshfl [vmem:[#allocation1 + $0x18] sm:$0xff pattern:$0x75316420]
        %v1484 = vld.sshfl [vmem:[#allocation1 + $0x20] sm:$0xff pattern:$0x75316420]
        %v1485 = vld.sshfl [vmem:[#allocation1 + $0x28] sm:$0xff pattern:$0x75316420]
        %v1486 = vld.sshfl [vmem:[#allocation1 + $0x30] sm:$0xff pattern:$0x75316420]
        %v1487 = vld.sshfl [vmem:[#allocation1 + $0x38] sm:$0xff pattern:$0x75316420]
        %1488 = vst [vmem:[%s1472] ss:$2 sm:$0xff] %v1462
        %1489 = vst [vmem:[%s1474] ss:$2 sm:$0xff] %v1463
        %1490 = vst [vmem:[%s1476] ss:$2 sm:$0xff] %v1464
        %v1491 = vld.sshfl [vmem:[#allocation1] sm:$0xff pattern:$0x75316420]
        %v1492 = vld.sshfl [vmem:[#allocation1 + $0x8] sm:$0xff pattern:$0x75316420]
        %v1493 = vld.sshfl [vmem:[#allocation1 + $0x10] sm:$0xff pattern:$0x75316420]
        %v1494 = vld.sshfl [vmem:[#allocation1 + $0x18] sm:$0xff pattern:$0x75316420]
        %v1495 = vld.sshfl [vmem:[#allocation1 + $0x20] sm:$0xff pattern:$0x75316420]
        %1496 = vrot.lane.b32.xlu0 %v1480, 127
        %v1497 = vpop.permute.xlu0 %1496
        %1498 = vrot.lane.b32.xlu0 %v1481, 127
        %v1499 = vpop.permute.xlu0 %1498
        %1500 = vrot.lane.b32.xlu0 %v1482, 127
        %v1501 = vpop.permute.xlu0 %1500
        %1502 = vrot.lane.b32.xlu0 %v1483, 127
        %v1503 = vpop.permute.xlu0 %1502
        %1504 = vrot.lane.b32.xlu0 %v1484, 127
        %v1505 = vpop.permute.xlu0 %1504
        %1506 = vrot.lane.b32.xlu0 %v1485, 127
        %v1507 = vpop.permute.xlu0 %1506
        %1508 = vrot.lane.b32.xlu0 %v1486, 127
        %v1509 = vpop.permute.xlu0 %1508
        %1510 = vrot.lane.b32.xlu0 %v1487, 127
        %v1511 = vpop.permute.xlu0 %1510
        %1512 = vrot.lane.b32.xlu0 %v1491, 127
        %v1513 = vpop.permute.xlu0 %1512
        %1514 = vrot.lane.b32.xlu0 %v1492, 127
        %v1515 = vpop.permute.xlu0 %1514
        %1516 = vrot.lane.b32.xlu0 %v1493, 127
        %v1517 = vpop.permute.xlu0 %1516
        %1518 = vrot.lane.b32.xlu0 %v1494, 127
        %v1519 = vpop.permute.xlu0 %1518
        %1520 = vrot.lane.b32.xlu0 %v1495, 127
        %v1521 = vpop.permute.xlu0 %1520
        %vm1522 = vcmask 1039360
        %v1523 = vsel %vm1522, %v1497, %v1499
        %v1524 = vsel %vm1522, %v1499, %v1501
        %v1525 = vsel %vm1522, %v1501, %v1503
        %v1526 = vsel %vm1522, %v1503, %v1505
        %v1527 = vsel %vm1522, %v1505, %v1507
        %v1528 = vsel %vm1522, %v1507, %v1509
        %v1529 = vsel %vm1522, %v1509, %v1511
        %v1530 = vsel %vm1522, %v1511, %v1513
        %v1531 = vsel %vm1522, %v1513, %v1515
        %v1532 = vsel %vm1522, %v1515, %v1517
        %v1533 = vsel %vm1522, %v1517, %v1519
        %v1534 = vsel %vm1522, %v1519, %v1521
        %1547 = vst [vmem:[#allocation3 + $0xc0] sm:$0xf0] %v1523
        %1548 = vst [vmem:[#allocation3 + $0xc8] sm:$0xf0] %v1524
        %1549 = vst [vmem:[#allocation3 + $0xd0] sm:$0xf0] %v1525
        %1550 = vst [vmem:[#allocation3 + $0xd8] sm:$0xf0] %v1526
        %1551 = vst [vmem:[#allocation3 + $0xe0] sm:$0xf0] %v1527
        %1552 = vst [vmem:[#allocation3 + $0xe8] sm:$0xf0] %v1528
        %1553 = vst [vmem:[#allocation3 + $0xf0] sm:$0xf0] %v1529
        %1554 = vst [vmem:[#allocation3 + $0xf8] sm:$0xf0] %v1530
        %1555 = vst [vmem:[#allocation3 + $0x100] sm:$0xf0] %v1531
        %1556 = vst [vmem:[#allocation3 + $0x108] sm:$0xf0] %v1532
        %1557 = vst [vmem:[#allocation3 + $0x110] sm:$0xf0] %v1533
        %1558 = vst [vmem:[#allocation3 + $0x118] sm:$0xf0] %v1534
        %v1559 = vld [vmem:[#allocation2 + $0x4] sm:$0xff]
        %v1560 = vld [vmem:[#allocation2 + $0xc] sm:$0xff]
        %v1561 = vld [vmem:[#allocation2 + $0x14] sm:$0xff]
        %v1562 = vld [vmem:[#allocation2 + $0x1c] sm:$0xff]
        %v1563 = vld [vmem:[#allocation2 + $0x24] sm:$0xff]
        %v1564 = vld [vmem:[#allocation2 + $0x2c] sm:$0xff]
        %v1565 = vld [vmem:[#allocation2 + $0x34] sm:$0xf]
        %1573 = vst [vmem:[#allocation1] ss:$2 sm:$0xff] %v1559
        %s1574 = scalar_lea.vmem [#allocation1], 16
        %1575 = vst [vmem:[%s1574] ss:$2 sm:$0xff] %v1560
        %s1576 = scalar_lea.vmem [#allocation1], 32
        %1577 = vst [vmem:[%s1576] ss:$2 sm:$0xff] %v1561
        %s1578 = scalar_lea.vmem [#allocation1], 48
        %1579 = vst [vmem:[%s1578] ss:$2 sm:$0xff] %v1562
        %v1580 = vld.sshfl [vmem:[#allocation1] sm:$0xff pattern:$0x75316420]
        %v1581 = vld.sshfl [vmem:[#allocation1 + $0x8] sm:$0xff pattern:$0x75316420]
        %v1582 = vld.sshfl [vmem:[#allocation1 + $0x10] sm:$0xff pattern:$0x75316420]
        %v1583 = vld.sshfl [vmem:[#allocation1 + $0x18] sm:$0xff pattern:$0x75316420]
        %v1584 = vld.sshfl [vmem:[#allocation1 + $0x20] sm:$0xff pattern:$0x75316420]
        %v1585 = vld.sshfl [vmem:[#allocation1 + $0x28] sm:$0xff pattern:$0x75316420]
        %v1586 = vld.sshfl [vmem:[#allocation1 + $0x30] sm:$0xff pattern:$0x75316420]
        %v1587 = vld.sshfl [vmem:[#allocation1 + $0x38] sm:$0xff pattern:$0x75316420]
        %1588 = vst [vmem:[#allocation1] ss:$2 sm:$0xff] %v1563
        %1589 = vst [vmem:[%s1574] ss:$2 sm:$0xff] %v1564
        %1590 = vst [vmem:[%s1576] ss:$2 sm:$0xff] %v1565
        %v1591 = vld.sshfl [vmem:[#allocation1] sm:$0xff pattern:$0x75316420]
        %v1592 = vld.sshfl [vmem:[#allocation1 + $0x8] sm:$0xff pattern:$0x75316420]
        %v1593 = vld.sshfl [vmem:[#allocation1 + $0x10] sm:$0xff pattern:$0x75316420]
        %v1594 = vld.sshfl [vmem:[#allocation1 + $0x18] sm:$0xff pattern:$0x75316420]
        %v1595 = vld.sshfl [vmem:[#allocation1 + $0x20] sm:$0xff pattern:$0x75316420]
        %1596 = vrot.lane.b32.xlu0 %v1580, 111
        %v1597 = vpop.permute.xlu0 %1596
        %1598 = vrot.lane.b32.xlu0 %v1581, 111
        %v1599 = vpop.permute.xlu0 %1598
        %1600 = vrot.lane.b32.xlu0 %v1582, 111
        %v1601 = vpop.permute.xlu0 %1600
        %1602 = vrot.lane.b32.xlu0 %v1583, 111
        %v1603 = vpop.permute.xlu0 %1602
        %1604 = vrot.lane.b32.xlu0 %v1584, 111
        %v1605 = vpop.permute.xlu0 %1604
        %1606 = vrot.lane.b32.xlu0 %v1585, 111
        %v1607 = vpop.permute.xlu0 %1606
        %1608 = vrot.lane.b32.xlu0 %v1586, 111
        %v1609 = vpop.permute.xlu0 %1608
        %1610 = vrot.lane.b32.xlu0 %v1587, 111
        %v1611 = vpop.permute.xlu0 %1610
        %1612 = vrot.lane.b32.xlu0 %v1591, 111
        %v1613 = vpop.permute.xlu0 %1612
        %1614 = vrot.lane.b32.xlu0 %v1592, 111
        %v1615 = vpop.permute.xlu0 %1614
        %1616 = vrot.lane.b32.xlu0 %v1593, 111
        %v1617 = vpop.permute.xlu0 %1616
        %1618 = vrot.lane.b32.xlu0 %v1594, 111
        %v1619 = vpop.permute.xlu0 %1618
        %1620 = vrot.lane.b32.xlu0 %v1595, 111
        %v1621 = vpop.permute.xlu0 %1620
        %vm1622 = vcmask 908288
        %v1623 = vsel %vm1622, %v1597, %v1599
        %v1624 = vsel %vm1622, %v1599, %v1601
        %v1625 = vsel %vm1622, %v1601, %v1603
        %v1626 = vsel %vm1622, %v1603, %v1605
        %v1627 = vsel %vm1622, %v1605, %v1607
        %v1628 = vsel %vm1622, %v1607, %v1609
        %v1629 = vsel %vm1622, %v1609, %v1611
        %v1630 = vsel %vm1622, %v1611, %v1613
        %v1631 = vsel %vm1622, %v1613, %v1615
        %v1632 = vsel %vm1622, %v1615, %v1617
        %v1633 = vsel %vm1622, %v1617, %v1619
        %v1634 = vsel %vm1622, %v1619, %v1621
        %1647 = vst [vmem:[#allocation3 + $0x120] sm:$0xf] %v1623
        %1648 = vst [vmem:[#allocation3 + $0x128] sm:$0xf] %v1624
        %1649 = vst [vmem:[#allocation3 + $0x130] sm:$0xf] %v1625
        %1650 = vst [vmem:[#allocation3 + $0x138] sm:$0xf] %v1626
        %1651 = vst [vmem:[#allocation3 + $0x140] sm:$0xf] %v1627
        %1652 = vst [vmem:[#allocation3 + $0x148] sm:$0xf] %v1628
        %1653 = vst [vmem:[#allocation3 + $0x150] sm:$0xf] %v1629
        %1654 = vst [vmem:[#allocation3 + $0x158] sm:$0xf] %v1630
        %1655 = vst [vmem:[#allocation3 + $0x160] sm:$0xf] %v1631
        %1656 = vst [vmem:[#allocation3 + $0x168] sm:$0xf] %v1632
        %1657 = vst [vmem:[#allocation3 + $0x170] sm:$0xf] %v1633
        %1658 = vst [vmem:[#allocation3 + $0x178] sm:$0xf] %v1634
        %v1659 = vld [vmem:[#allocation2 + $0x4] sm:$0xff]
        %v1660 = vld [vmem:[#allocation2 + $0xc] sm:$0xff]
        %v1661 = vld [vmem:[#allocation2 + $0x14] sm:$0xff]
        %v1662 = vld [vmem:[#allocation2 + $0x1c] sm:$0xff]
        %v1663 = vld [vmem:[#allocation2 + $0x24] sm:$0xff]
        %v1664 = vld [vmem:[#allocation2 + $0x2c] sm:$0xff]
        %v1665 = vld [vmem:[#allocation2 + $0x34] sm:$0xf]
        %s1673 = scalar_lea.vmem [#allocation1], 1
        %1674 = vst [vmem:[%s1673] ss:$2 sm:$0xff] %v1659
        %s1675 = scalar_lea.vmem [#allocation1], 17
        %1676 = vst [vmem:[%s1675] ss:$2 sm:$0xff] %v1660
        %s1677 = scalar_lea.vmem [#allocation1], 33
        %1678 = vst [vmem:[%s1677] ss:$2 sm:$0xff] %v1661
        %s1679 = scalar_lea.vmem [#allocation1], 49
        %1680 = vst [vmem:[%s1679] ss:$2 sm:$0xff] %v1662
        %v1681 = vld.sshfl [vmem:[#allocation1] sm:$0xff pattern:$0x75316420]
        %v1682 = vld.sshfl [vmem:[#allocation1 + $0x8] sm:$0xff pattern:$0x75316420]
        %v1683 = vld.sshfl [vmem:[#allocation1 + $0x10] sm:$0xff pattern:$0x75316420]
        %v1684 = vld.sshfl [vmem:[#allocation1 + $0x18] sm:$0xff pattern:$0x75316420]
        %v1685 = vld.sshfl [vmem:[#allocation1 + $0x20] sm:$0xff pattern:$0x75316420]
        %v1686 = vld.sshfl [vmem:[#allocation1 + $0x28] sm:$0xff pattern:$0x75316420]
        %v1687 = vld.sshfl [vmem:[#allocation1 + $0x30] sm:$0xff pattern:$0x75316420]
        %v1688 = vld.sshfl [vmem:[#allocation1 + $0x38] sm:$0xff pattern:$0x75316420]
        %1689 = vst [vmem:[%s1673] ss:$2 sm:$0xff] %v1663
        %1690 = vst [vmem:[%s1675] ss:$2 sm:$0xff] %v1664
        %1691 = vst [vmem:[%s1677] ss:$2 sm:$0xff] %v1665
        %v1692 = vld.sshfl [vmem:[#allocation1] sm:$0xff pattern:$0x75316420]
        %v1693 = vld.sshfl [vmem:[#allocation1 + $0x8] sm:$0xff pattern:$0x75316420]
        %v1694 = vld.sshfl [vmem:[#allocation1 + $0x10] sm:$0xff pattern:$0x75316420]
        %v1695 = vld.sshfl [vmem:[#allocation1 + $0x18] sm:$0xff pattern:$0x75316420]
        %v1696 = vld.sshfl [vmem:[#allocation1 + $0x20] sm:$0xff pattern:$0x75316420]
        %1697 = vrot.lane.b32.xlu0 %v1681, 110
        %v1698 = vpop.permute.xlu0 %1697
        %1699 = vrot.lane.b32.xlu0 %v1682, 110
        %v1700 = vpop.permute.xlu0 %1699
        %1701 = vrot.lane.b32.xlu0 %v1683, 110
        %v1702 = vpop.permute.xlu0 %1701
        %1703 = vrot.lane.b32.xlu0 %v1684, 110
        %v1704 = vpop.permute.xlu0 %1703
        %1705 = vrot.lane.b32.xlu0 %v1685, 110
        %v1706 = vpop.permute.xlu0 %1705
        %1707 = vrot.lane.b32.xlu0 %v1686, 110
        %v1708 = vpop.permute.xlu0 %1707
        %1709 = vrot.lane.b32.xlu0 %v1687, 110
        %v1710 = vpop.permute.xlu0 %1709
        %1711 = vrot.lane.b32.xlu0 %v1688, 110
        %v1712 = vpop.permute.xlu0 %1711
        %1713 = vrot.lane.b32.xlu0 %v1692, 110
        %v1714 = vpop.permute.xlu0 %1713
        %1715 = vrot.lane.b32.xlu0 %v1693, 110
        %v1716 = vpop.permute.xlu0 %1715
        %1717 = vrot.lane.b32.xlu0 %v1694, 110
        %v1718 = vpop.permute.xlu0 %1717
        %1719 = vrot.lane.b32.xlu0 %v1695, 110
        %v1720 = vpop.permute.xlu0 %1719
        %1721 = vrot.lane.b32.xlu0 %v1696, 110
        %v1722 = vpop.permute.xlu0 %1721
        %vm1723 = vcmask 900096
        %v1724 = vsel %vm1723, %v1698, %v1700
        %v1725 = vsel %vm1723, %v1700, %v1702
        %v1726 = vsel %vm1723, %v1702, %v1704
        %v1727 = vsel %vm1723, %v1704, %v1706
        %v1728 = vsel %vm1723, %v1706, %v1708
        %v1729 = vsel %vm1723, %v1708, %v1710
        %v1730 = vsel %vm1723, %v1710, %v1712
        %v1731 = vsel %vm1723, %v1712, %v1714
        %v1732 = vsel %vm1723, %v1714, %v1716
        %v1733 = vsel %vm1723, %v1716, %v1718
        %v1734 = vsel %vm1723, %v1718, %v1720
        %v1735 = vsel %vm1723, %v1720, %v1722
        %1748 = vst [vmem:[#allocation3 + $0x120] sm:$0xf0] %v1724
        %1749 = vst [vmem:[#allocation3 + $0x128] sm:$0xf0] %v1725
        %1750 = vst [vmem:[#allocation3 + $0x130] sm:$0xf0] %v1726
        %1751 = vst [vmem:[#allocation3 + $0x138] sm:$0xf0] %v1727
        %1752 = vst [vmem:[#allocation3 + $0x140] sm:$0xf0] %v1728
        %1753 = vst [vmem:[#allocation3 + $0x148] sm:$0xf0] %v1729
        %1754 = vst [vmem:[#allocation3 + $0x150] sm:$0xf0] %v1730
        %1755 = vst [vmem:[#allocation3 + $0x158] sm:$0xf0] %v1731
        %1756 = vst [vmem:[#allocation3 + $0x160] sm:$0xf0] %v1732
        %1757 = vst [vmem:[#allocation3 + $0x168] sm:$0xf0] %v1733
        %1758 = vst [vmem:[#allocation3 + $0x170] sm:$0xf0] %v1734
        %1759 = vst [vmem:[#allocation3 + $0x178] sm:$0xf0] %v1735
        %v1760 = vld [vmem:[#allocation2 + $0x4] sm:$0xff]
        %v1761 = vld [vmem:[#allocation2 + $0xc] sm:$0xff]
        %v1762 = vld [vmem:[#allocation2 + $0x14] sm:$0xff]
        %v1763 = vld [vmem:[#allocation2 + $0x1c] sm:$0xff]
        %v1764 = vld [vmem:[#allocation2 + $0x24] sm:$0xff]
        %v1765 = vld [vmem:[#allocation2 + $0x2c] sm:$0xff]
        %v1766 = vld [vmem:[#allocation2 + $0x34] sm:$0xf]
        %1774 = vst [vmem:[#allocation1] ss:$2 sm:$0xff] %v1760
        %s1775 = scalar_lea.vmem [#allocation1], 16
        %1776 = vst [vmem:[%s1775] ss:$2 sm:$0xff] %v1761
        %s1777 = scalar_lea.vmem [#allocation1], 32
        %1778 = vst [vmem:[%s1777] ss:$2 sm:$0xff] %v1762
        %s1779 = scalar_lea.vmem [#allocation1], 48
        %1780 = vst [vmem:[%s1779] ss:$2 sm:$0xff] %v1763
        %v1781 = vld.sshfl [vmem:[#allocation1] sm:$0xff pattern:$0x75316420]
        %v1782 = vld.sshfl [vmem:[#allocation1 + $0x8] sm:$0xff pattern:$0x75316420]
        %v1783 = vld.sshfl [vmem:[#allocation1 + $0x10] sm:$0xff pattern:$0x75316420]
        %v1784 = vld.sshfl [vmem:[#allocation1 + $0x18] sm:$0xff pattern:$0x75316420]
        %v1785 = vld.sshfl [vmem:[#allocation1 + $0x20] sm:$0xff pattern:$0x75316420]
        %v1786 = vld.sshfl [vmem:[#allocation1 + $0x28] sm:$0xff pattern:$0x75316420]
        %v1787 = vld.sshfl [vmem:[#allocation1 + $0x30] sm:$0xff pattern:$0x75316420]
        %v1788 = vld.sshfl [vmem:[#allocation1 + $0x38] sm:$0xff pattern:$0x75316420]
        %1789 = vst [vmem:[#allocation1] ss:$2 sm:$0xff] %v1764
        %1790 = vst [vmem:[%s1775] ss:$2 sm:$0xff] %v1765
        %1791 = vst [vmem:[%s1777] ss:$2 sm:$0xff] %v1766
        %v1792 = vld.sshfl [vmem:[#allocation1] sm:$0xff pattern:$0x75316420]
        %v1793 = vld.sshfl [vmem:[#allocation1 + $0x8] sm:$0xff pattern:$0x75316420]
        %v1794 = vld.sshfl [vmem:[#allocation1 + $0x10] sm:$0xff pattern:$0x75316420]
        %v1795 = vld.sshfl [vmem:[#allocation1 + $0x18] sm:$0xff pattern:$0x75316420]
        %v1796 = vld.sshfl [vmem:[#allocation1 + $0x20] sm:$0xff pattern:$0x75316420]
        %1797 = vrot.lane.b32.xlu0 %v1781, 109
        %v1798 = vpop.permute.xlu0 %1797
        %1799 = vrot.lane.b32.xlu0 %v1782, 109
        %v1800 = vpop.permute.xlu0 %1799
        %1801 = vrot.lane.b32.xlu0 %v1783, 109
        %v1802 = vpop.permute.xlu0 %1801
        %1803 = vrot.lane.b32.xlu0 %v1784, 109
        %v1804 = vpop.permute.xlu0 %1803
        %1805 = vrot.lane.b32.xlu0 %v1785, 109
        %v1806 = vpop.permute.xlu0 %1805
        %1807 = vrot.lane.b32.xlu0 %v1786, 109
        %v1808 = vpop.permute.xlu0 %1807
        %1809 = vrot.lane.b32.xlu0 %v1787, 109
        %v1810 = vpop.permute.xlu0 %1809
        %1811 = vrot.lane.b32.xlu0 %v1788, 109
        %v1812 = vpop.permute.xlu0 %1811
        %1813 = vrot.lane.b32.xlu0 %v1792, 109
        %v1814 = vpop.permute.xlu0 %1813
        %1815 = vrot.lane.b32.xlu0 %v1793, 109
        %v1816 = vpop.permute.xlu0 %1815
        %1817 = vrot.lane.b32.xlu0 %v1794, 109
        %v1818 = vpop.permute.xlu0 %1817
        %1819 = vrot.lane.b32.xlu0 %v1795, 109
        %v1820 = vpop.permute.xlu0 %1819
        %1821 = vrot.lane.b32.xlu0 %v1796, 109
        %v1822 = vpop.permute.xlu0 %1821
        %vm1823 = vcmask 891904
        %v1824 = vsel %vm1823, %v1798, %v1800
        %v1825 = vsel %vm1823, %v1800, %v1802
        %v1826 = vsel %vm1823, %v1802, %v1804
        %v1827 = vsel %vm1823, %v1804, %v1806
        %v1828 = vsel %vm1823, %v1806, %v1808
        %v1829 = vsel %vm1823, %v1808, %v1810
        %v1830 = vsel %vm1823, %v1810, %v1812
        %v1831 = vsel %vm1823, %v1812, %v1814
        %v1832 = vsel %vm1823, %v1814, %v1816
        %v1833 = vsel %vm1823, %v1816, %v1818
        %v1834 = vsel %vm1823, %v1818, %v1820
        %v1835 = vsel %vm1823, %v1820, %v1822
        %1848 = vst [vmem:[#allocation3 + $0x180] sm:$0xf] %v1824
        %1849 = vst [vmem:[#allocation3 + $0x188] sm:$0xf] %v1825
        %1850 = vst [vmem:[#allocation3 + $0x190] sm:$0xf] %v1826
        %1851 = vst [vmem:[#allocation3 + $0x198] sm:$0xf] %v1827
        %1852 = vst [vmem:[#allocation3 + $0x1a0] sm:$0xf] %v1828
        %1853 = vst [vmem:[#allocation3 + $0x1a8] sm:$0xf] %v1829
        %1854 = vst [vmem:[#allocation3 + $0x1b0] sm:$0xf] %v1830
        %1855 = vst [vmem:[#allocation3 + $0x1b8] sm:$0xf] %v1831
        %1856 = vst [vmem:[#allocation3 + $0x1c0] sm:$0xf] %v1832
        %1857 = vst [vmem:[#allocation3 + $0x1c8] sm:$0xf] %v1833
        %1858 = vst [vmem:[#allocation3 + $0x1d0] sm:$0xf] %v1834
        %1859 = vst [vmem:[#allocation3 + $0x1d8] sm:$0xf] %v1835
        %v1860 = vld [vmem:[%s6] sm:$0xf]
        %v1861 = vld [vmem:[#allocation3] sm:$0xff]
        %v1862 = vld [vmem:[#allocation3 + $0x8] sm:$0xff]
        %v1863 = vld [vmem:[#allocation3 + $0x10] sm:$0xff]
        %v1864 = vld [vmem:[#allocation3 + $0x18] sm:$0xff]
        %v1865 = vld [vmem:[#allocation3 + $0x20] sm:$0xff]
        %v1866 = vld [vmem:[#allocation3 + $0x28] sm:$0xff]
        %v1867 = vld [vmem:[#allocation3 + $0x30] sm:$0xff]
        %v1868 = vld [vmem:[#allocation3 + $0x38] sm:$0xff]
        %v1869 = vld [vmem:[#allocation3 + $0x40] sm:$0xff]
        %v1870 = vld [vmem:[#allocation3 + $0x48] sm:$0xff]
        %v1871 = vld [vmem:[#allocation3 + $0x50] sm:$0xff]
        %v1872 = vld [vmem:[#allocation3 + $0x58] sm:$0xff]
        %v1873 = vld [vmem:[#allocation3 + $0x60] sm:$0xff]
        %v1874 = vld [vmem:[#allocation3 + $0x68] sm:$0xff]
        %v1875 = vld [vmem:[#allocation3 + $0x70] sm:$0xff]
        %v1876 = vld [vmem:[#allocation3 + $0x78] sm:$0xff]
        %v1877 = vld [vmem:[#allocation3 + $0x80] sm:$0xff]
        %v1878 = vld [vmem:[#allocation3 + $0x88] sm:$0xff]
        %v1879 = vld [vmem:[#allocation3 + $0x90] sm:$0xff]
        %v1880 = vld [vmem:[#allocation3 + $0x98] sm:$0xff]
        %v1881 = vld [vmem:[#allocation3 + $0xa0] sm:$0xff]
        %v1882 = vld [vmem:[#allocation3 + $0xa8] sm:$0xff]
        %v1883 = vld [vmem:[#allocation3 + $0xb0] sm:$0xff]
        %v1884 = vld [vmem:[#allocation3 + $0xb8] sm:$0xff]
        %v1885 = vld [vmem:[#allocation3 + $0xc0] sm:$0xff]
        %v1886 = vld [vmem:[#allocation3 + $0xc8] sm:$0xff]
        %v1887 = vld [vmem:[#allocation3 + $0xd0] sm:$0xff]
        %v1888 = vld [vmem:[#allocation3 + $0xd8] sm:$0xff]
        %v1889 = vld [vmem:[#allocation3 + $0xe0] sm:$0xff]
        %v1890 = vld [vmem:[#allocation3 + $0xe8] sm:$0xff]
        %v1891 = vld [vmem:[#allocation3 + $0xf0] sm:$0xff]
        %v1892 = vld [vmem:[#allocation3 + $0xf8] sm:$0xff]
        %v1893 = vld [vmem:[#allocation3 + $0x100] sm:$0xff]
        %v1894 = vld [vmem:[#allocation3 + $0x108] sm:$0xff]
        %v1895 = vld [vmem:[#allocation3 + $0x110] sm:$0xff]
        %v1896 = vld [vmem:[#allocation3 + $0x118] sm:$0xff]
        %v1897 = vld [vmem:[#allocation3 + $0x120] sm:$0xff]
        %v1898 = vld [vmem:[#allocation3 + $0x128] sm:$0xff]
        %v1899 = vld [vmem:[#allocation3 + $0x130] sm:$0xff]
        %v1900 = vld [vmem:[#allocation3 + $0x138] sm:$0xff]
        %v1901 = vld [vmem:[#allocation3 + $0x140] sm:$0xff]
        %v1902 = vld [vmem:[#allocation3 + $0x148] sm:$0xff]
        %v1903 = vld [vmem:[#allocation3 + $0x150] sm:$0xff]
        %v1904 = vld [vmem:[#allocation3 + $0x158] sm:$0xff]
        %v1905 = vld [vmem:[#allocation3 + $0x160] sm:$0xff]
        %v1906 = vld [vmem:[#allocation3 + $0x168] sm:$0xff]
        %v1907 = vld [vmem:[#allocation3 + $0x170] sm:$0xff]
        %v1908 = vld [vmem:[#allocation3 + $0x178] sm:$0xff]
        %v1909 = vld [vmem:[#allocation3 + $0x180] sm:$0xf]
        %v1910 = vld [vmem:[#allocation3 + $0x188] sm:$0xf]
        %v1911 = vld [vmem:[#allocation3 + $0x190] sm:$0xf]
        %v1912 = vld [vmem:[#allocation3 + $0x198] sm:$0xf]
        %v1913 = vld [vmem:[#allocation3 + $0x1a0] sm:$0xf]
        %v1914 = vld [vmem:[#allocation3 + $0x1a8] sm:$0xf]
        %v1915 = vld [vmem:[#allocation3 + $0x1b0] sm:$0xf]
        %v1916 = vld [vmem:[#allocation3 + $0x1b8] sm:$0xf]
        %v1917 = vld [vmem:[#allocation3 + $0x1c0] sm:$0xf]
        %v1918 = vld [vmem:[#allocation3 + $0x1c8] sm:$0xf]
        %v1919 = vld [vmem:[#allocation3 + $0x1d0] sm:$0xf]
        %v1920 = vld [vmem:[#allocation3 + $0x1d8] sm:$0xf]
        %v1921 = vld [vmem:[#allocation2 + $0xc] sm:$0xff]
        %v1922 = vld [vmem:[#allocation2 + $0x14] sm:$0xff]
        %v1923 = vld [vmem:[#allocation2 + $0x1c] sm:$0xff]
        %v1924 = vld [vmem:[#allocation2 + $0x24] sm:$0xff]
        %v1925 = vld [vmem:[#allocation2 + $0x2c] sm:$0xff]
        %v1926 = vld [vmem:[#allocation2 + $0x34] sm:$0xff]
        %v1927 = vld [vmem:[#allocation2 + $0x3c] sm:$0xf]
        %1935 = vst [vmem:[#allocation1] ss:$2 sm:$0xff] %v1921
        %s1936 = scalar_lea.vmem [#allocation1], 16
        %1937 = vst [vmem:[%s1936] ss:$2 sm:$0xff] %v1922
        %s1938 = scalar_lea.vmem [#allocation1], 32
        %1939 = vst [vmem:[%s1938] ss:$2 sm:$0xff] %v1923
        %s1940 = scalar_lea.vmem [#allocation1], 48
        %1941 = vst [vmem:[%s1940] ss:$2 sm:$0xff] %v1924
        %v1942 = vld.sshfl [vmem:[#allocation1] sm:$0xff pattern:$0x75316420]
        %v1943 = vld.sshfl [vmem:[#allocation1 + $0x8] sm:$0xff pattern:$0x75316420]
        %v1944 = vld.sshfl [vmem:[#allocation1 + $0x10] sm:$0xff pattern:$0x75316420]
        %v1945 = vld.sshfl [vmem:[#allocation1 + $0x18] sm:$0xff pattern:$0x75316420]
        %v1946 = vld.sshfl [vmem:[#allocation1 + $0x20] sm:$0xff pattern:$0x75316420]
        %v1947 = vld.sshfl [vmem:[#allocation1 + $0x28] sm:$0xff pattern:$0x75316420]
        %v1948 = vld.sshfl [vmem:[#allocation1 + $0x30] sm:$0xff pattern:$0x75316420]
        %v1949 = vld.sshfl [vmem:[#allocation1 + $0x38] sm:$0xff pattern:$0x75316420]
        %1950 = vst [vmem:[#allocation1] ss:$2 sm:$0xff] %v1925
        %1951 = vst [vmem:[%s1936] ss:$2 sm:$0xff] %v1926
        %1952 = vst [vmem:[%s1938] ss:$2 sm:$0xff] %v1927
        %v1953 = vld.sshfl [vmem:[#allocation1] sm:$0xff pattern:$0x75316420]
        %v1954 = vld.sshfl [vmem:[#allocation1 + $0x8] sm:$0xff pattern:$0x75316420]
        %v1955 = vld.sshfl [vmem:[#allocation1 + $0x10] sm:$0xff pattern:$0x75316420]
        %v1956 = vld.sshfl [vmem:[#allocation1 + $0x18] sm:$0xff pattern:$0x75316420]
        %v1957 = vld.sshfl [vmem:[#allocation1 + $0x20] sm:$0xff pattern:$0x75316420]
        %1958 = vrot.lane.b32.xlu0 %v1942, 19
        %v1959 = vpop.permute.xlu0 %1958
        %1960 = vrot.lane.b32.xlu0 %v1943, 19
        %v1961 = vpop.permute.xlu0 %1960
        %1962 = vrot.lane.b32.xlu0 %v1944, 19
        %v1963 = vpop.permute.xlu0 %1962
        %1964 = vrot.lane.b32.xlu0 %v1945, 19
        %v1965 = vpop.permute.xlu0 %1964
        %1966 = vrot.lane.b32.xlu0 %v1946, 19
        %v1967 = vpop.permute.xlu0 %1966
        %1968 = vrot.lane.b32.xlu0 %v1947, 19
        %v1969 = vpop.permute.xlu0 %1968
        %1970 = vrot.lane.b32.xlu0 %v1948, 19
        %v1971 = vpop.permute.xlu0 %1970
        %1972 = vrot.lane.b32.xlu0 %v1949, 19
        %v1973 = vpop.permute.xlu0 %1972
        %1974 = vrot.lane.b32.xlu0 %v1953, 19
        %v1975 = vpop.permute.xlu0 %1974
        %1976 = vrot.lane.b32.xlu0 %v1954, 19
        %v1977 = vpop.permute.xlu0 %1976
        %1978 = vrot.lane.b32.xlu0 %v1955, 19
        %v1979 = vpop.permute.xlu0 %1978
        %1980 = vrot.lane.b32.xlu0 %v1956, 19
        %v1981 = vpop.permute.xlu0 %1980
        %1982 = vrot.lane.b32.xlu0 %v1957, 19
        %v1983 = vpop.permute.xlu0 %1982
        %v1984 = vsel %vm1062, %v1959, %v1961
        %v1985 = vsel %vm1062, %v1961, %v1963
        %v1986 = vsel %vm1062, %v1963, %v1965
        %v1987 = vsel %vm1062, %v1965, %v1967
        %v1988 = vsel %vm1062, %v1967, %v1969
        %v1989 = vsel %vm1062, %v1969, %v1971
        %v1990 = vsel %vm1062, %v1971, %v1973
        %v1991 = vsel %vm1062, %v1973, %v1975
        %v1992 = vsel %vm1062, %v1975, %v1977
        %v1993 = vsel %vm1062, %v1977, %v1979
        %v1994 = vsel %vm1062, %v1979, %v1981
        %v1995 = vsel %vm1062, %v1981, %v1983
        %2008 = vst [vmem:[#allocation3] sm:$0xf] %v1984
        %2009 = vst [vmem:[#allocation3 + $0x8] sm:$0xf] %v1985
        %2010 = vst [vmem:[#allocation3 + $0x10] sm:$0xf] %v1986
        %2011 = vst [vmem:[#allocation3 + $0x18] sm:$0xf] %v1987
        %2012 = vst [vmem:[#allocation3 + $0x20] sm:$0xf] %v1988
        %2013 = vst [vmem:[#allocation3 + $0x28] sm:$0xf] %v1989
        %2014 = vst [vmem:[#allocation3 + $0x30] sm:$0xf] %v1990
        %2015 = vst [vmem:[#allocation3 + $0x38] sm:$0xf] %v1991
        %2016 = vst [vmem:[#allocation3 + $0x40] sm:$0xf] %v1992
        %2017 = vst [vmem:[#allocation3 + $0x48] sm:$0xf] %v1993
        %2018 = vst [vmem:[#allocation3 + $0x50] sm:$0xf] %v1994
        %2019 = vst [vmem:[#allocation3 + $0x58] sm:$0xf] %v1995
        %v2020 = vld [vmem:[#allocation2 + $0xc] sm:$0xff]
        %v2021 = vld [vmem:[#allocation2 + $0x14] sm:$0xff]
        %v2022 = vld [vmem:[#allocation2 + $0x1c] sm:$0xff]
        %v2023 = vld [vmem:[#allocation2 + $0x24] sm:$0xff]
        %v2024 = vld [vmem:[#allocation2 + $0x2c] sm:$0xff]
        %v2025 = vld [vmem:[#allocation2 + $0x34] sm:$0xff]
        %v2026 = vld [vmem:[#allocation2 + $0x3c] sm:$0xf]
        %s2034 = scalar_lea.vmem [#allocation1], 1
        %2035 = vst [vmem:[%s2034] ss:$2 sm:$0xff] %v2020
        %s2036 = scalar_lea.vmem [#allocation1], 17
        %2037 = vst [vmem:[%s2036] ss:$2 sm:$0xff] %v2021
        %s2038 = scalar_lea.vmem [#allocation1], 33
        %2039 = vst [vmem:[%s2038] ss:$2 sm:$0xff] %v2022
        %s2040 = scalar_lea.vmem [#allocation1], 49
        %2041 = vst [vmem:[%s2040] ss:$2 sm:$0xff] %v2023
        %v2042 = vld.sshfl [vmem:[#allocation1] sm:$0xff pattern:$0x75316420]
        %v2043 = vld.sshfl [vmem:[#allocation1 + $0x8] sm:$0xff pattern:$0x75316420]
        %v2044 = vld.sshfl [vmem:[#allocation1 + $0x10] sm:$0xff pattern:$0x75316420]
        %v2045 = vld.sshfl [vmem:[#allocation1 + $0x18] sm:$0xff pattern:$0x75316420]
        %v2046 = vld.sshfl [vmem:[#allocation1 + $0x20] sm:$0xff pattern:$0x75316420]
        %v2047 = vld.sshfl [vmem:[#allocation1 + $0x28] sm:$0xff pattern:$0x75316420]
        %v2048 = vld.sshfl [vmem:[#allocation1 + $0x30] sm:$0xff pattern:$0x75316420]
        %v2049 = vld.sshfl [vmem:[#allocation1 + $0x38] sm:$0xff pattern:$0x75316420]
        %2050 = vst [vmem:[%s2034] ss:$2 sm:$0xff] %v2024
        %2051 = vst [vmem:[%s2036] ss:$2 sm:$0xff] %v2025
        %2052 = vst [vmem:[%s2038] ss:$2 sm:$0xff] %v2026
        %v2053 = vld.sshfl [vmem:[#allocation1] sm:$0xff pattern:$0x75316420]
        %v2054 = vld.sshfl [vmem:[#allocation1 + $0x8] sm:$0xff pattern:$0x75316420]
        %v2055 = vld.sshfl [vmem:[#allocation1 + $0x10] sm:$0xff pattern:$0x75316420]
        %v2056 = vld.sshfl [vmem:[#allocation1 + $0x18] sm:$0xff pattern:$0x75316420]
        %v2057 = vld.sshfl [vmem:[#allocation1 + $0x20] sm:$0xff pattern:$0x75316420]
        %2058 = vrot.lane.b32.xlu0 %v2042, 18
        %v2059 = vpop.permute.xlu0 %2058
        %2060 = vrot.lane.b32.xlu0 %v2043, 18
        %v2061 = vpop.permute.xlu0 %2060
        %2062 = vrot.lane.b32.xlu0 %v2044, 18
        %v2063 = vpop.permute.xlu0 %2062
        %2064 = vrot.lane.b32.xlu0 %v2045, 18
        %v2065 = vpop.permute.xlu0 %2064
        %2066 = vrot.lane.b32.xlu0 %v2046, 18
        %v2067 = vpop.permute.xlu0 %2066
        %2068 = vrot.lane.b32.xlu0 %v2047, 18
        %v2069 = vpop.permute.xlu0 %2068
        %2070 = vrot.lane.b32.xlu0 %v2048, 18
        %v2071 = vpop.permute.xlu0 %2070
        %2072 = vrot.lane.b32.xlu0 %v2049, 18
        %v2073 = vpop.permute.xlu0 %2072
        %2074 = vrot.lane.b32.xlu0 %v2053, 18
        %v2075 = vpop.permute.xlu0 %2074
        %2076 = vrot.lane.b32.xlu0 %v2054, 18
        %v2077 = vpop.permute.xlu0 %2076
        %2078 = vrot.lane.b32.xlu0 %v2055, 18
        %v2079 = vpop.permute.xlu0 %2078
        %2080 = vrot.lane.b32.xlu0 %v2056, 18
        %v2081 = vpop.permute.xlu0 %2080
        %2082 = vrot.lane.b32.xlu0 %v2057, 18
        %v2083 = vpop.permute.xlu0 %2082
        %v2084 = vsel %vm1163, %v2059, %v2061
        %v2085 = vsel %vm1163, %v2061, %v2063
        %v2086 = vsel %vm1163, %v2063, %v2065
        %v2087 = vsel %vm1163, %v2065, %v2067
        %v2088 = vsel %vm1163, %v2067, %v2069
        %v2089 = vsel %vm1163, %v2069, %v2071
        %v2090 = vsel %vm1163, %v2071, %v2073
        %v2091 = vsel %vm1163, %v2073, %v2075
        %v2092 = vsel %vm1163, %v2075, %v2077
        %v2093 = vsel %vm1163, %v2077, %v2079
        %v2094 = vsel %vm1163, %v2079, %v2081
        %v2095 = vsel %vm1163, %v2081, %v2083
        %2108 = vst [vmem:[#allocation3] sm:$0xf0] %v2084
        %2109 = vst [vmem:[#allocation3 + $0x8] sm:$0xf0] %v2085
        %2110 = vst [vmem:[#allocation3 + $0x10] sm:$0xf0] %v2086
        %2111 = vst [vmem:[#allocation3 + $0x18] sm:$0xf0] %v2087
        %2112 = vst [vmem:[#allocation3 + $0x20] sm:$0xf0] %v2088
        %2113 = vst [vmem:[#allocation3 + $0x28] sm:$0xf0] %v2089
        %2114 = vst [vmem:[#allocation3 + $0x30] sm:$0xf0] %v2090
        %2115 = vst [vmem:[#allocation3 + $0x38] sm:$0xf0] %v2091
        %2116 = vst [vmem:[#allocation3 + $0x40] sm:$0xf0] %v2092
        %2117 = vst [vmem:[#allocation3 + $0x48] sm:$0xf0] %v2093
        %2118 = vst [vmem:[#allocation3 + $0x50] sm:$0xf0] %v2094
        %2119 = vst [vmem:[#allocation3 + $0x58] sm:$0xf0] %v2095
        %v2120 = vld [vmem:[#allocation2 + $0xc] sm:$0xff]
        %v2121 = vld [vmem:[#allocation2 + $0x14] sm:$0xff]
        %v2122 = vld [vmem:[#allocation2 + $0x1c] sm:$0xff]
        %v2123 = vld [vmem:[#allocation2 + $0x24] sm:$0xff]
        %v2124 = vld [vmem:[#allocation2 + $0x2c] sm:$0xff]
        %v2125 = vld [vmem:[#allocation2 + $0x34] sm:$0xff]
        %v2126 = vld [vmem:[#allocation2 + $0x3c] sm:$0xf]
        %2134 = vst [vmem:[#allocation1] ss:$2 sm:$0xff] %v2120
        %s2135 = scalar_lea.vmem [#allocation1], 16
        %2136 = vst [vmem:[%s2135] ss:$2 sm:$0xff] %v2121
        %s2137 = scalar_lea.vmem [#allocation1], 32
        %2138 = vst [vmem:[%s2137] ss:$2 sm:$0xff] %v2122
        %s2139 = scalar_lea.vmem [#allocation1], 48
        %2140 = vst [vmem:[%s2139] ss:$2 sm:$0xff] %v2123
        %v2141 = vld.sshfl [vmem:[#allocation1] sm:$0xff pattern:$0x75316420]
        %v2142 = vld.sshfl [vmem:[#allocation1 + $0x8] sm:$0xff pattern:$0x75316420]
        %v2143 = vld.sshfl [vmem:[#allocation1 + $0x10] sm:$0xff pattern:$0x75316420]
        %v2144 = vld.sshfl [vmem:[#allocation1 + $0x18] sm:$0xff pattern:$0x75316420]
        %v2145 = vld.sshfl [vmem:[#allocation1 + $0x20] sm:$0xff pattern:$0x75316420]
        %v2146 = vld.sshfl [vmem:[#allocation1 + $0x28] sm:$0xff pattern:$0x75316420]
        %v2147 = vld.sshfl [vmem:[#allocation1 + $0x30] sm:$0xff pattern:$0x75316420]
        %v2148 = vld.sshfl [vmem:[#allocation1 + $0x38] sm:$0xff pattern:$0x75316420]
        %2149 = vst [vmem:[#allocation1] ss:$2 sm:$0xff] %v2124
        %2150 = vst [vmem:[%s2135] ss:$2 sm:$0xff] %v2125
        %2151 = vst [vmem:[%s2137] ss:$2 sm:$0xff] %v2126
        %v2152 = vld.sshfl [vmem:[#allocation1] sm:$0xff pattern:$0x75316420]
        %v2153 = vld.sshfl [vmem:[#allocation1 + $0x8] sm:$0xff pattern:$0x75316420]
        %v2154 = vld.sshfl [vmem:[#allocation1 + $0x10] sm:$0xff pattern:$0x75316420]
        %v2155 = vld.sshfl [vmem:[#allocation1 + $0x18] sm:$0xff pattern:$0x75316420]
        %v2156 = vld.sshfl [vmem:[#allocation1 + $0x20] sm:$0xff pattern:$0x75316420]
        %2157 = vrot.lane.b32.xlu0 %v2141, 17
        %v2158 = vpop.permute.xlu0 %2157
        %2159 = vrot.lane.b32.xlu0 %v2142, 17
        %v2160 = vpop.permute.xlu0 %2159
        %2161 = vrot.lane.b32.xlu0 %v2143, 17
        %v2162 = vpop.permute.xlu0 %2161
        %2163 = vrot.lane.b32.xlu0 %v2144, 17
        %v2164 = vpop.permute.xlu0 %2163
        %2165 = vrot.lane.b32.xlu0 %v2145, 17
        %v2166 = vpop.permute.xlu0 %2165
        %2167 = vrot.lane.b32.xlu0 %v2146, 17
        %v2168 = vpop.permute.xlu0 %2167
        %2169 = vrot.lane.b32.xlu0 %v2147, 17
        %v2170 = vpop.permute.xlu0 %2169
        %2171 = vrot.lane.b32.xlu0 %v2148, 17
        %v2172 = vpop.permute.xlu0 %2171
        %2173 = vrot.lane.b32.xlu0 %v2152, 17
        %v2174 = vpop.permute.xlu0 %2173
        %2175 = vrot.lane.b32.xlu0 %v2153, 17
        %v2176 = vpop.permute.xlu0 %2175
        %2177 = vrot.lane.b32.xlu0 %v2154, 17
        %v2178 = vpop.permute.xlu0 %2177
        %2179 = vrot.lane.b32.xlu0 %v2155, 17
        %v2180 = vpop.permute.xlu0 %2179
        %2181 = vrot.lane.b32.xlu0 %v2156, 17
        %v2182 = vpop.permute.xlu0 %2181
        %v2183 = vsel %vm1263, %v2158, %v2160
        %v2184 = vsel %vm1263, %v2160, %v2162
        %v2185 = vsel %vm1263, %v2162, %v2164
        %v2186 = vsel %vm1263, %v2164, %v2166
        %v2187 = vsel %vm1263, %v2166, %v2168
        %v2188 = vsel %vm1263, %v2168, %v2170
        %v2189 = vsel %vm1263, %v2170, %v2172
        %v2190 = vsel %vm1263, %v2172, %v2174
        %v2191 = vsel %vm1263, %v2174, %v2176
        %v2192 = vsel %vm1263, %v2176, %v2178
        %v2193 = vsel %vm1263, %v2178, %v2180
        %v2194 = vsel %vm1263, %v2180, %v2182
        %2207 = vst [vmem:[#allocation3 + $0x60] sm:$0xf] %v2183
        %2208 = vst [vmem:[#allocation3 + $0x68] sm:$0xf] %v2184
        %2209 = vst [vmem:[#allocation3 + $0x70] sm:$0xf] %v2185
        %2210 = vst [vmem:[#allocation3 + $0x78] sm:$0xf] %v2186
        %2211 = vst [vmem:[#allocation3 + $0x80] sm:$0xf] %v2187
        %2212 = vst [vmem:[#allocation3 + $0x88] sm:$0xf] %v2188
        %2213 = vst [vmem:[#allocation3 + $0x90] sm:$0xf] %v2189
        %2214 = vst [vmem:[#allocation3 + $0x98] sm:$0xf] %v2190
        %2215 = vst [vmem:[#allocation3 + $0xa0] sm:$0xf] %v2191
        %2216 = vst [vmem:[#allocation3 + $0xa8] sm:$0xf] %v2192
        %2217 = vst [vmem:[#allocation3 + $0xb0] sm:$0xf] %v2193
        %2218 = vst [vmem:[#allocation3 + $0xb8] sm:$0xf] %v2194
        %v2219 = vld [vmem:[#allocation2 + $0xc] sm:$0xff]
        %v2220 = vld [vmem:[#allocation2 + $0x14] sm:$0xff]
        %v2221 = vld [vmem:[#allocation2 + $0x1c] sm:$0xff]
        %v2222 = vld [vmem:[#allocation2 + $0x24] sm:$0xff]
        %v2223 = vld [vmem:[#allocation2 + $0x2c] sm:$0xff]
        %v2224 = vld [vmem:[#allocation2 + $0x34] sm:$0xff]
        %v2225 = vld [vmem:[#allocation2 + $0x3c] sm:$0xf]
        %s2233 = scalar_lea.vmem [#allocation1], 1
        %2234 = vst [vmem:[%s2233] ss:$2 sm:$0xff] %v2219
        %s2235 = scalar_lea.vmem [#allocation1], 17
        %2236 = vst [vmem:[%s2235] ss:$2 sm:$0xff] %v2220
        %s2237 = scalar_lea.vmem [#allocation1], 33
        %2238 = vst [vmem:[%s2237] ss:$2 sm:$0xff] %v2221
        %s2239 = scalar_lea.vmem [#allocation1], 49
        %2240 = vst [vmem:[%s2239] ss:$2 sm:$0xff] %v2222
        %v2241 = vld.sshfl [vmem:[#allocation1] sm:$0xff pattern:$0x75316420]
        %v2242 = vld.sshfl [vmem:[#allocation1 + $0x8] sm:$0xff pattern:$0x75316420]
        %v2243 = vld.sshfl [vmem:[#allocation1 + $0x10] sm:$0xff pattern:$0x75316420]
        %v2244 = vld.sshfl [vmem:[#allocation1 + $0x18] sm:$0xff pattern:$0x75316420]
        %v2245 = vld.sshfl [vmem:[#allocation1 + $0x20] sm:$0xff pattern:$0x75316420]
        %v2246 = vld.sshfl [vmem:[#allocation1 + $0x28] sm:$0xff pattern:$0x75316420]
        %v2247 = vld.sshfl [vmem:[#allocation1 + $0x30] sm:$0xff pattern:$0x75316420]
        %v2248 = vld.sshfl [vmem:[#allocation1 + $0x38] sm:$0xff pattern:$0x75316420]
        %2249 = vst [vmem:[%s2233] ss:$2 sm:$0xff] %v2223
        %2250 = vst [vmem:[%s2235] ss:$2 sm:$0xff] %v2224
        %2251 = vst [vmem:[%s2237] ss:$2 sm:$0xff] %v2225
        %v2252 = vld.sshfl [vmem:[#allocation1] sm:$0xff pattern:$0x75316420]
        %v2253 = vld.sshfl [vmem:[#allocation1 + $0x8] sm:$0xff pattern:$0x75316420]
        %v2254 = vld.sshfl [vmem:[#allocation1 + $0x10] sm:$0xff pattern:$0x75316420]
        %v2255 = vld.sshfl [vmem:[#allocation1 + $0x18] sm:$0xff pattern:$0x75316420]
        %v2256 = vld.sshfl [vmem:[#allocation1 + $0x20] sm:$0xff pattern:$0x75316420]
        %2257 = vrot.lane.b32.xlu0 %v2241, 1
        %v2258 = vpop.permute.xlu0 %2257
        %2259 = vrot.lane.b32.xlu0 %v2242, 1
        %v2260 = vpop.permute.xlu0 %2259
        %2261 = vrot.lane.b32.xlu0 %v2243, 1
        %v2262 = vpop.permute.xlu0 %2261
        %2263 = vrot.lane.b32.xlu0 %v2244, 1
        %v2264 = vpop.permute.xlu0 %2263
        %2265 = vrot.lane.b32.xlu0 %v2245, 1
        %v2266 = vpop.permute.xlu0 %2265
        %2267 = vrot.lane.b32.xlu0 %v2246, 1
        %v2268 = vpop.permute.xlu0 %2267
        %2269 = vrot.lane.b32.xlu0 %v2247, 1
        %v2270 = vpop.permute.xlu0 %2269
        %2271 = vrot.lane.b32.xlu0 %v2248, 1
        %v2272 = vpop.permute.xlu0 %2271
        %2273 = vrot.lane.b32.xlu0 %v2252, 1
        %v2274 = vpop.permute.xlu0 %2273
        %2275 = vrot.lane.b32.xlu0 %v2253, 1
        %v2276 = vpop.permute.xlu0 %2275
        %2277 = vrot.lane.b32.xlu0 %v2254, 1
        %v2278 = vpop.permute.xlu0 %2277
        %2279 = vrot.lane.b32.xlu0 %v2255, 1
        %v2280 = vpop.permute.xlu0 %2279
        %2281 = vrot.lane.b32.xlu0 %v2256, 1
        %v2282 = vpop.permute.xlu0 %2281
        %v2283 = vsel %vm1364, %v2258, %v2260
        %v2284 = vsel %vm1364, %v2260, %v2262
        %v2285 = vsel %vm1364, %v2262, %v2264
        %v2286 = vsel %vm1364, %v2264, %v2266
        %v2287 = vsel %vm1364, %v2266, %v2268
        %v2288 = vsel %vm1364, %v2268, %v2270
        %v2289 = vsel %vm1364, %v2270, %v2272
        %v2290 = vsel %vm1364, %v2272, %v2274
        %v2291 = vsel %vm1364, %v2274, %v2276
        %v2292 = vsel %vm1364, %v2276, %v2278
        %v2293 = vsel %vm1364, %v2278, %v2280
        %v2294 = vsel %vm1364, %v2280, %v2282
        %2307 = vst [vmem:[#allocation3 + $0x60] sm:$0xf0] %v2283
        %2308 = vst [vmem:[#allocation3 + $0x68] sm:$0xf0] %v2284
        %2309 = vst [vmem:[#allocation3 + $0x70] sm:$0xf0] %v2285
        %2310 = vst [vmem:[#allocation3 + $0x78] sm:$0xf0] %v2286
        %2311 = vst [vmem:[#allocation3 + $0x80] sm:$0xf0] %v2287
        %2312 = vst [vmem:[#allocation3 + $0x88] sm:$0xf0] %v2288
        %2313 = vst [vmem:[#allocation3 + $0x90] sm:$0xf0] %v2289
        %2314 = vst [vmem:[#allocation3 + $0x98] sm:$0xf0] %v2290
        %2315 = vst [vmem:[#allocation3 + $0xa0] sm:$0xf0] %v2291
        %2316 = vst [vmem:[#allocation3 + $0xa8] sm:$0xf0] %v2292
        %2317 = vst [vmem:[#allocation3 + $0xb0] sm:$0xf0] %v2293
        %2318 = vst [vmem:[#allocation3 + $0xb8] sm:$0xf0] %v2294
        %v2319 = vld [vmem:[#allocation2 + $0x10] sm:$0xff]
        %v2320 = vld [vmem:[#allocation2 + $0x18] sm:$0xff]
        %v2321 = vld [vmem:[#allocation2 + $0x20] sm:$0xff]
        %v2322 = vld [vmem:[#allocation2 + $0x28] sm:$0xff]
        %v2323 = vld [vmem:[#allocation2 + $0x30] sm:$0xff]
        %v2324 = vld [vmem:[#allocation2 + $0x38] sm:$0xff]
        %2331 = vst [vmem:[#allocation1] ss:$2 sm:$0xff] %v2319
        %s2332 = scalar_lea.vmem [#allocation1], 16
        %2333 = vst [vmem:[%s2332] ss:$2 sm:$0xff] %v2320
        %s2334 = scalar_lea.vmem [#allocation1], 32
        %2335 = vst [vmem:[%s2334] ss:$2 sm:$0xff] %v2321
        %s2336 = scalar_lea.vmem [#allocation1], 48
        %2337 = vst [vmem:[%s2336] ss:$2 sm:$0xff] %v2322
        %v2338 = vld.sshfl [vmem:[#allocation1] sm:$0xff pattern:$0x75316420]
        %v2339 = vld.sshfl [vmem:[#allocation1 + $0x8] sm:$0xff pattern:$0x75316420]
        %v2340 = vld.sshfl [vmem:[#allocation1 + $0x10] sm:$0xff pattern:$0x75316420]
        %v2341 = vld.sshfl [vmem:[#allocation1 + $0x18] sm:$0xff pattern:$0x75316420]
        %v2342 = vld.sshfl [vmem:[#allocation1 + $0x20] sm:$0xff pattern:$0x75316420]
        %v2343 = vld.sshfl [vmem:[#allocation1 + $0x28] sm:$0xff pattern:$0x75316420]
        %v2344 = vld.sshfl [vmem:[#allocation1 + $0x30] sm:$0xff pattern:$0x75316420]
        %v2345 = vld.sshfl [vmem:[#allocation1 + $0x38] sm:$0xff pattern:$0x75316420]
        %2346 = vst [vmem:[#allocation1] ss:$2 sm:$0xff] %v2323
        %2347 = vst [vmem:[%s2332] ss:$2 sm:$0xff] %v2324
        %v2348 = vld.sshfl [vmem:[#allocation1] sm:$0xff pattern:$0x75316420]
        %v2349 = vld.sshfl [vmem:[#allocation1 + $0x8] sm:$0xff pattern:$0x75316420]
        %v2350 = vld.sshfl [vmem:[#allocation1 + $0x10] sm:$0xff pattern:$0x75316420]
        %v2351 = vld.sshfl [vmem:[#allocation1 + $0x18] sm:$0xff pattern:$0x75316420]
        %2364 = vst [vmem:[#allocation3 + $0xc0] sm:$0xf] %v2338
        %2365 = vst [vmem:[#allocation3 + $0xc8] sm:$0xf] %v2339
        %2366 = vst [vmem:[#allocation3 + $0xd0] sm:$0xf] %v2340
        %2367 = vst [vmem:[#allocation3 + $0xd8] sm:$0xf] %v2341
        %2368 = vst [vmem:[#allocation3 + $0xe0] sm:$0xf] %v2342
        %2369 = vst [vmem:[#allocation3 + $0xe8] sm:$0xf] %v2343
        %2370 = vst [vmem:[#allocation3 + $0xf0] sm:$0xf] %v2344
        %2371 = vst [vmem:[#allocation3 + $0xf8] sm:$0xf] %v2345
        %2372 = vst [vmem:[#allocation3 + $0x100] sm:$0xf] %v2348
        %2373 = vst [vmem:[#allocation3 + $0x108] sm:$0xf] %v2349
        %2374 = vst [vmem:[#allocation3 + $0x110] sm:$0xf] %v2350
        %2375 = vst [vmem:[#allocation3 + $0x118] sm:$0xf] %v2351
        %v2376 = vld [vmem:[#allocation2 + $0x10] sm:$0xff]
        %v2377 = vld [vmem:[#allocation2 + $0x18] sm:$0xff]
        %v2378 = vld [vmem:[#allocation2 + $0x20] sm:$0xff]
        %v2379 = vld [vmem:[#allocation2 + $0x28] sm:$0xff]
        %v2380 = vld [vmem:[#allocation2 + $0x30] sm:$0xff]
        %v2381 = vld [vmem:[#allocation2 + $0x38] sm:$0xff]
        %v2382 = vld [vmem:[#allocation2 + $0x40] sm:$0xf]
        %s2390 = scalar_lea.vmem [#allocation1], 1
        %2391 = vst [vmem:[%s2390] ss:$2 sm:$0xff] %v2376
        %s2392 = scalar_lea.vmem [#allocation1], 17
        %2393 = vst [vmem:[%s2392] ss:$2 sm:$0xff] %v2377
        %s2394 = scalar_lea.vmem [#allocation1], 33
        %2395 = vst [vmem:[%s2394] ss:$2 sm:$0xff] %v2378
        %s2396 = scalar_lea.vmem [#allocation1], 49
        %2397 = vst [vmem:[%s2396] ss:$2 sm:$0xff] %v2379
        %v2398 = vld.sshfl [vmem:[#allocation1] sm:$0xff pattern:$0x75316420]
        %v2399 = vld.sshfl [vmem:[#allocation1 + $0x8] sm:$0xff pattern:$0x75316420]
        %v2400 = vld.sshfl [vmem:[#allocation1 + $0x10] sm:$0xff pattern:$0x75316420]
        %v2401 = vld.sshfl [vmem:[#allocation1 + $0x18] sm:$0xff pattern:$0x75316420]
        %v2402 = vld.sshfl [vmem:[#allocation1 + $0x20] sm:$0xff pattern:$0x75316420]
        %v2403 = vld.sshfl [vmem:[#allocation1 + $0x28] sm:$0xff pattern:$0x75316420]
        %v2404 = vld.sshfl [vmem:[#allocation1 + $0x30] sm:$0xff pattern:$0x75316420]
        %v2405 = vld.sshfl [vmem:[#allocation1 + $0x38] sm:$0xff pattern:$0x75316420]
        %2406 = vst [vmem:[%s2390] ss:$2 sm:$0xff] %v2380
        %2407 = vst [vmem:[%s2392] ss:$2 sm:$0xff] %v2381
        %2408 = vst [vmem:[%s2394] ss:$2 sm:$0xff] %v2382
        %v2409 = vld.sshfl [vmem:[#allocation1] sm:$0xff pattern:$0x75316420]
        %v2410 = vld.sshfl [vmem:[#allocation1 + $0x8] sm:$0xff pattern:$0x75316420]
        %v2411 = vld.sshfl [vmem:[#allocation1 + $0x10] sm:$0xff pattern:$0x75316420]
        %v2412 = vld.sshfl [vmem:[#allocation1 + $0x18] sm:$0xff pattern:$0x75316420]
        %v2413 = vld.sshfl [vmem:[#allocation1 + $0x20] sm:$0xff pattern:$0x75316420]
        %2414 = vrot.lane.b32.xlu0 %v2398, 127
        %v2415 = vpop.permute.xlu0 %2414
        %2416 = vrot.lane.b32.xlu0 %v2399, 127
        %v2417 = vpop.permute.xlu0 %2416
        %2418 = vrot.lane.b32.xlu0 %v2400, 127
        %v2419 = vpop.permute.xlu0 %2418
        %2420 = vrot.lane.b32.xlu0 %v2401, 127
        %v2421 = vpop.permute.xlu0 %2420
        %2422 = vrot.lane.b32.xlu0 %v2402, 127
        %v2423 = vpop.permute.xlu0 %2422
        %2424 = vrot.lane.b32.xlu0 %v2403, 127
        %v2425 = vpop.permute.xlu0 %2424
        %2426 = vrot.lane.b32.xlu0 %v2404, 127
        %v2427 = vpop.permute.xlu0 %2426
        %2428 = vrot.lane.b32.xlu0 %v2405, 127
        %v2429 = vpop.permute.xlu0 %2428
        %2430 = vrot.lane.b32.xlu0 %v2409, 127
        %v2431 = vpop.permute.xlu0 %2430
        %2432 = vrot.lane.b32.xlu0 %v2410, 127
        %v2433 = vpop.permute.xlu0 %2432
        %2434 = vrot.lane.b32.xlu0 %v2411, 127
        %v2435 = vpop.permute.xlu0 %2434
        %2436 = vrot.lane.b32.xlu0 %v2412, 127
        %v2437 = vpop.permute.xlu0 %2436
        %2438 = vrot.lane.b32.xlu0 %v2413, 127
        %v2439 = vpop.permute.xlu0 %2438
        %v2440 = vsel %vm1522, %v2415, %v2417
        %v2441 = vsel %vm1522, %v2417, %v2419
        %v2442 = vsel %vm1522, %v2419, %v2421
        %v2443 = vsel %vm1522, %v2421, %v2423
        %v2444 = vsel %vm1522, %v2423, %v2425
        %v2445 = vsel %vm1522, %v2425, %v2427
        %v2446 = vsel %vm1522, %v2427, %v2429
        %v2447 = vsel %vm1522, %v2429, %v2431
        %v2448 = vsel %vm1522, %v2431, %v2433
        %v2449 = vsel %vm1522, %v2433, %v2435
        %v2450 = vsel %vm1522, %v2435, %v2437
        %v2451 = vsel %vm1522, %v2437, %v2439
        %2464 = vst [vmem:[#allocation3 + $0xc0] sm:$0xf0] %v2440
        %2465 = vst [vmem:[#allocation3 + $0xc8] sm:$0xf0] %v2441
        %2466 = vst [vmem:[#allocation3 + $0xd0] sm:$0xf0] %v2442
        %2467 = vst [vmem:[#allocation3 + $0xd8] sm:$0xf0] %v2443
        %2468 = vst [vmem:[#allocation3 + $0xe0] sm:$0xf0] %v2444
        %2469 = vst [vmem:[#allocation3 + $0xe8] sm:$0xf0] %v2445
        %2470 = vst [vmem:[#allocation3 + $0xf0] sm:$0xf0] %v2446
        %2471 = vst [vmem:[#allocation3 + $0xf8] sm:$0xf0] %v2447
        %2472 = vst [vmem:[#allocation3 + $0x100] sm:$0xf0] %v2448
        %2473 = vst [vmem:[#allocation3 + $0x108] sm:$0xf0] %v2449
        %2474 = vst [vmem:[#allocation3 + $0x110] sm:$0xf0] %v2450
        %2475 = vst [vmem:[#allocation3 + $0x118] sm:$0xf0] %v2451
        %v2476 = vld [vmem:[#allocation2 + $0x10] sm:$0xff]
        %v2477 = vld [vmem:[#allocation2 + $0x18] sm:$0xff]
        %v2478 = vld [vmem:[#allocation2 + $0x20] sm:$0xff]
        %v2479 = vld [vmem:[#allocation2 + $0x28] sm:$0xff]
        %v2480 = vld [vmem:[#allocation2 + $0x30] sm:$0xff]
        %v2481 = vld [vmem:[#allocation2 + $0x38] sm:$0xff]
        %v2482 = vld [vmem:[#allocation2 + $0x40] sm:$0xf]
        %2490 = vst [vmem:[#allocation1] ss:$2 sm:$0xff] %v2476
        %s2491 = scalar_lea.vmem [#allocation1], 16
        %2492 = vst [vmem:[%s2491] ss:$2 sm:$0xff] %v2477
        %s2493 = scalar_lea.vmem [#allocation1], 32
        %2494 = vst [vmem:[%s2493] ss:$2 sm:$0xff] %v2478
        %s2495 = scalar_lea.vmem [#allocation1], 48
        %2496 = vst [vmem:[%s2495] ss:$2 sm:$0xff] %v2479
        %v2497 = vld.sshfl [vmem:[#allocation1] sm:$0xff pattern:$0x75316420]
        %v2498 = vld.sshfl [vmem:[#allocation1 + $0x8] sm:$0xff pattern:$0x75316420]
        %v2499 = vld.sshfl [vmem:[#allocation1 + $0x10] sm:$0xff pattern:$0x75316420]
        %v2500 = vld.sshfl [vmem:[#allocation1 + $0x18] sm:$0xff pattern:$0x75316420]
        %v2501 = vld.sshfl [vmem:[#allocation1 + $0x20] sm:$0xff pattern:$0x75316420]
        %v2502 = vld.sshfl [vmem:[#allocation1 + $0x28] sm:$0xff pattern:$0x75316420]
        %v2503 = vld.sshfl [vmem:[#allocation1 + $0x30] sm:$0xff pattern:$0x75316420]
        %v2504 = vld.sshfl [vmem:[#allocation1 + $0x38] sm:$0xff pattern:$0x75316420]
        %2505 = vst [vmem:[#allocation1] ss:$2 sm:$0xff] %v2480
        %2506 = vst [vmem:[%s2491] ss:$2 sm:$0xff] %v2481
        %2507 = vst [vmem:[%s2493] ss:$2 sm:$0xff] %v2482
        %v2508 = vld.sshfl [vmem:[#allocation1] sm:$0xff pattern:$0x75316420]
        %v2509 = vld.sshfl [vmem:[#allocation1 + $0x8] sm:$0xff pattern:$0x75316420]
        %v2510 = vld.sshfl [vmem:[#allocation1 + $0x10] sm:$0xff pattern:$0x75316420]
        %v2511 = vld.sshfl [vmem:[#allocation1 + $0x18] sm:$0xff pattern:$0x75316420]
        %v2512 = vld.sshfl [vmem:[#allocation1 + $0x20] sm:$0xff pattern:$0x75316420]
        %2513 = vrot.lane.b32.xlu0 %v2497, 111
        %v2514 = vpop.permute.xlu0 %2513
        %2515 = vrot.lane.b32.xlu0 %v2498, 111
        %v2516 = vpop.permute.xlu0 %2515
        %2517 = vrot.lane.b32.xlu0 %v2499, 111
        %v2518 = vpop.permute.xlu0 %2517
        %2519 = vrot.lane.b32.xlu0 %v2500, 111
        %v2520 = vpop.permute.xlu0 %2519
        %2521 = vrot.lane.b32.xlu0 %v2501, 111
        %v2522 = vpop.permute.xlu0 %2521
        %2523 = vrot.lane.b32.xlu0 %v2502, 111
        %v2524 = vpop.permute.xlu0 %2523
        %2525 = vrot.lane.b32.xlu0 %v2503, 111
        %v2526 = vpop.permute.xlu0 %2525
        %2527 = vrot.lane.b32.xlu0 %v2504, 111
        %v2528 = vpop.permute.xlu0 %2527
        %2529 = vrot.lane.b32.xlu0 %v2508, 111
        %v2530 = vpop.permute.xlu0 %2529
        %2531 = vrot.lane.b32.xlu0 %v2509, 111
        %v2532 = vpop.permute.xlu0 %2531
        %2533 = vrot.lane.b32.xlu0 %v2510, 111
        %v2534 = vpop.permute.xlu0 %2533
        %2535 = vrot.lane.b32.xlu0 %v2511, 111
        %v2536 = vpop.permute.xlu0 %2535
        %2537 = vrot.lane.b32.xlu0 %v2512, 111
        %v2538 = vpop.permute.xlu0 %2537
        %v2539 = vsel %vm1622, %v2514, %v2516
        %v2540 = vsel %vm1622, %v2516, %v2518
        %v2541 = vsel %vm1622, %v2518, %v2520
        %v2542 = vsel %vm1622, %v2520, %v2522
        %v2543 = vsel %vm1622, %v2522, %v2524
        %v2544 = vsel %vm1622, %v2524, %v2526
        %v2545 = vsel %vm1622, %v2526, %v2528
        %v2546 = vsel %vm1622, %v2528, %v2530
        %v2547 = vsel %vm1622, %v2530, %v2532
        %v2548 = vsel %vm1622, %v2532, %v2534
        %v2549 = vsel %vm1622, %v2534, %v2536
        %v2550 = vsel %vm1622, %v2536, %v2538
        %2563 = vst [vmem:[#allocation3 + $0x120] sm:$0xf] %v2539
        %2564 = vst [vmem:[#allocation3 + $0x128] sm:$0xf] %v2540
        %2565 = vst [vmem:[#allocation3 + $0x130] sm:$0xf] %v2541
        %2566 = vst [vmem:[#allocation3 + $0x138] sm:$0xf] %v2542
        %2567 = vst [vmem:[#allocation3 + $0x140] sm:$0xf] %v2543
        %2568 = vst [vmem:[#allocation3 + $0x148] sm:$0xf] %v2544
        %2569 = vst [vmem:[#allocation3 + $0x150] sm:$0xf] %v2545
        %2570 = vst [vmem:[#allocation3 + $0x158] sm:$0xf] %v2546
        %2571 = vst [vmem:[#allocation3 + $0x160] sm:$0xf] %v2547
        %2572 = vst [vmem:[#allocation3 + $0x168] sm:$0xf] %v2548
        %2573 = vst [vmem:[#allocation3 + $0x170] sm:$0xf] %v2549
        %2574 = vst [vmem:[#allocation3 + $0x178] sm:$0xf] %v2550
        %v2575 = vld [vmem:[#allocation2 + $0x10] sm:$0xff]
        %v2576 = vld [vmem:[#allocation2 + $0x18] sm:$0xff]
        %v2577 = vld [vmem:[#allocation2 + $0x20] sm:$0xff]
        %v2578 = vld [vmem:[#allocation2 + $0x28] sm:$0xff]
        %v2579 = vld [vmem:[#allocation2 + $0x30] sm:$0xff]
        %v2580 = vld [vmem:[#allocation2 + $0x38] sm:$0xff]
        %v2581 = vld [vmem:[#allocation2 + $0x40] sm:$0xf]
        %s2589 = scalar_lea.vmem [#allocation1], 1
        %2590 = vst [vmem:[%s2589] ss:$2 sm:$0xff] %v2575
        %s2591 = scalar_lea.vmem [#allocation1], 17
        %2592 = vst [vmem:[%s2591] ss:$2 sm:$0xff] %v2576
        %s2593 = scalar_lea.vmem [#allocation1], 33
        %2594 = vst [vmem:[%s2593] ss:$2 sm:$0xff] %v2577
        %s2595 = scalar_lea.vmem [#allocation1], 49
        %2596 = vst [vmem:[%s2595] ss:$2 sm:$0xff] %v2578
        %v2597 = vld.sshfl [vmem:[#allocation1] sm:$0xff pattern:$0x75316420]
        %v2598 = vld.sshfl [vmem:[#allocation1 + $0x8] sm:$0xff pattern:$0x75316420]
        %v2599 = vld.sshfl [vmem:[#allocation1 + $0x10] sm:$0xff pattern:$0x75316420]
        %v2600 = vld.sshfl [vmem:[#allocation1 + $0x18] sm:$0xff pattern:$0x75316420]
        %v2601 = vld.sshfl [vmem:[#allocation1 + $0x20] sm:$0xff pattern:$0x75316420]
        %v2602 = vld.sshfl [vmem:[#allocation1 + $0x28] sm:$0xff pattern:$0x75316420]
        %v2603 = vld.sshfl [vmem:[#allocation1 + $0x30] sm:$0xff pattern:$0x75316420]
        %v2604 = vld.sshfl [vmem:[#allocation1 + $0x38] sm:$0xff pattern:$0x75316420]
        %2605 = vst [vmem:[%s2589] ss:$2 sm:$0xff] %v2579
        %2606 = vst [vmem:[%s2591] ss:$2 sm:$0xff] %v2580
        %2607 = vst [vmem:[%s2593] ss:$2 sm:$0xff] %v2581
        %v2608 = vld.sshfl [vmem:[#allocation1] sm:$0xff pattern:$0x75316420]
        %v2609 = vld.sshfl [vmem:[#allocation1 + $0x8] sm:$0xff pattern:$0x75316420]
        %v2610 = vld.sshfl [vmem:[#allocation1 + $0x10] sm:$0xff pattern:$0x75316420]
        %v2611 = vld.sshfl [vmem:[#allocation1 + $0x18] sm:$0xff pattern:$0x75316420]
        %v2612 = vld.sshfl [vmem:[#allocation1 + $0x20] sm:$0xff pattern:$0x75316420]
        %2613 = vrot.lane.b32.xlu0 %v2597, 110
        %v2614 = vpop.permute.xlu0 %2613
        %2615 = vrot.lane.b32.xlu0 %v2598, 110
        %v2616 = vpop.permute.xlu0 %2615
        %2617 = vrot.lane.b32.xlu0 %v2599, 110
        %v2618 = vpop.permute.xlu0 %2617
        %2619 = vrot.lane.b32.xlu0 %v2600, 110
        %v2620 = vpop.permute.xlu0 %2619
        %2621 = vrot.lane.b32.xlu0 %v2601, 110
        %v2622 = vpop.permute.xlu0 %2621
        %2623 = vrot.lane.b32.xlu0 %v2602, 110
        %v2624 = vpop.permute.xlu0 %2623
        %2625 = vrot.lane.b32.xlu0 %v2603, 110
        %v2626 = vpop.permute.xlu0 %2625
        %2627 = vrot.lane.b32.xlu0 %v2604, 110
        %v2628 = vpop.permute.xlu0 %2627
        %2629 = vrot.lane.b32.xlu0 %v2608, 110
        %v2630 = vpop.permute.xlu0 %2629
        %2631 = vrot.lane.b32.xlu0 %v2609, 110
        %v2632 = vpop.permute.xlu0 %2631
        %2633 = vrot.lane.b32.xlu0 %v2610, 110
        %v2634 = vpop.permute.xlu0 %2633
        %2635 = vrot.lane.b32.xlu0 %v2611, 110
        %v2636 = vpop.permute.xlu0 %2635
        %2637 = vrot.lane.b32.xlu0 %v2612, 110
        %v2638 = vpop.permute.xlu0 %2637
        %v2639 = vsel %vm1723, %v2614, %v2616
        %v2640 = vsel %vm1723, %v2616, %v2618
        %v2641 = vsel %vm1723, %v2618, %v2620
        %v2642 = vsel %vm1723, %v2620, %v2622
        %v2643 = vsel %vm1723, %v2622, %v2624
        %v2644 = vsel %vm1723, %v2624, %v2626
        %v2645 = vsel %vm1723, %v2626, %v2628
        %v2646 = vsel %vm1723, %v2628, %v2630
        %v2647 = vsel %vm1723, %v2630, %v2632
        %v2648 = vsel %vm1723, %v2632, %v2634
        %v2649 = vsel %vm1723, %v2634, %v2636
        %v2650 = vsel %vm1723, %v2636, %v2638
        %2663 = vst [vmem:[#allocation3 + $0x120] sm:$0xf0] %v2639
        %2664 = vst [vmem:[#allocation3 + $0x128] sm:$0xf0] %v2640
        %2665 = vst [vmem:[#allocation3 + $0x130] sm:$0xf0] %v2641
        %2666 = vst [vmem:[#allocation3 + $0x138] sm:$0xf0] %v2642
        %2667 = vst [vmem:[#allocation3 + $0x140] sm:$0xf0] %v2643
        %2668 = vst [vmem:[#allocation3 + $0x148] sm:$0xf0] %v2644
        %2669 = vst [vmem:[#allocation3 + $0x150] sm:$0xf0] %v2645
        %2670 = vst [vmem:[#allocation3 + $0x158] sm:$0xf0] %v2646
        %2671 = vst [vmem:[#allocation3 + $0x160] sm:$0xf0] %v2647
        %2672 = vst [vmem:[#allocation3 + $0x168] sm:$0xf0] %v2648
        %2673 = vst [vmem:[#allocation3 + $0x170] sm:$0xf0] %v2649
        %2674 = vst [vmem:[#allocation3 + $0x178] sm:$0xf0] %v2650
        %v2675 = vld [vmem:[#allocation2 + $0x10] sm:$0xff]
        %v2676 = vld [vmem:[#allocation2 + $0x18] sm:$0xff]
        %v2677 = vld [vmem:[#allocation2 + $0x20] sm:$0xff]
        %v2678 = vld [vmem:[#allocation2 + $0x28] sm:$0xff]
        %v2679 = vld [vmem:[#allocation2 + $0x30] sm:$0xff]
        %v2680 = vld [vmem:[#allocation2 + $0x38] sm:$0xff]
        %v2681 = vld [vmem:[#allocation2 + $0x40] sm:$0xf]
        %2689 = vst [vmem:[#allocation1] ss:$2 sm:$0xff] %v2675
        %s2690 = scalar_lea.vmem [#allocation1], 16
        %2691 = vst [vmem:[%s2690] ss:$2 sm:$0xff] %v2676
        %s2692 = scalar_lea.vmem [#allocation1], 32
        %2693 = vst [vmem:[%s2692] ss:$2 sm:$0xff] %v2677
        %s2694 = scalar_lea.vmem [#allocation1], 48
        %2695 = vst [vmem:[%s2694] ss:$2 sm:$0xff] %v2678
        %v2696 = vld.sshfl [vmem:[#allocation1] sm:$0xff pattern:$0x75316420]
        %v2697 = vld.sshfl [vmem:[#allocation1 + $0x8] sm:$0xff pattern:$0x75316420]
        %v2698 = vld.sshfl [vmem:[#allocation1 + $0x10] sm:$0xff pattern:$0x75316420]
        %v2699 = vld.sshfl [vmem:[#allocation1 + $0x18] sm:$0xff pattern:$0x75316420]
        %v2700 = vld.sshfl [vmem:[#allocation1 + $0x20] sm:$0xff pattern:$0x75316420]
        %v2701 = vld.sshfl [vmem:[#allocation1 + $0x28] sm:$0xff pattern:$0x75316420]
        %v2702 = vld.sshfl [vmem:[#allocation1 + $0x30] sm:$0xff pattern:$0x75316420]
        %v2703 = vld.sshfl [vmem:[#allocation1 + $0x38] sm:$0xff pattern:$0x75316420]
        %2704 = vst [vmem:[#allocation1] ss:$2 sm:$0xff] %v2679
        %2705 = vst [vmem:[%s2690] ss:$2 sm:$0xff] %v2680
        %2706 = vst [vmem:[%s2692] ss:$2 sm:$0xff] %v2681
        %v2707 = vld.sshfl [vmem:[#allocation1] sm:$0xff pattern:$0x75316420]
        %v2708 = vld.sshfl [vmem:[#allocation1 + $0x8] sm:$0xff pattern:$0x75316420]
        %v2709 = vld.sshfl [vmem:[#allocation1 + $0x10] sm:$0xff pattern:$0x75316420]
        %v2710 = vld.sshfl [vmem:[#allocation1 + $0x18] sm:$0xff pattern:$0x75316420]
        %v2711 = vld.sshfl [vmem:[#allocation1 + $0x20] sm:$0xff pattern:$0x75316420]
        %2712 = vrot.lane.b32.xlu0 %v2696, 109
        %v2713 = vpop.permute.xlu0 %2712
        %2714 = vrot.lane.b32.xlu0 %v2697, 109
        %v2715 = vpop.permute.xlu0 %2714
        %2716 = vrot.lane.b32.xlu0 %v2698, 109
        %v2717 = vpop.permute.xlu0 %2716
        %2718 = vrot.lane.b32.xlu0 %v2699, 109
        %v2719 = vpop.permute.xlu0 %2718
        %2720 = vrot.lane.b32.xlu0 %v2700, 109
        %v2721 = vpop.permute.xlu0 %2720
        %2722 = vrot.lane.b32.xlu0 %v2701, 109
        %v2723 = vpop.permute.xlu0 %2722
        %2724 = vrot.lane.b32.xlu0 %v2702, 109
        %v2725 = vpop.permute.xlu0 %2724
        %2726 = vrot.lane.b32.xlu0 %v2703, 109
        %v2727 = vpop.permute.xlu0 %2726
        %2728 = vrot.lane.b32.xlu0 %v2707, 109
        %v2729 = vpop.permute.xlu0 %2728
        %2730 = vrot.lane.b32.xlu0 %v2708, 109
        %v2731 = vpop.permute.xlu0 %2730
        %2732 = vrot.lane.b32.xlu0 %v2709, 109
        %v2733 = vpop.permute.xlu0 %2732
        %2734 = vrot.lane.b32.xlu0 %v2710, 109
        %v2735 = vpop.permute.xlu0 %2734
        %2736 = vrot.lane.b32.xlu0 %v2711, 109
        %v2737 = vpop.permute.xlu0 %2736
        %v2738 = vsel %vm1823, %v2713, %v2715
        %v2739 = vsel %vm1823, %v2715, %v2717
        %v2740 = vsel %vm1823, %v2717, %v2719
        %v2741 = vsel %vm1823, %v2719, %v2721
        %v2742 = vsel %vm1823, %v2721, %v2723
        %v2743 = vsel %vm1823, %v2723, %v2725
        %v2744 = vsel %vm1823, %v2725, %v2727
        %v2745 = vsel %vm1823, %v2727, %v2729
        %v2746 = vsel %vm1823, %v2729, %v2731
        %v2747 = vsel %vm1823, %v2731, %v2733
        %v2748 = vsel %vm1823, %v2733, %v2735
        %v2749 = vsel %vm1823, %v2735, %v2737
        %2762 = vst [vmem:[#allocation3 + $0x180] sm:$0xf] %v2738
        %2763 = vst [vmem:[#allocation3 + $0x188] sm:$0xf] %v2739
        %2764 = vst [vmem:[#allocation3 + $0x190] sm:$0xf] %v2740
        %2765 = vst [vmem:[#allocation3 + $0x198] sm:$0xf] %v2741
        %2766 = vst [vmem:[#allocation3 + $0x1a0] sm:$0xf] %v2742
        %2767 = vst [vmem:[#allocation3 + $0x1a8] sm:$0xf] %v2743
        %2768 = vst [vmem:[#allocation3 + $0x1b0] sm:$0xf] %v2744
        %2769 = vst [vmem:[#allocation3 + $0x1b8] sm:$0xf] %v2745
        %2770 = vst [vmem:[#allocation3 + $0x1c0] sm:$0xf] %v2746
        %2771 = vst [vmem:[#allocation3 + $0x1c8] sm:$0xf] %v2747
        %2772 = vst [vmem:[#allocation3 + $0x1d0] sm:$0xf] %v2748
        %2773 = vst [vmem:[#allocation3 + $0x1d8] sm:$0xf] %v2749
        %s2774 = scalar_lea.vmem %s6, 4
        %v2775 = vld [vmem:[%s2774] sm:$0xf]
        %v2776 = vld [vmem:[#allocation3] sm:$0xff]
        %v2777 = vld [vmem:[#allocation3 + $0x8] sm:$0xff]
        %v2778 = vld [vmem:[#allocation3 + $0x10] sm:$0xff]
        %v2779 = vld [vmem:[#allocation3 + $0x18] sm:$0xff]
        %v2780 = vld [vmem:[#allocation3 + $0x20] sm:$0xff]
        %v2781 = vld [vmem:[#allocation3 + $0x28] sm:$0xff]
        %v2782 = vld [vmem:[#allocation3 + $0x30] sm:$0xff]
        %v2783 = vld [vmem:[#allocation3 + $0x38] sm:$0xff]
        %v2784 = vld [vmem:[#allocation3 + $0x40] sm:$0xff]
        %v2785 = vld [vmem:[#allocation3 + $0x48] sm:$0xff]
        %v2786 = vld [vmem:[#allocation3 + $0x50] sm:$0xff]
        %v2787 = vld [vmem:[#allocation3 + $0x58] sm:$0xff]
        %v2788 = vld [vmem:[#allocation3 + $0x60] sm:$0xff]
        %v2789 = vld [vmem:[#allocation3 + $0x68] sm:$0xff]
        %v2790 = vld [vmem:[#allocation3 + $0x70] sm:$0xff]
        %v2791 = vld [vmem:[#allocation3 + $0x78] sm:$0xff]
        %v2792 = vld [vmem:[#allocation3 + $0x80] sm:$0xff]
        %v2793 = vld [vmem:[#allocation3 + $0x88] sm:$0xff]
        %v2794 = vld [vmem:[#allocation3 + $0x90] sm:$0xff]
        %v2795 = vld [vmem:[#allocation3 + $0x98] sm:$0xff]
        %v2796 = vld [vmem:[#allocation3 + $0xa0] sm:$0xff]
        %v2797 = vld [vmem:[#allocation3 + $0xa8] sm:$0xff]
        %v2798 = vld [vmem:[#allocation3 + $0xb0] sm:$0xff]
        %v2799 = vld [vmem:[#allocation3 + $0xb8] sm:$0xff]
        %v2800 = vld [vmem:[#allocation3 + $0xc0] sm:$0xff]
        %v2801 = vld [vmem:[#allocation3 + $0xc8] sm:$0xff]
        %v2802 = vld [vmem:[#allocation3 + $0xd0] sm:$0xff]
        %v2803 = vld [vmem:[#allocation3 + $0xd8] sm:$0xff]
        %v2804 = vld [vmem:[#allocation3 + $0xe0] sm:$0xff]
        %v2805 = vld [vmem:[#allocation3 + $0xe8] sm:$0xff]
        %v2806 = vld [vmem:[#allocation3 + $0xf0] sm:$0xff]
        %v2807 = vld [vmem:[#allocation3 + $0xf8] sm:$0xff]
        %v2808 = vld [vmem:[#allocation3 + $0x100] sm:$0xff]
        %v2809 = vld [vmem:[#allocation3 + $0x108] sm:$0xff]
        %v2810 = vld [vmem:[#allocation3 + $0x110] sm:$0xff]
        %v2811 = vld [vmem:[#allocation3 + $0x118] sm:$0xff]
        %v2812 = vld [vmem:[#allocation3 + $0x120] sm:$0xff]
        %v2813 = vld [vmem:[#allocation3 + $0x128] sm:$0xff]
        %v2814 = vld [vmem:[#allocation3 + $0x130] sm:$0xff]
        %v2815 = vld [vmem:[#allocation3 + $0x138] sm:$0xff]
        %v2816 = vld [vmem:[#allocation3 + $0x140] sm:$0xff]
        %v2817 = vld [vmem:[#allocation3 + $0x148] sm:$0xff]
        %v2818 = vld [vmem:[#allocation3 + $0x150] sm:$0xff]
        %v2819 = vld [vmem:[#allocation3 + $0x158] sm:$0xff]
        %v2820 = vld [vmem:[#allocation3 + $0x160] sm:$0xff]
        %v2821 = vld [vmem:[#allocation3 + $0x168] sm:$0xff]
        %v2822 = vld [vmem:[#allocation3 + $0x170] sm:$0xff]
        %v2823 = vld [vmem:[#allocation3 + $0x178] sm:$0xff]
        %v2824 = vld [vmem:[#allocation3 + $0x180] sm:$0xf]
        %v2825 = vld [vmem:[#allocation3 + $0x188] sm:$0xf]
        %v2826 = vld [vmem:[#allocation3 + $0x190] sm:$0xf]
        %v2827 = vld [vmem:[#allocation3 + $0x198] sm:$0xf]
        %v2828 = vld [vmem:[#allocation3 + $0x1a0] sm:$0xf]
        %v2829 = vld [vmem:[#allocation3 + $0x1a8] sm:$0xf]
        %v2830 = vld [vmem:[#allocation3 + $0x1b0] sm:$0xf]
        %v2831 = vld [vmem:[#allocation3 + $0x1b8] sm:$0xf]
        %v2832 = vld [vmem:[#allocation3 + $0x1c0] sm:$0xf]
        %v2833 = vld [vmem:[#allocation3 + $0x1c8] sm:$0xf]
        %v2834 = vld [vmem:[#allocation3 + $0x1d0] sm:$0xf]
        %v2835 = vld [vmem:[#allocation3 + $0x1d8] sm:$0xf]
        %vm2836 = vcmask 293888
        %v2838 = vsel %vm2836, %v2775, 0
        %v2841 = vsel %vm456, %v2824, 0
        %v2844 = vsel %vm456, %v2825, 0
        %v2847 = vsel %vm456, %v2826, 0
        %v2850 = vsel %vm456, %v2827, 0
        %v2853 = vsel %vm456, %v2828, 0
        %v2856 = vsel %vm456, %v2829, 0
        %v2859 = vsel %vm456, %v2830, 0
        %v2862 = vsel %vm456, %v2831, 0
        %v2865 = vsel %vm456, %v2832, 0
        %v2868 = vsel %vm456, %v2833, 0
        %v2871 = vsel %vm456, %v2834, 0
        %v2874 = vsel %vm456, %v2835, 0
        %2876 = vmatpush.msra.mxu0 0.0
        %2877 = vmatpush.msra.mxu0 0.0
        %2878 = vmatpush.msra.mxu0 0.0
        %2879 = vmatpush.msra.mxu0 0.0
        %2880 = vmatpush.msra.mxu0 0.0
        %2881 = vmatpush.msra.mxu0 0.0
        %2882 = vmatpush.msra.mxu0 0.0
        %2883 = vmatpush.msra.mxu0 0.0
        %2884 = vmatpush.msra.mxu0 0.0
        %2885 = vmatpush.msra.mxu0 0.0
        %2886 = vmatpush.msra.mxu0 0.0
        %2887 = vmatpush.msra.mxu0 %v2841
        %2888 = vmatpush.msra.mxu0 %v2812
        %2889 = vmatpush.msra.mxu0 %v2800
        %2890 = vmatpush.msra.mxu0 %v2788
        %2891 = vmatpush.msra.mxu0 %v2776
        %2892 = vmatmul.f32.gmra.mxu0 %v2838
        %v2893 = vpop.f32.mrf.mxu0
        %v2894 = vadd.f32 0.0, %v2893
        %2895 = vdwg.mxu0
        %2896 = vmatpush.msra.mxu0 0.0
        %2897 = vmatpush.msra.mxu0 0.0
        %2898 = vmatpush.msra.mxu0 0.0
        %2899 = vmatpush.msra.mxu0 0.0
        %2900 = vmatpush.msra.mxu0 0.0
        %2901 = vmatpush.msra.mxu0 0.0
        %2902 = vmatpush.msra.mxu0 0.0
        %2903 = vmatpush.msra.mxu0 0.0
        %2904 = vmatpush.msra.mxu0 0.0
        %2905 = vmatpush.msra.mxu0 0.0
        %2906 = vmatpush.msra.mxu0 0.0
        %2907 = vmatpush.msra.mxu0 %v2844
        %2908 = vmatpush.msra.mxu0 %v2813
        %2909 = vmatpush.msra.mxu0 %v2801
        %2910 = vmatpush.msra.mxu0 %v2789
        %2911 = vmatpush.msra.mxu0 %v2777
        %2912 = vmatmul.f32.gmra.mxu0 %v2838
        %v2913 = vpop.f32.mrf.mxu0
        %v2914 = vadd.f32 0.0, %v2913
        %2915 = vdwg.mxu0
        %2916 = vmatpush.msra.mxu0 0.0
        %2917 = vmatpush.msra.mxu0 0.0
        %2918 = vmatpush.msra.mxu0 0.0
        %2919 = vmatpush.msra.mxu0 0.0
        %2920 = vmatpush.msra.mxu0 0.0
        %2921 = vmatpush.msra.mxu0 0.0
        %2922 = vmatpush.msra.mxu0 0.0
        %2923 = vmatpush.msra.mxu0 0.0
        %2924 = vmatpush.msra.mxu0 0.0
        %2925 = vmatpush.msra.mxu0 0.0
        %2926 = vmatpush.msra.mxu0 0.0
        %2927 = vmatpush.msra.mxu0 %v2847
        %2928 = vmatpush.msra.mxu0 %v2814
        %2929 = vmatpush.msra.mxu0 %v2802
        %2930 = vmatpush.msra.mxu0 %v2790
        %2931 = vmatpush.msra.mxu0 %v2778
        %2932 = vmatmul.f32.gmra.mxu0 %v2838
        %v2933 = vpop.f32.mrf.mxu0
        %v2934 = vadd.f32 0.0, %v2933
        %2935 = vdwg.mxu0
        %2936 = vmatpush.msra.mxu0 0.0
        %2937 = vmatpush.msra.mxu0 0.0
        %2938 = vmatpush.msra.mxu0 0.0
        %2939 = vmatpush.msra.mxu0 0.0
        %2940 = vmatpush.msra.mxu0 0.0
        %2941 = vmatpush.msra.mxu0 0.0
        %2942 = vmatpush.msra.mxu0 0.0
        %2943 = vmatpush.msra.mxu0 0.0
        %2944 = vmatpush.msra.mxu0 0.0
        %2945 = vmatpush.msra.mxu0 0.0
        %2946 = vmatpush.msra.mxu0 0.0
        %2947 = vmatpush.msra.mxu0 %v2850
        %2948 = vmatpush.msra.mxu0 %v2815
        %2949 = vmatpush.msra.mxu0 %v2803
        %2950 = vmatpush.msra.mxu0 %v2791
        %2951 = vmatpush.msra.mxu0 %v2779
        %2952 = vmatmul.f32.gmra.mxu0 %v2838
        %v2953 = vpop.f32.mrf.mxu0
        %v2954 = vadd.f32 0.0, %v2953
        %2955 = vdwg.mxu0
        %2956 = vmatpush.msra.mxu0 0.0
        %2957 = vmatpush.msra.mxu0 0.0
        %2958 = vmatpush.msra.mxu0 0.0
        %2959 = vmatpush.msra.mxu0 0.0
        %2960 = vmatpush.msra.mxu0 0.0
        %2961 = vmatpush.msra.mxu0 0.0
        %2962 = vmatpush.msra.mxu0 0.0
        %2963 = vmatpush.msra.mxu0 0.0
        %2964 = vmatpush.msra.mxu0 0.0
        %2965 = vmatpush.msra.mxu0 0.0
        %2966 = vmatpush.msra.mxu0 0.0
        %2967 = vmatpush.msra.mxu0 %v2853
        %2968 = vmatpush.msra.mxu0 %v2816
        %2969 = vmatpush.msra.mxu0 %v2804
        %2970 = vmatpush.msra.mxu0 %v2792
        %2971 = vmatpush.msra.mxu0 %v2780
        %2972 = vmatmul.f32.gmra.mxu0 %v2838
        %v2973 = vpop.f32.mrf.mxu0
        %v2974 = vadd.f32 0.0, %v2973
        %2975 = vdwg.mxu0
        %2976 = vmatpush.msra.mxu0 0.0
        %2977 = vmatpush.msra.mxu0 0.0
        %2978 = vmatpush.msra.mxu0 0.0
        %2979 = vmatpush.msra.mxu0 0.0
        %2980 = vmatpush.msra.mxu0 0.0
        %2981 = vmatpush.msra.mxu0 0.0
        %2982 = vmatpush.msra.mxu0 0.0
        %2983 = vmatpush.msra.mxu0 0.0
        %2984 = vmatpush.msra.mxu0 0.0
        %2985 = vmatpush.msra.mxu0 0.0
        %2986 = vmatpush.msra.mxu0 0.0
        %2987 = vmatpush.msra.mxu0 %v2856
        %2988 = vmatpush.msra.mxu0 %v2817
        %2989 = vmatpush.msra.mxu0 %v2805
        %2990 = vmatpush.msra.mxu0 %v2793
        %2991 = vmatpush.msra.mxu0 %v2781
        %2992 = vmatmul.f32.gmra.mxu0 %v2838
        %v2993 = vpop.f32.mrf.mxu0
        %v2994 = vadd.f32 0.0, %v2993
        %2995 = vdwg.mxu0
        %2996 = vmatpush.msra.mxu0 0.0
        %2997 = vmatpush.msra.mxu0 0.0
        %2998 = vmatpush.msra.mxu0 0.0
        %2999 = vmatpush.msra.mxu0 0.0
        %3000 = vmatpush.msra.mxu0 0.0
        %3001 = vmatpush.msra.mxu0 0.0
        %3002 = vmatpush.msra.mxu0 0.0
        %3003 = vmatpush.msra.mxu0 0.0
        %3004 = vmatpush.msra.mxu0 0.0
        %3005 = vmatpush.msra.mxu0 0.0
        %3006 = vmatpush.msra.mxu0 0.0
        %3007 = vmatpush.msra.mxu0 %v2859
        %3008 = vmatpush.msra.mxu0 %v2818
        %3009 = vmatpush.msra.mxu0 %v2806
        %3010 = vmatpush.msra.mxu0 %v2794
        %3011 = vmatpush.msra.mxu0 %v2782
        %3012 = vmatmul.f32.gmra.mxu0 %v2838
        %v3013 = vpop.f32.mrf.mxu0
        %v3014 = vadd.f32 0.0, %v3013
        %3015 = vdwg.mxu0
        %3016 = vmatpush.msra.mxu0 0.0
        %3017 = vmatpush.msra.mxu0 0.0
        %3018 = vmatpush.msra.mxu0 0.0
        %3019 = vmatpush.msra.mxu0 0.0
        %3020 = vmatpush.msra.mxu0 0.0
        %3021 = vmatpush.msra.mxu0 0.0
        %3022 = vmatpush.msra.mxu0 0.0
        %3023 = vmatpush.msra.mxu0 0.0
        %3024 = vmatpush.msra.mxu0 0.0
        %3025 = vmatpush.msra.mxu0 0.0
        %3026 = vmatpush.msra.mxu0 0.0
        %3027 = vmatpush.msra.mxu0 %v2862
        %3028 = vmatpush.msra.mxu0 %v2819
        %3029 = vmatpush.msra.mxu0 %v2807
        %3030 = vmatpush.msra.mxu0 %v2795
        %3031 = vmatpush.msra.mxu0 %v2783
        %3032 = vmatmul.f32.gmra.mxu0 %v2838
        %v3033 = vpop.f32.mrf.mxu0
        %v3034 = vadd.f32 0.0, %v3033
        %3035 = vdwg.mxu0
        %3036 = vmatpush.msra.mxu0 0.0
        %3037 = vmatpush.msra.mxu0 0.0
        %3038 = vmatpush.msra.mxu0 0.0
        %3039 = vmatpush.msra.mxu0 0.0
        %3040 = vmatpush.msra.mxu0 0.0
        %3041 = vmatpush.msra.mxu0 0.0
        %3042 = vmatpush.msra.mxu0 0.0
        %3043 = vmatpush.msra.mxu0 0.0
        %3044 = vmatpush.msra.mxu0 0.0
        %3045 = vmatpush.msra.mxu0 0.0
        %3046 = vmatpush.msra.mxu0 0.0
        %3047 = vmatpush.msra.mxu0 %v2865
        %3048 = vmatpush.msra.mxu0 %v2820
        %3049 = vmatpush.msra.mxu0 %v2808
        %3050 = vmatpush.msra.mxu0 %v2796
        %3051 = vmatpush.msra.mxu0 %v2784
        %3052 = vmatmul.f32.gmra.mxu0 %v2838
        %v3053 = vpop.f32.mrf.mxu0
        %v3054 = vadd.f32 0.0, %v3053
        %3055 = vdwg.mxu0
        %3056 = vmatpush.msra.mxu0 0.0
        %3057 = vmatpush.msra.mxu0 0.0
        %3058 = vmatpush.msra.mxu0 0.0
        %3059 = vmatpush.msra.mxu0 0.0
        %3060 = vmatpush.msra.mxu0 0.0
        %3061 = vmatpush.msra.mxu0 0.0
        %3062 = vmatpush.msra.mxu0 0.0
        %3063 = vmatpush.msra.mxu0 0.0
        %3064 = vmatpush.msra.mxu0 0.0
        %3065 = vmatpush.msra.mxu0 0.0
        %3066 = vmatpush.msra.mxu0 0.0
        %3067 = vmatpush.msra.mxu0 %v2868
        %3068 = vmatpush.msra.mxu0 %v2821
        %3069 = vmatpush.msra.mxu0 %v2809
        %3070 = vmatpush.msra.mxu0 %v2797
        %3071 = vmatpush.msra.mxu0 %v2785
        %3072 = vmatmul.f32.gmra.mxu0 %v2838
        %v3073 = vpop.f32.mrf.mxu0
        %v3074 = vadd.f32 0.0, %v3073
        %3075 = vdwg.mxu0
        %3076 = vmatpush.msra.mxu0 0.0
        %3077 = vmatpush.msra.mxu0 0.0
        %3078 = vmatpush.msra.mxu0 0.0
        %3079 = vmatpush.msra.mxu0 0.0
        %3080 = vmatpush.msra.mxu0 0.0
        %3081 = vmatpush.msra.mxu0 0.0
        %3082 = vmatpush.msra.mxu0 0.0
        %3083 = vmatpush.msra.mxu0 0.0
        %3084 = vmatpush.msra.mxu0 0.0
        %3085 = vmatpush.msra.mxu0 0.0
        %3086 = vmatpush.msra.mxu0 0.0
        %3087 = vmatpush.msra.mxu0 %v2871
        %3088 = vmatpush.msra.mxu0 %v2822
        %3089 = vmatpush.msra.mxu0 %v2810
        %3090 = vmatpush.msra.mxu0 %v2798
        %3091 = vmatpush.msra.mxu0 %v2786
        %3092 = vmatmul.f32.gmra.mxu0 %v2838
        %v3093 = vpop.f32.mrf.mxu0
        %v3094 = vadd.f32 0.0, %v3093
        %3095 = vdwg.mxu0
        %3096 = vmatpush.msra.mxu0 0.0
        %3097 = vmatpush.msra.mxu0 0.0
        %3098 = vmatpush.msra.mxu0 0.0
        %3099 = vmatpush.msra.mxu0 0.0
        %3100 = vmatpush.msra.mxu0 0.0
        %3101 = vmatpush.msra.mxu0 0.0
        %3102 = vmatpush.msra.mxu0 0.0
        %3103 = vmatpush.msra.mxu0 0.0
        %3104 = vmatpush.msra.mxu0 0.0
        %3105 = vmatpush.msra.mxu0 0.0
        %3106 = vmatpush.msra.mxu0 0.0
        %3107 = vmatpush.msra.mxu0 %v2874
        %3108 = vmatpush.msra.mxu0 %v2823
        %3109 = vmatpush.msra.mxu0 %v2811
        %3110 = vmatpush.msra.mxu0 %v2799
        %3111 = vmatpush.msra.mxu0 %v2787
        %3112 = vmatmul.f32.gmra.mxu0 %v2838
        %v3113 = vpop.f32.mrf.mxu0
        %v3114 = vadd.f32 0.0, %v3113
        %3115 = vdwg.mxu0
        %v3117 = vsel %vm2836, %v1860, 0
        %v3120 = vsel %vm456, %v1909, 0
        %v3123 = vsel %vm456, %v1910, 0
        %v3126 = vsel %vm456, %v1911, 0
        %v3129 = vsel %vm456, %v1912, 0
        %v3132 = vsel %vm456, %v1913, 0
        %v3135 = vsel %vm456, %v1914, 0
        %v3138 = vsel %vm456, %v1915, 0
        %v3141 = vsel %vm456, %v1916, 0
        %v3144 = vsel %vm456, %v1917, 0
        %v3147 = vsel %vm456, %v1918, 0
        %v3150 = vsel %vm456, %v1919, 0
        %v3153 = vsel %vm456, %v1920, 0
        %3155 = vmatpush.msra.mxu0 0.0
        %3156 = vmatpush.msra.mxu0 0.0
        %3157 = vmatpush.msra.mxu0 0.0
        %3158 = vmatpush.msra.mxu0 0.0
        %3159 = vmatpush.msra.mxu0 0.0
        %3160 = vmatpush.msra.mxu0 0.0
        %3161 = vmatpush.msra.mxu0 0.0
        %3162 = vmatpush.msra.mxu0 0.0
        %3163 = vmatpush.msra.mxu0 0.0
        %3164 = vmatpush.msra.mxu0 0.0
        %3165 = vmatpush.msra.mxu0 0.0
        %3166 = vmatpush.msra.mxu0 %v3120
        %3167 = vmatpush.msra.mxu0 %v1897
        %3168 = vmatpush.msra.mxu0 %v1885
        %3169 = vmatpush.msra.mxu0 %v1873
        %3170 = vmatpush.msra.mxu0 %v1861
        %3171 = vmatmul.f32.gmra.mxu0 %v3117
        %v3172 = vpop.f32.mrf.mxu0
        %v3173 = vadd.f32 %v2894, %v3172
        %3174 = vdwg.mxu0
        %3175 = vmatpush.msra.mxu0 0.0
        %3176 = vmatpush.msra.mxu0 0.0
        %3177 = vmatpush.msra.mxu0 0.0
        %3178 = vmatpush.msra.mxu0 0.0
        %3179 = vmatpush.msra.mxu0 0.0
        %3180 = vmatpush.msra.mxu0 0.0
        %3181 = vmatpush.msra.mxu0 0.0
        %3182 = vmatpush.msra.mxu0 0.0
        %3183 = vmatpush.msra.mxu0 0.0
        %3184 = vmatpush.msra.mxu0 0.0
        %3185 = vmatpush.msra.mxu0 0.0
        %3186 = vmatpush.msra.mxu0 %v3123
        %3187 = vmatpush.msra.mxu0 %v1898
        %3188 = vmatpush.msra.mxu0 %v1886
        %3189 = vmatpush.msra.mxu0 %v1874
        %3190 = vmatpush.msra.mxu0 %v1862
        %3191 = vmatmul.f32.gmra.mxu0 %v3117
        %v3192 = vpop.f32.mrf.mxu0
        %v3193 = vadd.f32 %v2914, %v3192
        %3194 = vdwg.mxu0
        %3195 = vmatpush.msra.mxu0 0.0
        %3196 = vmatpush.msra.mxu0 0.0
        %3197 = vmatpush.msra.mxu0 0.0
        %3198 = vmatpush.msra.mxu0 0.0
        %3199 = vmatpush.msra.mxu0 0.0
        %3200 = vmatpush.msra.mxu0 0.0
        %3201 = vmatpush.msra.mxu0 0.0
        %3202 = vmatpush.msra.mxu0 0.0
        %3203 = vmatpush.msra.mxu0 0.0
        %3204 = vmatpush.msra.mxu0 0.0
        %3205 = vmatpush.msra.mxu0 0.0
        %3206 = vmatpush.msra.mxu0 %v3126
        %3207 = vmatpush.msra.mxu0 %v1899
        %3208 = vmatpush.msra.mxu0 %v1887
        %3209 = vmatpush.msra.mxu0 %v1875
        %3210 = vmatpush.msra.mxu0 %v1863
        %3211 = vmatmul.f32.gmra.mxu0 %v3117
        %v3212 = vpop.f32.mrf.mxu0
        %v3213 = vadd.f32 %v2934, %v3212
        %3214 = vdwg.mxu0
        %3215 = vmatpush.msra.mxu0 0.0
        %3216 = vmatpush.msra.mxu0 0.0
        %3217 = vmatpush.msra.mxu0 0.0
        %3218 = vmatpush.msra.mxu0 0.0
        %3219 = vmatpush.msra.mxu0 0.0
        %3220 = vmatpush.msra.mxu0 0.0
        %3221 = vmatpush.msra.mxu0 0.0
        %3222 = vmatpush.msra.mxu0 0.0
        %3223 = vmatpush.msra.mxu0 0.0
        %3224 = vmatpush.msra.mxu0 0.0
        %3225 = vmatpush.msra.mxu0 0.0
        %3226 = vmatpush.msra.mxu0 %v3129
        %3227 = vmatpush.msra.mxu0 %v1900
        %3228 = vmatpush.msra.mxu0 %v1888
        %3229 = vmatpush.msra.mxu0 %v1876
        %3230 = vmatpush.msra.mxu0 %v1864
        %3231 = vmatmul.f32.gmra.mxu0 %v3117
        %v3232 = vpop.f32.mrf.mxu0
        %v3233 = vadd.f32 %v2954, %v3232
        %3234 = vdwg.mxu0
        %3235 = vmatpush.msra.mxu0 0.0
        %3236 = vmatpush.msra.mxu0 0.0
        %3237 = vmatpush.msra.mxu0 0.0
        %3238 = vmatpush.msra.mxu0 0.0
        %3239 = vmatpush.msra.mxu0 0.0
        %3240 = vmatpush.msra.mxu0 0.0
        %3241 = vmatpush.msra.mxu0 0.0
        %3242 = vmatpush.msra.mxu0 0.0
        %3243 = vmatpush.msra.mxu0 0.0
        %3244 = vmatpush.msra.mxu0 0.0
        %3245 = vmatpush.msra.mxu0 0.0
        %3246 = vmatpush.msra.mxu0 %v3132
        %3247 = vmatpush.msra.mxu0 %v1901
        %3248 = vmatpush.msra.mxu0 %v1889
        %3249 = vmatpush.msra.mxu0 %v1877
        %3250 = vmatpush.msra.mxu0 %v1865
        %3251 = vmatmul.f32.gmra.mxu0 %v3117
        %v3252 = vpop.f32.mrf.mxu0
        %v3253 = vadd.f32 %v2974, %v3252
        %3254 = vdwg.mxu0
        %3255 = vmatpush.msra.mxu0 0.0
        %3256 = vmatpush.msra.mxu0 0.0
        %3257 = vmatpush.msra.mxu0 0.0
        %3258 = vmatpush.msra.mxu0 0.0
        %3259 = vmatpush.msra.mxu0 0.0
        %3260 = vmatpush.msra.mxu0 0.0
        %3261 = vmatpush.msra.mxu0 0.0
        %3262 = vmatpush.msra.mxu0 0.0
        %3263 = vmatpush.msra.mxu0 0.0
        %3264 = vmatpush.msra.mxu0 0.0
        %3265 = vmatpush.msra.mxu0 0.0
        %3266 = vmatpush.msra.mxu0 %v3135
        %3267 = vmatpush.msra.mxu0 %v1902
        %3268 = vmatpush.msra.mxu0 %v1890
        %3269 = vmatpush.msra.mxu0 %v1878
        %3270 = vmatpush.msra.mxu0 %v1866
        %3271 = vmatmul.f32.gmra.mxu0 %v3117
        %v3272 = vpop.f32.mrf.mxu0
        %v3273 = vadd.f32 %v2994, %v3272
        %3274 = vdwg.mxu0
        %3275 = vmatpush.msra.mxu0 0.0
        %3276 = vmatpush.msra.mxu0 0.0
        %3277 = vmatpush.msra.mxu0 0.0
        %3278 = vmatpush.msra.mxu0 0.0
        %3279 = vmatpush.msra.mxu0 0.0
        %3280 = vmatpush.msra.mxu0 0.0
        %3281 = vmatpush.msra.mxu0 0.0
        %3282 = vmatpush.msra.mxu0 0.0
        %3283 = vmatpush.msra.mxu0 0.0
        %3284 = vmatpush.msra.mxu0 0.0
        %3285 = vmatpush.msra.mxu0 0.0
        %3286 = vmatpush.msra.mxu0 %v3138
        %3287 = vmatpush.msra.mxu0 %v1903
        %3288 = vmatpush.msra.mxu0 %v1891
        %3289 = vmatpush.msra.mxu0 %v1879
        %3290 = vmatpush.msra.mxu0 %v1867
        %3291 = vmatmul.f32.gmra.mxu0 %v3117
        %v3292 = vpop.f32.mrf.mxu0
        %v3293 = vadd.f32 %v3014, %v3292
        %3294 = vdwg.mxu0
        %3295 = vmatpush.msra.mxu0 0.0
        %3296 = vmatpush.msra.mxu0 0.0
        %3297 = vmatpush.msra.mxu0 0.0
        %3298 = vmatpush.msra.mxu0 0.0
        %3299 = vmatpush.msra.mxu0 0.0
        %3300 = vmatpush.msra.mxu0 0.0
        %3301 = vmatpush.msra.mxu0 0.0
        %3302 = vmatpush.msra.mxu0 0.0
        %3303 = vmatpush.msra.mxu0 0.0
        %3304 = vmatpush.msra.mxu0 0.0
        %3305 = vmatpush.msra.mxu0 0.0
        %3306 = vmatpush.msra.mxu0 %v3141
        %3307 = vmatpush.msra.mxu0 %v1904
        %3308 = vmatpush.msra.mxu0 %v1892
        %3309 = vmatpush.msra.mxu0 %v1880
        %3310 = vmatpush.msra.mxu0 %v1868
        %3311 = vmatmul.f32.gmra.mxu0 %v3117
        %v3312 = vpop.f32.mrf.mxu0
        %v3313 = vadd.f32 %v3034, %v3312
        %3314 = vdwg.mxu0
        %3315 = vmatpush.msra.mxu0 0.0
        %3316 = vmatpush.msra.mxu0 0.0
        %3317 = vmatpush.msra.mxu0 0.0
        %3318 = vmatpush.msra.mxu0 0.0
        %3319 = vmatpush.msra.mxu0 0.0
        %3320 = vmatpush.msra.mxu0 0.0
        %3321 = vmatpush.msra.mxu0 0.0
        %3322 = vmatpush.msra.mxu0 0.0
        %3323 = vmatpush.msra.mxu0 0.0
        %3324 = vmatpush.msra.mxu0 0.0
        %3325 = vmatpush.msra.mxu0 0.0
        %3326 = vmatpush.msra.mxu0 %v3144
        %3327 = vmatpush.msra.mxu0 %v1905
        %3328 = vmatpush.msra.mxu0 %v1893
        %3329 = vmatpush.msra.mxu0 %v1881
        %3330 = vmatpush.msra.mxu0 %v1869
        %3331 = vmatmul.f32.gmra.mxu0 %v3117
        %v3332 = vpop.f32.mrf.mxu0
        %v3333 = vadd.f32 %v3054, %v3332
        %3334 = vdwg.mxu0
        %3335 = vmatpush.msra.mxu0 0.0
        %3336 = vmatpush.msra.mxu0 0.0
        %3337 = vmatpush.msra.mxu0 0.0
        %3338 = vmatpush.msra.mxu0 0.0
        %3339 = vmatpush.msra.mxu0 0.0
        %3340 = vmatpush.msra.mxu0 0.0
        %3341 = vmatpush.msra.mxu0 0.0
        %3342 = vmatpush.msra.mxu0 0.0
        %3343 = vmatpush.msra.mxu0 0.0
        %3344 = vmatpush.msra.mxu0 0.0
        %3345 = vmatpush.msra.mxu0 0.0
        %3346 = vmatpush.msra.mxu0 %v3147
        %3347 = vmatpush.msra.mxu0 %v1906
        %3348 = vmatpush.msra.mxu0 %v1894
        %3349 = vmatpush.msra.mxu0 %v1882
        %3350 = vmatpush.msra.mxu0 %v1870
        %3351 = vmatmul.f32.gmra.mxu0 %v3117
        %v3352 = vpop.f32.mrf.mxu0
        %v3353 = vadd.f32 %v3074, %v3352
        %3354 = vdwg.mxu0
        %3355 = vmatpush.msra.mxu0 0.0
        %3356 = vmatpush.msra.mxu0 0.0
        %3357 = vmatpush.msra.mxu0 0.0
        %3358 = vmatpush.msra.mxu0 0.0
        %3359 = vmatpush.msra.mxu0 0.0
        %3360 = vmatpush.msra.mxu0 0.0
        %3361 = vmatpush.msra.mxu0 0.0
        %3362 = vmatpush.msra.mxu0 0.0
        %3363 = vmatpush.msra.mxu0 0.0
        %3364 = vmatpush.msra.mxu0 0.0
        %3365 = vmatpush.msra.mxu0 0.0
        %3366 = vmatpush.msra.mxu0 %v3150
        %3367 = vmatpush.msra.mxu0 %v1907
        %3368 = vmatpush.msra.mxu0 %v1895
        %3369 = vmatpush.msra.mxu0 %v1883
        %3370 = vmatpush.msra.mxu0 %v1871
        %3371 = vmatmul.f32.gmra.mxu0 %v3117
        %v3372 = vpop.f32.mrf.mxu0
        %v3373 = vadd.f32 %v3094, %v3372
        %3374 = vdwg.mxu0
        %3375 = vmatpush.msra.mxu0 0.0
        %3376 = vmatpush.msra.mxu0 0.0
        %3377 = vmatpush.msra.mxu0 0.0
        %3378 = vmatpush.msra.mxu0 0.0
        %3379 = vmatpush.msra.mxu0 0.0
        %3380 = vmatpush.msra.mxu0 0.0
        %3381 = vmatpush.msra.mxu0 0.0
        %3382 = vmatpush.msra.mxu0 0.0
        %3383 = vmatpush.msra.mxu0 0.0
        %3384 = vmatpush.msra.mxu0 0.0
        %3385 = vmatpush.msra.mxu0 0.0
        %3386 = vmatpush.msra.mxu0 %v3153
        %3387 = vmatpush.msra.mxu0 %v1908
        %3388 = vmatpush.msra.mxu0 %v1896
        %3389 = vmatpush.msra.mxu0 %v1884
        %3390 = vmatpush.msra.mxu0 %v1872
        %3391 = vmatmul.f32.gmra.mxu0 %v3117
        %v3392 = vpop.f32.mrf.mxu0
        %v3393 = vadd.f32 %v3114, %v3392
        %3394 = vdwg.mxu0
        %v3395 = vld [vmem:[#allocation2 + $0x18] sm:$0xff]
        %v3396 = vld [vmem:[#allocation2 + $0x20] sm:$0xff]
        %v3397 = vld [vmem:[#allocation2 + $0x28] sm:$0xff]
        %v3398 = vld [vmem:[#allocation2 + $0x30] sm:$0xff]
        %v3399 = vld [vmem:[#allocation2 + $0x38] sm:$0xff]
        %v3400 = vld [vmem:[#allocation2 + $0x40] sm:$0xff]
        %v3401 = vld [vmem:[#allocation2 + $0x48] sm:$0xf]
        %3409 = vst [vmem:[#allocation1] ss:$2 sm:$0xff] %v3395
        %s3410 = scalar_lea.vmem [#allocation1], 16
        %3411 = vst [vmem:[%s3410] ss:$2 sm:$0xff] %v3396
        %s3412 = scalar_lea.vmem [#allocation1], 32
        %3413 = vst [vmem:[%s3412] ss:$2 sm:$0xff] %v3397
        %s3414 = scalar_lea.vmem [#allocation1], 48
        %3415 = vst [vmem:[%s3414] ss:$2 sm:$0xff] %v3398
        %v3416 = vld.sshfl [vmem:[#allocation1] sm:$0xff pattern:$0x75316420]
        %v3417 = vld.sshfl [vmem:[#allocation1 + $0x8] sm:$0xff pattern:$0x75316420]
        %v3418 = vld.sshfl [vmem:[#allocation1 + $0x10] sm:$0xff pattern:$0x75316420]
        %v3419 = vld.sshfl [vmem:[#allocation1 + $0x18] sm:$0xff pattern:$0x75316420]
        %v3420 = vld.sshfl [vmem:[#allocation1 + $0x20] sm:$0xff pattern:$0x75316420]
        %v3421 = vld.sshfl [vmem:[#allocation1 + $0x28] sm:$0xff pattern:$0x75316420]
        %v3422 = vld.sshfl [vmem:[#allocation1 + $0x30] sm:$0xff pattern:$0x75316420]
        %v3423 = vld.sshfl [vmem:[#allocation1 + $0x38] sm:$0xff pattern:$0x75316420]
        %3424 = vst [vmem:[#allocation1] ss:$2 sm:$0xff] %v3399
        %3425 = vst [vmem:[%s3410] ss:$2 sm:$0xff] %v3400
        %3426 = vst [vmem:[%s3412] ss:$2 sm:$0xff] %v3401
        %v3427 = vld.sshfl [vmem:[#allocation1] sm:$0xff pattern:$0x75316420]
        %v3428 = vld.sshfl [vmem:[#allocation1 + $0x8] sm:$0xff pattern:$0x75316420]
        %v3429 = vld.sshfl [vmem:[#allocation1 + $0x10] sm:$0xff pattern:$0x75316420]
        %v3430 = vld.sshfl [vmem:[#allocation1 + $0x18] sm:$0xff pattern:$0x75316420]
        %v3431 = vld.sshfl [vmem:[#allocation1 + $0x20] sm:$0xff pattern:$0x75316420]
        %3432 = vrot.lane.b32.xlu0 %v3416, 19
        %v3433 = vpop.permute.xlu0 %3432
        %3434 = vrot.lane.b32.xlu0 %v3417, 19
        %v3435 = vpop.permute.xlu0 %3434
        %3436 = vrot.lane.b32.xlu0 %v3418, 19
        %v3437 = vpop.permute.xlu0 %3436
        %3438 = vrot.lane.b32.xlu0 %v3419, 19
        %v3439 = vpop.permute.xlu0 %3438
        %3440 = vrot.lane.b32.xlu0 %v3420, 19
        %v3441 = vpop.permute.xlu0 %3440
        %3442 = vrot.lane.b32.xlu0 %v3421, 19
        %v3443 = vpop.permute.xlu0 %3442
        %3444 = vrot.lane.b32.xlu0 %v3422, 19
        %v3445 = vpop.permute.xlu0 %3444
        %3446 = vrot.lane.b32.xlu0 %v3423, 19
        %v3447 = vpop.permute.xlu0 %3446
        %3448 = vrot.lane.b32.xlu0 %v3427, 19
        %v3449 = vpop.permute.xlu0 %3448
        %3450 = vrot.lane.b32.xlu0 %v3428, 19
        %v3451 = vpop.permute.xlu0 %3450
        %3452 = vrot.lane.b32.xlu0 %v3429, 19
        %v3453 = vpop.permute.xlu0 %3452
        %3454 = vrot.lane.b32.xlu0 %v3430, 19
        %v3455 = vpop.permute.xlu0 %3454
        %3456 = vrot.lane.b32.xlu0 %v3431, 19
        %v3457 = vpop.permute.xlu0 %3456
        %v3458 = vsel %vm1062, %v3433, %v3435
        %v3459 = vsel %vm1062, %v3435, %v3437
        %v3460 = vsel %vm1062, %v3437, %v3439
        %v3461 = vsel %vm1062, %v3439, %v3441
        %v3462 = vsel %vm1062, %v3441, %v3443
        %v3463 = vsel %vm1062, %v3443, %v3445
        %v3464 = vsel %vm1062, %v3445, %v3447
        %v3465 = vsel %vm1062, %v3447, %v3449
        %v3466 = vsel %vm1062, %v3449, %v3451
        %v3467 = vsel %vm1062, %v3451, %v3453
        %v3468 = vsel %vm1062, %v3453, %v3455
        %v3469 = vsel %vm1062, %v3455, %v3457
        %3482 = vst [vmem:[#allocation3] sm:$0xf] %v3458
        %3483 = vst [vmem:[#allocation3 + $0x8] sm:$0xf] %v3459
        %3484 = vst [vmem:[#allocation3 + $0x10] sm:$0xf] %v3460
        %3485 = vst [vmem:[#allocation3 + $0x18] sm:$0xf] %v3461
        %3486 = vst [vmem:[#allocation3 + $0x20] sm:$0xf] %v3462
        %3487 = vst [vmem:[#allocation3 + $0x28] sm:$0xf] %v3463
        %3488 = vst [vmem:[#allocation3 + $0x30] sm:$0xf] %v3464
        %3489 = vst [vmem:[#allocation3 + $0x38] sm:$0xf] %v3465
        %3490 = vst [vmem:[#allocation3 + $0x40] sm:$0xf] %v3466
        %3491 = vst [vmem:[#allocation3 + $0x48] sm:$0xf] %v3467
        %3492 = vst [vmem:[#allocation3 + $0x50] sm:$0xf] %v3468
        %3493 = vst [vmem:[#allocation3 + $0x58] sm:$0xf] %v3469
        %v3494 = vld [vmem:[#allocation2 + $0x18] sm:$0xff]
        %v3495 = vld [vmem:[#allocation2 + $0x20] sm:$0xff]
        %v3496 = vld [vmem:[#allocation2 + $0x28] sm:$0xff]
        %v3497 = vld [vmem:[#allocation2 + $0x30] sm:$0xff]
        %v3498 = vld [vmem:[#allocation2 + $0x38] sm:$0xff]
        %v3499 = vld [vmem:[#allocation2 + $0x40] sm:$0xff]
        %v3500 = vld [vmem:[#allocation2 + $0x48] sm:$0xf]
        %s3508 = scalar_lea.vmem [#allocation1], 1
        %3509 = vst [vmem:[%s3508] ss:$2 sm:$0xff] %v3494
        %s3510 = scalar_lea.vmem [#allocation1], 17
        %3511 = vst [vmem:[%s3510] ss:$2 sm:$0xff] %v3495
        %s3512 = scalar_lea.vmem [#allocation1], 33
        %3513 = vst [vmem:[%s3512] ss:$2 sm:$0xff] %v3496
        %s3514 = scalar_lea.vmem [#allocation1], 49
        %3515 = vst [vmem:[%s3514] ss:$2 sm:$0xff] %v3497
        %v3516 = vld.sshfl [vmem:[#allocation1] sm:$0xff pattern:$0x75316420]
        %v3517 = vld.sshfl [vmem:[#allocation1 + $0x8] sm:$0xff pattern:$0x75316420]
        %v3518 = vld.sshfl [vmem:[#allocation1 + $0x10] sm:$0xff pattern:$0x75316420]
        %v3519 = vld.sshfl [vmem:[#allocation1 + $0x18] sm:$0xff pattern:$0x75316420]
        %v3520 = vld.sshfl [vmem:[#allocation1 + $0x20] sm:$0xff pattern:$0x75316420]
        %v3521 = vld.sshfl [vmem:[#allocation1 + $0x28] sm:$0xff pattern:$0x75316420]
        %v3522 = vld.sshfl [vmem:[#allocation1 + $0x30] sm:$0xff pattern:$0x75316420]
        %v3523 = vld.sshfl [vmem:[#allocation1 + $0x38] sm:$0xff pattern:$0x75316420]
        %3524 = vst [vmem:[%s3508] ss:$2 sm:$0xff] %v3498
        %3525 = vst [vmem:[%s3510] ss:$2 sm:$0xff] %v3499
        %3526 = vst [vmem:[%s3512] ss:$2 sm:$0xff] %v3500
        %v3527 = vld.sshfl [vmem:[#allocation1] sm:$0xff pattern:$0x75316420]
        %v3528 = vld.sshfl [vmem:[#allocation1 + $0x8] sm:$0xff pattern:$0x75316420]
        %v3529 = vld.sshfl [vmem:[#allocation1 + $0x10] sm:$0xff pattern:$0x75316420]
        %v3530 = vld.sshfl [vmem:[#allocation1 + $0x18] sm:$0xff pattern:$0x75316420]
        %v3531 = vld.sshfl [vmem:[#allocation1 + $0x20] sm:$0xff pattern:$0x75316420]
        %3532 = vrot.lane.b32.xlu0 %v3516, 18
        %v3533 = vpop.permute.xlu0 %3532
        %3534 = vrot.lane.b32.xlu0 %v3517, 18
        %v3535 = vpop.permute.xlu0 %3534
        %3536 = vrot.lane.b32.xlu0 %v3518, 18
        %v3537 = vpop.permute.xlu0 %3536
        %3538 = vrot.lane.b32.xlu0 %v3519, 18
        %v3539 = vpop.permute.xlu0 %3538
        %3540 = vrot.lane.b32.xlu0 %v3520, 18
        %v3541 = vpop.permute.xlu0 %3540
        %3542 = vrot.lane.b32.xlu0 %v3521, 18
        %v3543 = vpop.permute.xlu0 %3542
        %3544 = vrot.lane.b32.xlu0 %v3522, 18
        %v3545 = vpop.permute.xlu0 %3544
        %3546 = vrot.lane.b32.xlu0 %v3523, 18
        %v3547 = vpop.permute.xlu0 %3546
        %3548 = vrot.lane.b32.xlu0 %v3527, 18
        %v3549 = vpop.permute.xlu0 %3548
        %3550 = vrot.lane.b32.xlu0 %v3528, 18
        %v3551 = vpop.permute.xlu0 %3550
        %3552 = vrot.lane.b32.xlu0 %v3529, 18
        %v3553 = vpop.permute.xlu0 %3552
        %3554 = vrot.lane.b32.xlu0 %v3530, 18
        %v3555 = vpop.permute.xlu0 %3554
        %3556 = vrot.lane.b32.xlu0 %v3531, 18
        %v3557 = vpop.permute.xlu0 %3556
        %v3558 = vsel %vm1163, %v3533, %v3535
        %v3559 = vsel %vm1163, %v3535, %v3537
        %v3560 = vsel %vm1163, %v3537, %v3539
        %v3561 = vsel %vm1163, %v3539, %v3541
        %v3562 = vsel %vm1163, %v3541, %v3543
        %v3563 = vsel %vm1163, %v3543, %v3545
        %v3564 = vsel %vm1163, %v3545, %v3547
        %v3565 = vsel %vm1163, %v3547, %v3549
        %v3566 = vsel %vm1163, %v3549, %v3551
        %v3567 = vsel %vm1163, %v3551, %v3553
        %v3568 = vsel %vm1163, %v3553, %v3555
        %v3569 = vsel %vm1163, %v3555, %v3557
        %3582 = vst [vmem:[#allocation3] sm:$0xf0] %v3558
        %3583 = vst [vmem:[#allocation3 + $0x8] sm:$0xf0] %v3559
        %3584 = vst [vmem:[#allocation3 + $0x10] sm:$0xf0] %v3560
        %3585 = vst [vmem:[#allocation3 + $0x18] sm:$0xf0] %v3561
        %3586 = vst [vmem:[#allocation3 + $0x20] sm:$0xf0] %v3562
        %3587 = vst [vmem:[#allocation3 + $0x28] sm:$0xf0] %v3563
        %3588 = vst [vmem:[#allocation3 + $0x30] sm:$0xf0] %v3564
        %3589 = vst [vmem:[#allocation3 + $0x38] sm:$0xf0] %v3565
        %3590 = vst [vmem:[#allocation3 + $0x40] sm:$0xf0] %v3566
        %3591 = vst [vmem:[#allocation3 + $0x48] sm:$0xf0] %v3567
        %3592 = vst [vmem:[#allocation3 + $0x50] sm:$0xf0] %v3568
        %3593 = vst [vmem:[#allocation3 + $0x58] sm:$0xf0] %v3569
        %v3594 = vld [vmem:[#allocation2 + $0x18] sm:$0xff]
        %v3595 = vld [vmem:[#allocation2 + $0x20] sm:$0xff]
        %v3596 = vld [vmem:[#allocation2 + $0x28] sm:$0xff]
        %v3597 = vld [vmem:[#allocation2 + $0x30] sm:$0xff]
        %v3598 = vld [vmem:[#allocation2 + $0x38] sm:$0xff]
        %v3599 = vld [vmem:[#allocation2 + $0x40] sm:$0xff]
        %v3600 = vld [vmem:[#allocation2 + $0x48] sm:$0xf]
        %3608 = vst [vmem:[#allocation1] ss:$2 sm:$0xff] %v3594
        %s3609 = scalar_lea.vmem [#allocation1], 16
        %3610 = vst [vmem:[%s3609] ss:$2 sm:$0xff] %v3595
        %s3611 = scalar_lea.vmem [#allocation1], 32
        %3612 = vst [vmem:[%s3611] ss:$2 sm:$0xff] %v3596
        %s3613 = scalar_lea.vmem [#allocation1], 48
        %3614 = vst [vmem:[%s3613] ss:$2 sm:$0xff] %v3597
        %v3615 = vld.sshfl [vmem:[#allocation1] sm:$0xff pattern:$0x75316420]
        %v3616 = vld.sshfl [vmem:[#allocation1 + $0x8] sm:$0xff pattern:$0x75316420]
        %v3617 = vld.sshfl [vmem:[#allocation1 + $0x10] sm:$0xff pattern:$0x75316420]
        %v3618 = vld.sshfl [vmem:[#allocation1 + $0x18] sm:$0xff pattern:$0x75316420]
        %v3619 = vld.sshfl [vmem:[#allocation1 + $0x20] sm:$0xff pattern:$0x75316420]
        %v3620 = vld.sshfl [vmem:[#allocation1 + $0x28] sm:$0xff pattern:$0x75316420]
        %v3621 = vld.sshfl [vmem:[#allocation1 + $0x30] sm:$0xff pattern:$0x75316420]
        %v3622 = vld.sshfl [vmem:[#allocation1 + $0x38] sm:$0xff pattern:$0x75316420]
        %3623 = vst [vmem:[#allocation1] ss:$2 sm:$0xff] %v3598
        %3624 = vst [vmem:[%s3609] ss:$2 sm:$0xff] %v3599
        %3625 = vst [vmem:[%s3611] ss:$2 sm:$0xff] %v3600
        %v3626 = vld.sshfl [vmem:[#allocation1] sm:$0xff pattern:$0x75316420]
        %v3627 = vld.sshfl [vmem:[#allocation1 + $0x8] sm:$0xff pattern:$0x75316420]
        %v3628 = vld.sshfl [vmem:[#allocation1 + $0x10] sm:$0xff pattern:$0x75316420]
        %v3629 = vld.sshfl [vmem:[#allocation1 + $0x18] sm:$0xff pattern:$0x75316420]
        %v3630 = vld.sshfl [vmem:[#allocation1 + $0x20] sm:$0xff pattern:$0x75316420]
        %3631 = vrot.lane.b32.xlu0 %v3615, 17
        %v3632 = vpop.permute.xlu0 %3631
        %3633 = vrot.lane.b32.xlu0 %v3616, 17
        %v3634 = vpop.permute.xlu0 %3633
        %3635 = vrot.lane.b32.xlu0 %v3617, 17
        %v3636 = vpop.permute.xlu0 %3635
        %3637 = vrot.lane.b32.xlu0 %v3618, 17
        %v3638 = vpop.permute.xlu0 %3637
        %3639 = vrot.lane.b32.xlu0 %v3619, 17
        %v3640 = vpop.permute.xlu0 %3639
        %3641 = vrot.lane.b32.xlu0 %v3620, 17
        %v3642 = vpop.permute.xlu0 %3641
        %3643 = vrot.lane.b32.xlu0 %v3621, 17
        %v3644 = vpop.permute.xlu0 %3643
        %3645 = vrot.lane.b32.xlu0 %v3622, 17
        %v3646 = vpop.permute.xlu0 %3645
        %3647 = vrot.lane.b32.xlu0 %v3626, 17
        %v3648 = vpop.permute.xlu0 %3647
        %3649 = vrot.lane.b32.xlu0 %v3627, 17
        %v3650 = vpop.permute.xlu0 %3649
        %3651 = vrot.lane.b32.xlu0 %v3628, 17
        %v3652 = vpop.permute.xlu0 %3651
        %3653 = vrot.lane.b32.xlu0 %v3629, 17
        %v3654 = vpop.permute.xlu0 %3653
        %3655 = vrot.lane.b32.xlu0 %v3630, 17
        %v3656 = vpop.permute.xlu0 %3655
        %v3657 = vsel %vm1263, %v3632, %v3634
        %v3658 = vsel %vm1263, %v3634, %v3636
        %v3659 = vsel %vm1263, %v3636, %v3638
        %v3660 = vsel %vm1263, %v3638, %v3640
        %v3661 = vsel %vm1263, %v3640, %v3642
        %v3662 = vsel %vm1263, %v3642, %v3644
        %v3663 = vsel %vm1263, %v3644, %v3646
        %v3664 = vsel %vm1263, %v3646, %v3648
        %v3665 = vsel %vm1263, %v3648, %v3650
        %v3666 = vsel %vm1263, %v3650, %v3652
        %v3667 = vsel %vm1263, %v3652, %v3654
        %v3668 = vsel %vm1263, %v3654, %v3656
        %3681 = vst [vmem:[#allocation3 + $0x60] sm:$0xf] %v3657
        %3682 = vst [vmem:[#allocation3 + $0x68] sm:$0xf] %v3658
        %3683 = vst [vmem:[#allocation3 + $0x70] sm:$0xf] %v3659
        %3684 = vst [vmem:[#allocation3 + $0x78] sm:$0xf] %v3660
        %3685 = vst [vmem:[#allocation3 + $0x80] sm:$0xf] %v3661
        %3686 = vst [vmem:[#allocation3 + $0x88] sm:$0xf] %v3662
        %3687 = vst [vmem:[#allocation3 + $0x90] sm:$0xf] %v3663
        %3688 = vst [vmem:[#allocation3 + $0x98] sm:$0xf] %v3664
        %3689 = vst [vmem:[#allocation3 + $0xa0] sm:$0xf] %v3665
        %3690 = vst [vmem:[#allocation3 + $0xa8] sm:$0xf] %v3666
        %3691 = vst [vmem:[#allocation3 + $0xb0] sm:$0xf] %v3667
        %3692 = vst [vmem:[#allocation3 + $0xb8] sm:$0xf] %v3668
        %v3693 = vld [vmem:[#allocation2 + $0x18] sm:$0xff]
        %v3694 = vld [vmem:[#allocation2 + $0x20] sm:$0xff]
        %v3695 = vld [vmem:[#allocation2 + $0x28] sm:$0xff]
        %v3696 = vld [vmem:[#allocation2 + $0x30] sm:$0xff]
        %v3697 = vld [vmem:[#allocation2 + $0x38] sm:$0xff]
        %v3698 = vld [vmem:[#allocation2 + $0x40] sm:$0xff]
        %v3699 = vld [vmem:[#allocation2 + $0x48] sm:$0xf]
        %s3707 = scalar_lea.vmem [#allocation1], 1
        %3708 = vst [vmem:[%s3707] ss:$2 sm:$0xff] %v3693
        %s3709 = scalar_lea.vmem [#allocation1], 17
        %3710 = vst [vmem:[%s3709] ss:$2 sm:$0xff] %v3694
        %s3711 = scalar_lea.vmem [#allocation1], 33
        %3712 = vst [vmem:[%s3711] ss:$2 sm:$0xff] %v3695
        %s3713 = scalar_lea.vmem [#allocation1], 49
        %3714 = vst [vmem:[%s3713] ss:$2 sm:$0xff] %v3696
        %v3715 = vld.sshfl [vmem:[#allocation1] sm:$0xff pattern:$0x75316420]
        %v3716 = vld.sshfl [vmem:[#allocation1 + $0x8] sm:$0xff pattern:$0x75316420]
        %v3717 = vld.sshfl [vmem:[#allocation1 + $0x10] sm:$0xff pattern:$0x75316420]
        %v3718 = vld.sshfl [vmem:[#allocation1 + $0x18] sm:$0xff pattern:$0x75316420]
        %v3719 = vld.sshfl [vmem:[#allocation1 + $0x20] sm:$0xff pattern:$0x75316420]
        %v3720 = vld.sshfl [vmem:[#allocation1 + $0x28] sm:$0xff pattern:$0x75316420]
        %v3721 = vld.sshfl [vmem:[#allocation1 + $0x30] sm:$0xff pattern:$0x75316420]
        %v3722 = vld.sshfl [vmem:[#allocation1 + $0x38] sm:$0xff pattern:$0x75316420]
        %3723 = vst [vmem:[%s3707] ss:$2 sm:$0xff] %v3697
        %3724 = vst [vmem:[%s3709] ss:$2 sm:$0xff] %v3698
        %3725 = vst [vmem:[%s3711] ss:$2 sm:$0xff] %v3699
        %v3726 = vld.sshfl [vmem:[#allocation1] sm:$0xff pattern:$0x75316420]
        %v3727 = vld.sshfl [vmem:[#allocation1 + $0x8] sm:$0xff pattern:$0x75316420]
        %v3728 = vld.sshfl [vmem:[#allocation1 + $0x10] sm:$0xff pattern:$0x75316420]
        %v3729 = vld.sshfl [vmem:[#allocation1 + $0x18] sm:$0xff pattern:$0x75316420]
        %v3730 = vld.sshfl [vmem:[#allocation1 + $0x20] sm:$0xff pattern:$0x75316420]
        %3731 = vrot.lane.b32.xlu0 %v3715, 1
        %v3732 = vpop.permute.xlu0 %3731
        %3733 = vrot.lane.b32.xlu0 %v3716, 1
        %v3734 = vpop.permute.xlu0 %3733
        %3735 = vrot.lane.b32.xlu0 %v3717, 1
        %v3736 = vpop.permute.xlu0 %3735
        %3737 = vrot.lane.b32.xlu0 %v3718, 1
        %v3738 = vpop.permute.xlu0 %3737
        %3739 = vrot.lane.b32.xlu0 %v3719, 1
        %v3740 = vpop.permute.xlu0 %3739
        %3741 = vrot.lane.b32.xlu0 %v3720, 1
        %v3742 = vpop.permute.xlu0 %3741
        %3743 = vrot.lane.b32.xlu0 %v3721, 1
        %v3744 = vpop.permute.xlu0 %3743
        %3745 = vrot.lane.b32.xlu0 %v3722, 1
        %v3746 = vpop.permute.xlu0 %3745
        %3747 = vrot.lane.b32.xlu0 %v3726, 1
        %v3748 = vpop.permute.xlu0 %3747
        %3749 = vrot.lane.b32.xlu0 %v3727, 1
        %v3750 = vpop.permute.xlu0 %3749
        %3751 = vrot.lane.b32.xlu0 %v3728, 1
        %v3752 = vpop.permute.xlu0 %3751
        %3753 = vrot.lane.b32.xlu0 %v3729, 1
        %v3754 = vpop.permute.xlu0 %3753
        %3755 = vrot.lane.b32.xlu0 %v3730, 1
        %v3756 = vpop.permute.xlu0 %3755
        %v3757 = vsel %vm1364, %v3732, %v3734
        %v3758 = vsel %vm1364, %v3734, %v3736
        %v3759 = vsel %vm1364, %v3736, %v3738
        %v3760 = vsel %vm1364, %v3738, %v3740
        %v3761 = vsel %vm1364, %v3740, %v3742
        %v3762 = vsel %vm1364, %v3742, %v3744
        %v3763 = vsel %vm1364, %v3744, %v3746
        %v3764 = vsel %vm1364, %v3746, %v3748
        %v3765 = vsel %vm1364, %v3748, %v3750
        %v3766 = vsel %vm1364, %v3750, %v3752
        %v3767 = vsel %vm1364, %v3752, %v3754
        %v3768 = vsel %vm1364, %v3754, %v3756
        %3781 = vst [vmem:[#allocation3 + $0x60] sm:$0xf0] %v3757
        %3782 = vst [vmem:[#allocation3 + $0x68] sm:$0xf0] %v3758
        %3783 = vst [vmem:[#allocation3 + $0x70] sm:$0xf0] %v3759
        %3784 = vst [vmem:[#allocation3 + $0x78] sm:$0xf0] %v3760
        %3785 = vst [vmem:[#allocation3 + $0x80] sm:$0xf0] %v3761
        %3786 = vst [vmem:[#allocation3 + $0x88] sm:$0xf0] %v3762
        %3787 = vst [vmem:[#allocation3 + $0x90] sm:$0xf0] %v3763
        %3788 = vst [vmem:[#allocation3 + $0x98] sm:$0xf0] %v3764
        %3789 = vst [vmem:[#allocation3 + $0xa0] sm:$0xf0] %v3765
        %3790 = vst [vmem:[#allocation3 + $0xa8] sm:$0xf0] %v3766
        %3791 = vst [vmem:[#allocation3 + $0xb0] sm:$0xf0] %v3767
        %3792 = vst [vmem:[#allocation3 + $0xb8] sm:$0xf0] %v3768
        %v3793 = vld [vmem:[#allocation2 + $0x1c] sm:$0xff]
        %v3794 = vld [vmem:[#allocation2 + $0x24] sm:$0xff]
        %v3795 = vld [vmem:[#allocation2 + $0x2c] sm:$0xff]
        %v3796 = vld [vmem:[#allocation2 + $0x34] sm:$0xff]
        %v3797 = vld [vmem:[#allocation2 + $0x3c] sm:$0xff]
        %v3798 = vld [vmem:[#allocation2 + $0x44] sm:$0xff]
        %3805 = vst [vmem:[#allocation1] ss:$2 sm:$0xff] %v3793
        %s3806 = scalar_lea.vmem [#allocation1], 16
        %3807 = vst [vmem:[%s3806] ss:$2 sm:$0xff] %v3794
        %s3808 = scalar_lea.vmem [#allocation1], 32
        %3809 = vst [vmem:[%s3808] ss:$2 sm:$0xff] %v3795
        %s3810 = scalar_lea.vmem [#allocation1], 48
        %3811 = vst [vmem:[%s3810] ss:$2 sm:$0xff] %v3796
        %v3812 = vld.sshfl [vmem:[#allocation1] sm:$0xff pattern:$0x75316420]
        %v3813 = vld.sshfl [vmem:[#allocation1 + $0x8] sm:$0xff pattern:$0x75316420]
        %v3814 = vld.sshfl [vmem:[#allocation1 + $0x10] sm:$0xff pattern:$0x75316420]
        %v3815 = vld.sshfl [vmem:[#allocation1 + $0x18] sm:$0xff pattern:$0x75316420]
        %v3816 = vld.sshfl [vmem:[#allocation1 + $0x20] sm:$0xff pattern:$0x75316420]
        %v3817 = vld.sshfl [vmem:[#allocation1 + $0x28] sm:$0xff pattern:$0x75316420]
        %v3818 = vld.sshfl [vmem:[#allocation1 + $0x30] sm:$0xff pattern:$0x75316420]
        %v3819 = vld.sshfl [vmem:[#allocation1 + $0x38] sm:$0xff pattern:$0x75316420]
        %3820 = vst [vmem:[#allocation1] ss:$2 sm:$0xff] %v3797
        %3821 = vst [vmem:[%s3806] ss:$2 sm:$0xff] %v3798
        %v3822 = vld.sshfl [vmem:[#allocation1] sm:$0xff pattern:$0x75316420]
        %v3823 = vld.sshfl [vmem:[#allocation1 + $0x8] sm:$0xff pattern:$0x75316420]
        %v3824 = vld.sshfl [vmem:[#allocation1 + $0x10] sm:$0xff pattern:$0x75316420]
        %v3825 = vld.sshfl [vmem:[#allocation1 + $0x18] sm:$0xff pattern:$0x75316420]
        %3838 = vst [vmem:[#allocation3 + $0xc0] sm:$0xf] %v3812
        %3839 = vst [vmem:[#allocation3 + $0xc8] sm:$0xf] %v3813
        %3840 = vst [vmem:[#allocation3 + $0xd0] sm:$0xf] %v3814
        %3841 = vst [vmem:[#allocation3 + $0xd8] sm:$0xf] %v3815
        %3842 = vst [vmem:[#allocation3 + $0xe0] sm:$0xf] %v3816
        %3843 = vst [vmem:[#allocation3 + $0xe8] sm:$0xf] %v3817
        %3844 = vst [vmem:[#allocation3 + $0xf0] sm:$0xf] %v3818
        %3845 = vst [vmem:[#allocation3 + $0xf8] sm:$0xf] %v3819
        %3846 = vst [vmem:[#allocation3 + $0x100] sm:$0xf] %v3822
        %3847 = vst [vmem:[#allocation3 + $0x108] sm:$0xf] %v3823
        %3848 = vst [vmem:[#allocation3 + $0x110] sm:$0xf] %v3824
        %3849 = vst [vmem:[#allocation3 + $0x118] sm:$0xf] %v3825
        %v3850 = vld [vmem:[#allocation2 + $0x1c] sm:$0xff]
        %v3851 = vld [vmem:[#allocation2 + $0x24] sm:$0xff]
        %v3852 = vld [vmem:[#allocation2 + $0x2c] sm:$0xff]
        %v3853 = vld [vmem:[#allocation2 + $0x34] sm:$0xff]
        %v3854 = vld [vmem:[#allocation2 + $0x3c] sm:$0xff]
        %v3855 = vld [vmem:[#allocation2 + $0x44] sm:$0xff]
        %v3856 = vld [vmem:[#allocation2 + $0x4c] sm:$0xf]
        %s3864 = scalar_lea.vmem [#allocation1], 1
        %3865 = vst [vmem:[%s3864] ss:$2 sm:$0xff] %v3850
        %s3866 = scalar_lea.vmem [#allocation1], 17
        %3867 = vst [vmem:[%s3866] ss:$2 sm:$0xff] %v3851
        %s3868 = scalar_lea.vmem [#allocation1], 33
        %3869 = vst [vmem:[%s3868] ss:$2 sm:$0xff] %v3852
        %s3870 = scalar_lea.vmem [#allocation1], 49
        %3871 = vst [vmem:[%s3870] ss:$2 sm:$0xff] %v3853
        %v3872 = vld.sshfl [vmem:[#allocation1] sm:$0xff pattern:$0x75316420]
        %v3873 = vld.sshfl [vmem:[#allocation1 + $0x8] sm:$0xff pattern:$0x75316420]
        %v3874 = vld.sshfl [vmem:[#allocation1 + $0x10] sm:$0xff pattern:$0x75316420]
        %v3875 = vld.sshfl [vmem:[#allocation1 + $0x18] sm:$0xff pattern:$0x75316420]
        %v3876 = vld.sshfl [vmem:[#allocation1 + $0x20] sm:$0xff pattern:$0x75316420]
        %v3877 = vld.sshfl [vmem:[#allocation1 + $0x28] sm:$0xff pattern:$0x75316420]
        %v3878 = vld.sshfl [vmem:[#allocation1 + $0x30] sm:$0xff pattern:$0x75316420]
        %v3879 = vld.sshfl [vmem:[#allocation1 + $0x38] sm:$0xff pattern:$0x75316420]
        %3880 = vst [vmem:[%s3864] ss:$2 sm:$0xff] %v3854
        %3881 = vst [vmem:[%s3866] ss:$2 sm:$0xff] %v3855
        %3882 = vst [vmem:[%s3868] ss:$2 sm:$0xff] %v3856
        %v3883 = vld.sshfl [vmem:[#allocation1] sm:$0xff pattern:$0x75316420]
        %v3884 = vld.sshfl [vmem:[#allocation1 + $0x8] sm:$0xff pattern:$0x75316420]
        %v3885 = vld.sshfl [vmem:[#allocation1 + $0x10] sm:$0xff pattern:$0x75316420]
        %v3886 = vld.sshfl [vmem:[#allocation1 + $0x18] sm:$0xff pattern:$0x75316420]
        %v3887 = vld.sshfl [vmem:[#allocation1 + $0x20] sm:$0xff pattern:$0x75316420]
        %3888 = vrot.lane.b32.xlu0 %v3872, 127
        %v3889 = vpop.permute.xlu0 %3888
        %3890 = vrot.lane.b32.xlu0 %v3873, 127
        %v3891 = vpop.permute.xlu0 %3890
        %3892 = vrot.lane.b32.xlu0 %v3874, 127
        %v3893 = vpop.permute.xlu0 %3892
        %3894 = vrot.lane.b32.xlu0 %v3875, 127
        %v3895 = vpop.permute.xlu0 %3894
        %3896 = vrot.lane.b32.xlu0 %v3876, 127
        %v3897 = vpop.permute.xlu0 %3896
        %3898 = vrot.lane.b32.xlu0 %v3877, 127
        %v3899 = vpop.permute.xlu0 %3898
        %3900 = vrot.lane.b32.xlu0 %v3878, 127
        %v3901 = vpop.permute.xlu0 %3900
        %3902 = vrot.lane.b32.xlu0 %v3879, 127
        %v3903 = vpop.permute.xlu0 %3902
        %3904 = vrot.lane.b32.xlu0 %v3883, 127
        %v3905 = vpop.permute.xlu0 %3904
        %3906 = vrot.lane.b32.xlu0 %v3884, 127
        %v3907 = vpop.permute.xlu0 %3906
        %3908 = vrot.lane.b32.xlu0 %v3885, 127
        %v3909 = vpop.permute.xlu0 %3908
        %3910 = vrot.lane.b32.xlu0 %v3886, 127
        %v3911 = vpop.permute.xlu0 %3910
        %3912 = vrot.lane.b32.xlu0 %v3887, 127
        %v3913 = vpop.permute.xlu0 %3912
        %v3914 = vsel %vm1522, %v3889, %v3891
        %v3915 = vsel %vm1522, %v3891, %v3893
        %v3916 = vsel %vm1522, %v3893, %v3895
        %v3917 = vsel %vm1522, %v3895, %v3897
        %v3918 = vsel %vm1522, %v3897, %v3899
        %v3919 = vsel %vm1522, %v3899, %v3901
        %v3920 = vsel %vm1522, %v3901, %v3903
        %v3921 = vsel %vm1522, %v3903, %v3905
        %v3922 = vsel %vm1522, %v3905, %v3907
        %v3923 = vsel %vm1522, %v3907, %v3909
        %v3924 = vsel %vm1522, %v3909, %v3911
        %v3925 = vsel %vm1522, %v3911, %v3913
        %3938 = vst [vmem:[#allocation3 + $0xc0] sm:$0xf0] %v3914
        %3939 = vst [vmem:[#allocation3 + $0xc8] sm:$0xf0] %v3915
        %3940 = vst [vmem:[#allocation3 + $0xd0] sm:$0xf0] %v3916
        %3941 = vst [vmem:[#allocation3 + $0xd8] sm:$0xf0] %v3917
        %3942 = vst [vmem:[#allocation3 + $0xe0] sm:$0xf0] %v3918
        %3943 = vst [vmem:[#allocation3 + $0xe8] sm:$0xf0] %v3919
        %3944 = vst [vmem:[#allocation3 + $0xf0] sm:$0xf0] %v3920
        %3945 = vst [vmem:[#allocation3 + $0xf8] sm:$0xf0] %v3921
        %3946 = vst [vmem:[#allocation3 + $0x100] sm:$0xf0] %v3922
        %3947 = vst [vmem:[#allocation3 + $0x108] sm:$0xf0] %v3923
        %3948 = vst [vmem:[#allocation3 + $0x110] sm:$0xf0] %v3924
        %3949 = vst [vmem:[#allocation3 + $0x118] sm:$0xf0] %v3925
        %v3950 = vld [vmem:[#allocation2 + $0x1c] sm:$0xff]
        %v3951 = vld [vmem:[#allocation2 + $0x24] sm:$0xff]
        %v3952 = vld [vmem:[#allocation2 + $0x2c] sm:$0xff]
        %v3953 = vld [vmem:[#allocation2 + $0x34] sm:$0xff]
        %v3954 = vld [vmem:[#allocation2 + $0x3c] sm:$0xff]
        %v3955 = vld [vmem:[#allocation2 + $0x44] sm:$0xff]
        %v3956 = vld [vmem:[#allocation2 + $0x4c] sm:$0xf]
        %3964 = vst [vmem:[#allocation1] ss:$2 sm:$0xff] %v3950
        %s3965 = scalar_lea.vmem [#allocation1], 16
        %3966 = vst [vmem:[%s3965] ss:$2 sm:$0xff] %v3951
        %s3967 = scalar_lea.vmem [#allocation1], 32
        %3968 = vst [vmem:[%s3967] ss:$2 sm:$0xff] %v3952
        %s3969 = scalar_lea.vmem [#allocation1], 48
        %3970 = vst [vmem:[%s3969] ss:$2 sm:$0xff] %v3953
        %v3971 = vld.sshfl [vmem:[#allocation1] sm:$0xff pattern:$0x75316420]
        %v3972 = vld.sshfl [vmem:[#allocation1 + $0x8] sm:$0xff pattern:$0x75316420]
        %v3973 = vld.sshfl [vmem:[#allocation1 + $0x10] sm:$0xff pattern:$0x75316420]
        %v3974 = vld.sshfl [vmem:[#allocation1 + $0x18] sm:$0xff pattern:$0x75316420]
        %v3975 = vld.sshfl [vmem:[#allocation1 + $0x20] sm:$0xff pattern:$0x75316420]
        %v3976 = vld.sshfl [vmem:[#allocation1 + $0x28] sm:$0xff pattern:$0x75316420]
        %v3977 = vld.sshfl [vmem:[#allocation1 + $0x30] sm:$0xff pattern:$0x75316420]
        %v3978 = vld.sshfl [vmem:[#allocation1 + $0x38] sm:$0xff pattern:$0x75316420]
        %3979 = vst [vmem:[#allocation1] ss:$2 sm:$0xff] %v3954
        %3980 = vst [vmem:[%s3965] ss:$2 sm:$0xff] %v3955
        %3981 = vst [vmem:[%s3967] ss:$2 sm:$0xff] %v3956
        %v3982 = vld.sshfl [vmem:[#allocation1] sm:$0xff pattern:$0x75316420]
        %v3983 = vld.sshfl [vmem:[#allocation1 + $0x8] sm:$0xff pattern:$0x75316420]
        %v3984 = vld.sshfl [vmem:[#allocation1 + $0x10] sm:$0xff pattern:$0x75316420]
        %v3985 = vld.sshfl [vmem:[#allocation1 + $0x18] sm:$0xff pattern:$0x75316420]
        %v3986 = vld.sshfl [vmem:[#allocation1 + $0x20] sm:$0xff pattern:$0x75316420]
        %3987 = vrot.lane.b32.xlu0 %v3971, 111
        %v3988 = vpop.permute.xlu0 %3987
        %3989 = vrot.lane.b32.xlu0 %v3972, 111
        %v3990 = vpop.permute.xlu0 %3989
        %3991 = vrot.lane.b32.xlu0 %v3973, 111
        %v3992 = vpop.permute.xlu0 %3991
        %3993 = vrot.lane.b32.xlu0 %v3974, 111
        %v3994 = vpop.permute.xlu0 %3993
        %3995 = vrot.lane.b32.xlu0 %v3975, 111
        %v3996 = vpop.permute.xlu0 %3995
        %3997 = vrot.lane.b32.xlu0 %v3976, 111
        %v3998 = vpop.permute.xlu0 %3997
        %3999 = vrot.lane.b32.xlu0 %v3977, 111
        %v4000 = vpop.permute.xlu0 %3999
        %4001 = vrot.lane.b32.xlu0 %v3978, 111
        %v4002 = vpop.permute.xlu0 %4001
        %4003 = vrot.lane.b32.xlu0 %v3982, 111
        %v4004 = vpop.permute.xlu0 %4003
        %4005 = vrot.lane.b32.xlu0 %v3983, 111
        %v4006 = vpop.permute.xlu0 %4005
        %4007 = vrot.lane.b32.xlu0 %v3984, 111
        %v4008 = vpop.permute.xlu0 %4007
        %4009 = vrot.lane.b32.xlu0 %v3985, 111
        %v4010 = vpop.permute.xlu0 %4009
        %4011 = vrot.lane.b32.xlu0 %v3986, 111
        %v4012 = vpop.permute.xlu0 %4011
        %v4013 = vsel %vm1622, %v3988, %v3990
        %v4014 = vsel %vm1622, %v3990, %v3992
        %v4015 = vsel %vm1622, %v3992, %v3994
        %v4016 = vsel %vm1622, %v3994, %v3996
        %v4017 = vsel %vm1622, %v3996, %v3998
        %v4018 = vsel %vm1622, %v3998, %v4000
        %v4019 = vsel %vm1622, %v4000, %v4002
        %v4020 = vsel %vm1622, %v4002, %v4004
        %v4021 = vsel %vm1622, %v4004, %v4006
        %v4022 = vsel %vm1622, %v4006, %v4008
        %v4023 = vsel %vm1622, %v4008, %v4010
        %v4024 = vsel %vm1622, %v4010, %v4012
        %4037 = vst [vmem:[#allocation3 + $0x120] sm:$0xf] %v4013
        %4038 = vst [vmem:[#allocation3 + $0x128] sm:$0xf] %v4014
        %4039 = vst [vmem:[#allocation3 + $0x130] sm:$0xf] %v4015
        %4040 = vst [vmem:[#allocation3 + $0x138] sm:$0xf] %v4016
        %4041 = vst [vmem:[#allocation3 + $0x140] sm:$0xf] %v4017
        %4042 = vst [vmem:[#allocation3 + $0x148] sm:$0xf] %v4018
        %4043 = vst [vmem:[#allocation3 + $0x150] sm:$0xf] %v4019
        %4044 = vst [vmem:[#allocation3 + $0x158] sm:$0xf] %v4020
        %4045 = vst [vmem:[#allocation3 + $0x160] sm:$0xf] %v4021
        %4046 = vst [vmem:[#allocation3 + $0x168] sm:$0xf] %v4022
        %4047 = vst [vmem:[#allocation3 + $0x170] sm:$0xf] %v4023
        %4048 = vst [vmem:[#allocation3 + $0x178] sm:$0xf] %v4024
        %v4049 = vld [vmem:[#allocation2 + $0x1c] sm:$0xff]
        %v4050 = vld [vmem:[#allocation2 + $0x24] sm:$0xff]
        %v4051 = vld [vmem:[#allocation2 + $0x2c] sm:$0xff]
        %v4052 = vld [vmem:[#allocation2 + $0x34] sm:$0xff]
        %v4053 = vld [vmem:[#allocation2 + $0x3c] sm:$0xff]
        %v4054 = vld [vmem:[#allocation2 + $0x44] sm:$0xff]
        %v4055 = vld [vmem:[#allocation2 + $0x4c] sm:$0xf]
        %s4063 = scalar_lea.vmem [#allocation1], 1
        %4064 = vst [vmem:[%s4063] ss:$2 sm:$0xff] %v4049
        %s4065 = scalar_lea.vmem [#allocation1], 17
        %4066 = vst [vmem:[%s4065] ss:$2 sm:$0xff] %v4050
        %s4067 = scalar_lea.vmem [#allocation1], 33
        %4068 = vst [vmem:[%s4067] ss:$2 sm:$0xff] %v4051
        %s4069 = scalar_lea.vmem [#allocation1], 49
        %4070 = vst [vmem:[%s4069] ss:$2 sm:$0xff] %v4052
        %v4071 = vld.sshfl [vmem:[#allocation1] sm:$0xff pattern:$0x75316420]
        %v4072 = vld.sshfl [vmem:[#allocation1 + $0x8] sm:$0xff pattern:$0x75316420]
        %v4073 = vld.sshfl [vmem:[#allocation1 + $0x10] sm:$0xff pattern:$0x75316420]
        %v4074 = vld.sshfl [vmem:[#allocation1 + $0x18] sm:$0xff pattern:$0x75316420]
        %v4075 = vld.sshfl [vmem:[#allocation1 + $0x20] sm:$0xff pattern:$0x75316420]
        %v4076 = vld.sshfl [vmem:[#allocation1 + $0x28] sm:$0xff pattern:$0x75316420]
        %v4077 = vld.sshfl [vmem:[#allocation1 + $0x30] sm:$0xff pattern:$0x75316420]
        %v4078 = vld.sshfl [vmem:[#allocation1 + $0x38] sm:$0xff pattern:$0x75316420]
        %4079 = vst [vmem:[%s4063] ss:$2 sm:$0xff] %v4053
        %4080 = vst [vmem:[%s4065] ss:$2 sm:$0xff] %v4054
        %4081 = vst [vmem:[%s4067] ss:$2 sm:$0xff] %v4055
        %v4082 = vld.sshfl [vmem:[#allocation1] sm:$0xff pattern:$0x75316420]
        %v4083 = vld.sshfl [vmem:[#allocation1 + $0x8] sm:$0xff pattern:$0x75316420]
        %v4084 = vld.sshfl [vmem:[#allocation1 + $0x10] sm:$0xff pattern:$0x75316420]
        %v4085 = vld.sshfl [vmem:[#allocation1 + $0x18] sm:$0xff pattern:$0x75316420]
        %v4086 = vld.sshfl [vmem:[#allocation1 + $0x20] sm:$0xff pattern:$0x75316420]
        %4087 = vrot.lane.b32.xlu0 %v4071, 110
        %v4088 = vpop.permute.xlu0 %4087
        %4089 = vrot.lane.b32.xlu0 %v4072, 110
        %v4090 = vpop.permute.xlu0 %4089
        %4091 = vrot.lane.b32.xlu0 %v4073, 110
        %v4092 = vpop.permute.xlu0 %4091
        %4093 = vrot.lane.b32.xlu0 %v4074, 110
        %v4094 = vpop.permute.xlu0 %4093
        %4095 = vrot.lane.b32.xlu0 %v4075, 110
        %v4096 = vpop.permute.xlu0 %4095
        %4097 = vrot.lane.b32.xlu0 %v4076, 110
        %v4098 = vpop.permute.xlu0 %4097
        %4099 = vrot.lane.b32.xlu0 %v4077, 110
        %v4100 = vpop.permute.xlu0 %4099
        %4101 = vrot.lane.b32.xlu0 %v4078, 110
        %v4102 = vpop.permute.xlu0 %4101
        %4103 = vrot.lane.b32.xlu0 %v4082, 110
        %v4104 = vpop.permute.xlu0 %4103
        %4105 = vrot.lane.b32.xlu0 %v4083, 110
        %v4106 = vpop.permute.xlu0 %4105
        %4107 = vrot.lane.b32.xlu0 %v4084, 110
        %v4108 = vpop.permute.xlu0 %4107
        %4109 = vrot.lane.b32.xlu0 %v4085, 110
        %v4110 = vpop.permute.xlu0 %4109
        %4111 = vrot.lane.b32.xlu0 %v4086, 110
        %v4112 = vpop.permute.xlu0 %4111
        %v4113 = vsel %vm1723, %v4088, %v4090
        %v4114 = vsel %vm1723, %v4090, %v4092
        %v4115 = vsel %vm1723, %v4092, %v4094
        %v4116 = vsel %vm1723, %v4094, %v4096
        %v4117 = vsel %vm1723, %v4096, %v4098
        %v4118 = vsel %vm1723, %v4098, %v4100
        %v4119 = vsel %vm1723, %v4100, %v4102
        %v4120 = vsel %vm1723, %v4102, %v4104
        %v4121 = vsel %vm1723, %v4104, %v4106
        %v4122 = vsel %vm1723, %v4106, %v4108
        %v4123 = vsel %vm1723, %v4108, %v4110
        %v4124 = vsel %vm1723, %v4110, %v4112
        %4137 = vst [vmem:[#allocation3 + $0x120] sm:$0xf0] %v4113
        %4138 = vst [vmem:[#allocation3 + $0x128] sm:$0xf0] %v4114
        %4139 = vst [vmem:[#allocation3 + $0x130] sm:$0xf0] %v4115
        %4140 = vst [vmem:[#allocation3 + $0x138] sm:$0xf0] %v4116
        %4141 = vst [vmem:[#allocation3 + $0x140] sm:$0xf0] %v4117
        %4142 = vst [vmem:[#allocation3 + $0x148] sm:$0xf0] %v4118
        %4143 = vst [vmem:[#allocation3 + $0x150] sm:$0xf0] %v4119
        %4144 = vst [vmem:[#allocation3 + $0x158] sm:$0xf0] %v4120
        %4145 = vst [vmem:[#allocation3 + $0x160] sm:$0xf0] %v4121
        %4146 = vst [vmem:[#allocation3 + $0x168] sm:$0xf0] %v4122
        %4147 = vst [vmem:[#allocation3 + $0x170] sm:$0xf0] %v4123
        %4148 = vst [vmem:[#allocation3 + $0x178] sm:$0xf0] %v4124
        %v4149 = vld [vmem:[#allocation2 + $0x1c] sm:$0xff]
        %v4150 = vld [vmem:[#allocation2 + $0x24] sm:$0xff]
        %v4151 = vld [vmem:[#allocation2 + $0x2c] sm:$0xff]
        %v4152 = vld [vmem:[#allocation2 + $0x34] sm:$0xff]
        %v4153 = vld [vmem:[#allocation2 + $0x3c] sm:$0xff]
        %v4154 = vld [vmem:[#allocation2 + $0x44] sm:$0xff]
        %v4155 = vld [vmem:[#allocation2 + $0x4c] sm:$0xf]
        %4163 = vst [vmem:[#allocation1] ss:$2 sm:$0xff] %v4149
        %s4164 = scalar_lea.vmem [#allocation1], 16
        %4165 = vst [vmem:[%s4164] ss:$2 sm:$0xff] %v4150
        %s4166 = scalar_lea.vmem [#allocation1], 32
        %4167 = vst [vmem:[%s4166] ss:$2 sm:$0xff] %v4151
        %s4168 = scalar_lea.vmem [#allocation1], 48
        %4169 = vst [vmem:[%s4168] ss:$2 sm:$0xff] %v4152
        %v4170 = vld.sshfl [vmem:[#allocation1] sm:$0xff pattern:$0x75316420]
        %v4171 = vld.sshfl [vmem:[#allocation1 + $0x8] sm:$0xff pattern:$0x75316420]
        %v4172 = vld.sshfl [vmem:[#allocation1 + $0x10] sm:$0xff pattern:$0x75316420]
        %v4173 = vld.sshfl [vmem:[#allocation1 + $0x18] sm:$0xff pattern:$0x75316420]
        %v4174 = vld.sshfl [vmem:[#allocation1 + $0x20] sm:$0xff pattern:$0x75316420]
        %v4175 = vld.sshfl [vmem:[#allocation1 + $0x28] sm:$0xff pattern:$0x75316420]
        %v4176 = vld.sshfl [vmem:[#allocation1 + $0x30] sm:$0xff pattern:$0x75316420]
        %v4177 = vld.sshfl [vmem:[#allocation1 + $0x38] sm:$0xff pattern:$0x75316420]
        %4178 = vst [vmem:[#allocation1] ss:$2 sm:$0xff] %v4153
        %4179 = vst [vmem:[%s4164] ss:$2 sm:$0xff] %v4154
        %4180 = vst [vmem:[%s4166] ss:$2 sm:$0xff] %v4155
        %v4181 = vld.sshfl [vmem:[#allocation1] sm:$0xff pattern:$0x75316420]
        %v4182 = vld.sshfl [vmem:[#allocation1 + $0x8] sm:$0xff pattern:$0x75316420]
        %v4183 = vld.sshfl [vmem:[#allocation1 + $0x10] sm:$0xff pattern:$0x75316420]
        %v4184 = vld.sshfl [vmem:[#allocation1 + $0x18] sm:$0xff pattern:$0x75316420]
        %v4185 = vld.sshfl [vmem:[#allocation1 + $0x20] sm:$0xff pattern:$0x75316420]
        %4186 = vrot.lane.b32.xlu0 %v4170, 109
        %v4187 = vpop.permute.xlu0 %4186
        %4188 = vrot.lane.b32.xlu0 %v4171, 109
        %v4189 = vpop.permute.xlu0 %4188
        %4190 = vrot.lane.b32.xlu0 %v4172, 109
        %v4191 = vpop.permute.xlu0 %4190
        %4192 = vrot.lane.b32.xlu0 %v4173, 109
        %v4193 = vpop.permute.xlu0 %4192
        %4194 = vrot.lane.b32.xlu0 %v4174, 109
        %v4195 = vpop.permute.xlu0 %4194
        %4196 = vrot.lane.b32.xlu0 %v4175, 109
        %v4197 = vpop.permute.xlu0 %4196
        %4198 = vrot.lane.b32.xlu0 %v4176, 109
        %v4199 = vpop.permute.xlu0 %4198
        %4200 = vrot.lane.b32.xlu0 %v4177, 109
        %v4201 = vpop.permute.xlu0 %4200
        %4202 = vrot.lane.b32.xlu0 %v4181, 109
        %v4203 = vpop.permute.xlu0 %4202
        %4204 = vrot.lane.b32.xlu0 %v4182, 109
        %v4205 = vpop.permute.xlu0 %4204
        %4206 = vrot.lane.b32.xlu0 %v4183, 109
        %v4207 = vpop.permute.xlu0 %4206
        %4208 = vrot.lane.b32.xlu0 %v4184, 109
        %v4209 = vpop.permute.xlu0 %4208
        %4210 = vrot.lane.b32.xlu0 %v4185, 109
        %v4211 = vpop.permute.xlu0 %4210
        %v4212 = vsel %vm1823, %v4187, %v4189
        %v4213 = vsel %vm1823, %v4189, %v4191
        %v4214 = vsel %vm1823, %v4191, %v4193
        %v4215 = vsel %vm1823, %v4193, %v4195
        %v4216 = vsel %vm1823, %v4195, %v4197
        %v4217 = vsel %vm1823, %v4197, %v4199
        %v4218 = vsel %vm1823, %v4199, %v4201
        %v4219 = vsel %vm1823, %v4201, %v4203
        %v4220 = vsel %vm1823, %v4203, %v4205
        %v4221 = vsel %vm1823, %v4205, %v4207
        %v4222 = vsel %vm1823, %v4207, %v4209
        %v4223 = vsel %vm1823, %v4209, %v4211
        %4236 = vst [vmem:[#allocation3 + $0x180] sm:$0xf] %v4212
        %4237 = vst [vmem:[#allocation3 + $0x188] sm:$0xf] %v4213
        %4238 = vst [vmem:[#allocation3 + $0x190] sm:$0xf] %v4214
        %4239 = vst [vmem:[#allocation3 + $0x198] sm:$0xf] %v4215
        %4240 = vst [vmem:[#allocation3 + $0x1a0] sm:$0xf] %v4216
        %4241 = vst [vmem:[#allocation3 + $0x1a8] sm:$0xf] %v4217
        %4242 = vst [vmem:[#allocation3 + $0x1b0] sm:$0xf] %v4218
        %4243 = vst [vmem:[#allocation3 + $0x1b8] sm:$0xf] %v4219
        %4244 = vst [vmem:[#allocation3 + $0x1c0] sm:$0xf] %v4220
        %4245 = vst [vmem:[#allocation3 + $0x1c8] sm:$0xf] %v4221
        %4246 = vst [vmem:[#allocation3 + $0x1d0] sm:$0xf] %v4222
        %4247 = vst [vmem:[#allocation3 + $0x1d8] sm:$0xf] %v4223
        %s4248 = scalar_lea.vmem %s6, 8
        %v4249 = vld [vmem:[%s4248] sm:$0xf]
        %v4250 = vld [vmem:[#allocation3] sm:$0xff]
        %v4251 = vld [vmem:[#allocation3 + $0x8] sm:$0xff]
        %v4252 = vld [vmem:[#allocation3 + $0x10] sm:$0xff]
        %v4253 = vld [vmem:[#allocation3 + $0x18] sm:$0xff]
        %v4254 = vld [vmem:[#allocation3 + $0x20] sm:$0xff]
        %v4255 = vld [vmem:[#allocation3 + $0x28] sm:$0xff]
        %v4256 = vld [vmem:[#allocation3 + $0x30] sm:$0xff]
        %v4257 = vld [vmem:[#allocation3 + $0x38] sm:$0xff]
        %v4258 = vld [vmem:[#allocation3 + $0x40] sm:$0xff]
        %v4259 = vld [vmem:[#allocation3 + $0x48] sm:$0xff]
        %v4260 = vld [vmem:[#allocation3 + $0x50] sm:$0xff]
        %v4261 = vld [vmem:[#allocation3 + $0x58] sm:$0xff]
        %v4262 = vld [vmem:[#allocation3 + $0x60] sm:$0xff]
        %v4263 = vld [vmem:[#allocation3 + $0x68] sm:$0xff]
        %v4264 = vld [vmem:[#allocation3 + $0x70] sm:$0xff]
        %v4265 = vld [vmem:[#allocation3 + $0x78] sm:$0xff]
        %v4266 = vld [vmem:[#allocation3 + $0x80] sm:$0xff]
        %v4267 = vld [vmem:[#allocation3 + $0x88] sm:$0xff]
        %v4268 = vld [vmem:[#allocation3 + $0x90] sm:$0xff]
        %v4269 = vld [vmem:[#allocation3 + $0x98] sm:$0xff]
        %v4270 = vld [vmem:[#allocation3 + $0xa0] sm:$0xff]
        %v4271 = vld [vmem:[#allocation3 + $0xa8] sm:$0xff]
        %v4272 = vld [vmem:[#allocation3 + $0xb0] sm:$0xff]
        %v4273 = vld [vmem:[#allocation3 + $0xb8] sm:$0xff]
        %v4274 = vld [vmem:[#allocation3 + $0xc0] sm:$0xff]
        %v4275 = vld [vmem:[#allocation3 + $0xc8] sm:$0xff]
        %v4276 = vld [vmem:[#allocation3 + $0xd0] sm:$0xff]
        %v4277 = vld [vmem:[#allocation3 + $0xd8] sm:$0xff]
        %v4278 = vld [vmem:[#allocation3 + $0xe0] sm:$0xff]
        %v4279 = vld [vmem:[#allocation3 + $0xe8] sm:$0xff]
        %v4280 = vld [vmem:[#allocation3 + $0xf0] sm:$0xff]
        %v4281 = vld [vmem:[#allocation3 + $0xf8] sm:$0xff]
        %v4282 = vld [vmem:[#allocation3 + $0x100] sm:$0xff]
        %v4283 = vld [vmem:[#allocation3 + $0x108] sm:$0xff]
        %v4284 = vld [vmem:[#allocation3 + $0x110] sm:$0xff]
        %v4285 = vld [vmem:[#allocation3 + $0x118] sm:$0xff]
        %v4286 = vld [vmem:[#allocation3 + $0x120] sm:$0xff]
        %v4287 = vld [vmem:[#allocation3 + $0x128] sm:$0xff]
        %v4288 = vld [vmem:[#allocation3 + $0x130] sm:$0xff]
        %v4289 = vld [vmem:[#allocation3 + $0x138] sm:$0xff]
        %v4290 = vld [vmem:[#allocation3 + $0x140] sm:$0xff]
        %v4291 = vld [vmem:[#allocation3 + $0x148] sm:$0xff]
        %v4292 = vld [vmem:[#allocation3 + $0x150] sm:$0xff]
        %v4293 = vld [vmem:[#allocation3 + $0x158] sm:$0xff]
        %v4294 = vld [vmem:[#allocation3 + $0x160] sm:$0xff]
        %v4295 = vld [vmem:[#allocation3 + $0x168] sm:$0xff]
        %v4296 = vld [vmem:[#allocation3 + $0x170] sm:$0xff]
        %v4297 = vld [vmem:[#allocation3 + $0x178] sm:$0xff]
        %v4298 = vld [vmem:[#allocation3 + $0x180] sm:$0xf]
        %v4299 = vld [vmem:[#allocation3 + $0x188] sm:$0xf]
        %v4300 = vld [vmem:[#allocation3 + $0x190] sm:$0xf]
        %v4301 = vld [vmem:[#allocation3 + $0x198] sm:$0xf]
        %v4302 = vld [vmem:[#allocation3 + $0x1a0] sm:$0xf]
        %v4303 = vld [vmem:[#allocation3 + $0x1a8] sm:$0xf]
        %v4304 = vld [vmem:[#allocation3 + $0x1b0] sm:$0xf]
        %v4305 = vld [vmem:[#allocation3 + $0x1b8] sm:$0xf]
        %v4306 = vld [vmem:[#allocation3 + $0x1c0] sm:$0xf]
        %v4307 = vld [vmem:[#allocation3 + $0x1c8] sm:$0xf]
        %v4308 = vld [vmem:[#allocation3 + $0x1d0] sm:$0xf]
        %v4309 = vld [vmem:[#allocation3 + $0x1d8] sm:$0xf]
        %v4311 = vsel %vm2836, %v4249, 0
        %v4314 = vsel %vm456, %v4298, 0
        %v4317 = vsel %vm456, %v4299, 0
        %v4320 = vsel %vm456, %v4300, 0
        %v4323 = vsel %vm456, %v4301, 0
        %v4326 = vsel %vm456, %v4302, 0
        %v4329 = vsel %vm456, %v4303, 0
        %v4332 = vsel %vm456, %v4304, 0
        %v4335 = vsel %vm456, %v4305, 0
        %v4338 = vsel %vm456, %v4306, 0
        %v4341 = vsel %vm456, %v4307, 0
        %v4344 = vsel %vm456, %v4308, 0
        %v4347 = vsel %vm456, %v4309, 0
        %4349 = vmatpush.msra.mxu0 0.0
        %4350 = vmatpush.msra.mxu0 0.0
        %4351 = vmatpush.msra.mxu0 0.0
        %4352 = vmatpush.msra.mxu0 0.0
        %4353 = vmatpush.msra.mxu0 0.0
        %4354 = vmatpush.msra.mxu0 0.0
        %4355 = vmatpush.msra.mxu0 0.0
        %4356 = vmatpush.msra.mxu0 0.0
        %4357 = vmatpush.msra.mxu0 0.0
        %4358 = vmatpush.msra.mxu0 0.0
        %4359 = vmatpush.msra.mxu0 0.0
        %4360 = vmatpush.msra.mxu0 %v4314
        %4361 = vmatpush.msra.mxu0 %v4286
        %4362 = vmatpush.msra.mxu0 %v4274
        %4363 = vmatpush.msra.mxu0 %v4262
        %4364 = vmatpush.msra.mxu0 %v4250
        %4365 = vmatmul.f32.gmra.mxu0 %v4311
        %v4366 = vpop.f32.mrf.mxu0
        %v4367 = vadd.f32 0.0, %v4366
        %4368 = vdwg.mxu0
        %4369 = vmatpush.msra.mxu0 0.0
        %4370 = vmatpush.msra.mxu0 0.0
        %4371 = vmatpush.msra.mxu0 0.0
        %4372 = vmatpush.msra.mxu0 0.0
        %4373 = vmatpush.msra.mxu0 0.0
        %4374 = vmatpush.msra.mxu0 0.0
        %4375 = vmatpush.msra.mxu0 0.0
        %4376 = vmatpush.msra.mxu0 0.0
        %4377 = vmatpush.msra.mxu0 0.0
        %4378 = vmatpush.msra.mxu0 0.0
        %4379 = vmatpush.msra.mxu0 0.0
        %4380 = vmatpush.msra.mxu0 %v4317
        %4381 = vmatpush.msra.mxu0 %v4287
        %4382 = vmatpush.msra.mxu0 %v4275
        %4383 = vmatpush.msra.mxu0 %v4263
        %4384 = vmatpush.msra.mxu0 %v4251
        %4385 = vmatmul.f32.gmra.mxu0 %v4311
        %v4386 = vpop.f32.mrf.mxu0
        %v4387 = vadd.f32 0.0, %v4386
        %4388 = vdwg.mxu0
        %4389 = vmatpush.msra.mxu0 0.0
        %4390 = vmatpush.msra.mxu0 0.0
        %4391 = vmatpush.msra.mxu0 0.0
        %4392 = vmatpush.msra.mxu0 0.0
        %4393 = vmatpush.msra.mxu0 0.0
        %4394 = vmatpush.msra.mxu0 0.0
        %4395 = vmatpush.msra.mxu0 0.0
        %4396 = vmatpush.msra.mxu0 0.0
        %4397 = vmatpush.msra.mxu0 0.0
        %4398 = vmatpush.msra.mxu0 0.0
        %4399 = vmatpush.msra.mxu0 0.0
        %4400 = vmatpush.msra.mxu0 %v4320
        %4401 = vmatpush.msra.mxu0 %v4288
        %4402 = vmatpush.msra.mxu0 %v4276
        %4403 = vmatpush.msra.mxu0 %v4264
        %4404 = vmatpush.msra.mxu0 %v4252
        %4405 = vmatmul.f32.gmra.mxu0 %v4311
        %v4406 = vpop.f32.mrf.mxu0
        %v4407 = vadd.f32 0.0, %v4406
        %4408 = vdwg.mxu0
        %4409 = vmatpush.msra.mxu0 0.0
        %4410 = vmatpush.msra.mxu0 0.0
        %4411 = vmatpush.msra.mxu0 0.0
        %4412 = vmatpush.msra.mxu0 0.0
        %4413 = vmatpush.msra.mxu0 0.0
        %4414 = vmatpush.msra.mxu0 0.0
        %4415 = vmatpush.msra.mxu0 0.0
        %4416 = vmatpush.msra.mxu0 0.0
        %4417 = vmatpush.msra.mxu0 0.0
        %4418 = vmatpush.msra.mxu0 0.0
        %4419 = vmatpush.msra.mxu0 0.0
        %4420 = vmatpush.msra.mxu0 %v4323
        %4421 = vmatpush.msra.mxu0 %v4289
        %4422 = vmatpush.msra.mxu0 %v4277
        %4423 = vmatpush.msra.mxu0 %v4265
        %4424 = vmatpush.msra.mxu0 %v4253
        %4425 = vmatmul.f32.gmra.mxu0 %v4311
        %v4426 = vpop.f32.mrf.mxu0
        %v4427 = vadd.f32 0.0, %v4426
        %4428 = vdwg.mxu0
        %4429 = vmatpush.msra.mxu0 0.0
        %4430 = vmatpush.msra.mxu0 0.0
        %4431 = vmatpush.msra.mxu0 0.0
        %4432 = vmatpush.msra.mxu0 0.0
        %4433 = vmatpush.msra.mxu0 0.0
        %4434 = vmatpush.msra.mxu0 0.0
        %4435 = vmatpush.msra.mxu0 0.0
        %4436 = vmatpush.msra.mxu0 0.0
        %4437 = vmatpush.msra.mxu0 0.0
        %4438 = vmatpush.msra.mxu0 0.0
        %4439 = vmatpush.msra.mxu0 0.0
        %4440 = vmatpush.msra.mxu0 %v4326
        %4441 = vmatpush.msra.mxu0 %v4290
        %4442 = vmatpush.msra.mxu0 %v4278
        %4443 = vmatpush.msra.mxu0 %v4266
        %4444 = vmatpush.msra.mxu0 %v4254
        %4445 = vmatmul.f32.gmra.mxu0 %v4311
        %v4446 = vpop.f32.mrf.mxu0
        %v4447 = vadd.f32 0.0, %v4446
        %4448 = vdwg.mxu0
        %4449 = vmatpush.msra.mxu0 0.0
        %4450 = vmatpush.msra.mxu0 0.0
        %4451 = vmatpush.msra.mxu0 0.0
        %4452 = vmatpush.msra.mxu0 0.0
        %4453 = vmatpush.msra.mxu0 0.0
        %4454 = vmatpush.msra.mxu0 0.0
        %4455 = vmatpush.msra.mxu0 0.0
        %4456 = vmatpush.msra.mxu0 0.0
        %4457 = vmatpush.msra.mxu0 0.0
        %4458 = vmatpush.msra.mxu0 0.0
        %4459 = vmatpush.msra.mxu0 0.0
        %4460 = vmatpush.msra.mxu0 %v4329
        %4461 = vmatpush.msra.mxu0 %v4291
        %4462 = vmatpush.msra.mxu0 %v4279
        %4463 = vmatpush.msra.mxu0 %v4267
        %4464 = vmatpush.msra.mxu0 %v4255
        %4465 = vmatmul.f32.gmra.mxu0 %v4311
        %v4466 = vpop.f32.mrf.mxu0
        %v4467 = vadd.f32 0.0, %v4466
        %4468 = vdwg.mxu0
        %4469 = vmatpush.msra.mxu0 0.0
        %4470 = vmatpush.msra.mxu0 0.0
        %4471 = vmatpush.msra.mxu0 0.0
        %4472 = vmatpush.msra.mxu0 0.0
        %4473 = vmatpush.msra.mxu0 0.0
        %4474 = vmatpush.msra.mxu0 0.0
        %4475 = vmatpush.msra.mxu0 0.0
        %4476 = vmatpush.msra.mxu0 0.0
        %4477 = vmatpush.msra.mxu0 0.0
        %4478 = vmatpush.msra.mxu0 0.0
        %4479 = vmatpush.msra.mxu0 0.0
        %4480 = vmatpush.msra.mxu0 %v4332
        %4481 = vmatpush.msra.mxu0 %v4292
        %4482 = vmatpush.msra.mxu0 %v4280
        %4483 = vmatpush.msra.mxu0 %v4268
        %4484 = vmatpush.msra.mxu0 %v4256
        %4485 = vmatmul.f32.gmra.mxu0 %v4311
        %v4486 = vpop.f32.mrf.mxu0
        %v4487 = vadd.f32 0.0, %v4486
        %4488 = vdwg.mxu0
        %4489 = vmatpush.msra.mxu0 0.0
        %4490 = vmatpush.msra.mxu0 0.0
        %4491 = vmatpush.msra.mxu0 0.0
        %4492 = vmatpush.msra.mxu0 0.0
        %4493 = vmatpush.msra.mxu0 0.0
        %4494 = vmatpush.msra.mxu0 0.0
        %4495 = vmatpush.msra.mxu0 0.0
        %4496 = vmatpush.msra.mxu0 0.0
        %4497 = vmatpush.msra.mxu0 0.0
        %4498 = vmatpush.msra.mxu0 0.0
        %4499 = vmatpush.msra.mxu0 0.0
        %4500 = vmatpush.msra.mxu0 %v4335
        %4501 = vmatpush.msra.mxu0 %v4293
        %4502 = vmatpush.msra.mxu0 %v4281
        %4503 = vmatpush.msra.mxu0 %v4269
        %4504 = vmatpush.msra.mxu0 %v4257
        %4505 = vmatmul.f32.gmra.mxu0 %v4311
        %v4506 = vpop.f32.mrf.mxu0
        %v4507 = vadd.f32 0.0, %v4506
        %4508 = vdwg.mxu0
        %4509 = vmatpush.msra.mxu0 0.0
        %4510 = vmatpush.msra.mxu0 0.0
        %4511 = vmatpush.msra.mxu0 0.0
        %4512 = vmatpush.msra.mxu0 0.0
        %4513 = vmatpush.msra.mxu0 0.0
        %4514 = vmatpush.msra.mxu0 0.0
        %4515 = vmatpush.msra.mxu0 0.0
        %4516 = vmatpush.msra.mxu0 0.0
        %4517 = vmatpush.msra.mxu0 0.0
        %4518 = vmatpush.msra.mxu0 0.0
        %4519 = vmatpush.msra.mxu0 0.0
        %4520 = vmatpush.msra.mxu0 %v4338
        %4521 = vmatpush.msra.mxu0 %v4294
        %4522 = vmatpush.msra.mxu0 %v4282
        %4523 = vmatpush.msra.mxu0 %v4270
        %4524 = vmatpush.msra.mxu0 %v4258
        %4525 = vmatmul.f32.gmra.mxu0 %v4311
        %v4526 = vpop.f32.mrf.mxu0
        %v4527 = vadd.f32 0.0, %v4526
        %4528 = vdwg.mxu0
        %4529 = vmatpush.msra.mxu0 0.0
        %4530 = vmatpush.msra.mxu0 0.0
        %4531 = vmatpush.msra.mxu0 0.0
        %4532 = vmatpush.msra.mxu0 0.0
        %4533 = vmatpush.msra.mxu0 0.0
        %4534 = vmatpush.msra.mxu0 0.0
        %4535 = vmatpush.msra.mxu0 0.0
        %4536 = vmatpush.msra.mxu0 0.0
        %4537 = vmatpush.msra.mxu0 0.0
        %4538 = vmatpush.msra.mxu0 0.0
        %4539 = vmatpush.msra.mxu0 0.0
        %4540 = vmatpush.msra.mxu0 %v4341
        %4541 = vmatpush.msra.mxu0 %v4295
        %4542 = vmatpush.msra.mxu0 %v4283
        %4543 = vmatpush.msra.mxu0 %v4271
        %4544 = vmatpush.msra.mxu0 %v4259
        %4545 = vmatmul.f32.gmra.mxu0 %v4311
        %v4546 = vpop.f32.mrf.mxu0
        %v4547 = vadd.f32 0.0, %v4546
        %4548 = vdwg.mxu0
        %4549 = vmatpush.msra.mxu0 0.0
        %4550 = vmatpush.msra.mxu0 0.0
        %4551 = vmatpush.msra.mxu0 0.0
        %4552 = vmatpush.msra.mxu0 0.0
        %4553 = vmatpush.msra.mxu0 0.0
        %4554 = vmatpush.msra.mxu0 0.0
        %4555 = vmatpush.msra.mxu0 0.0
        %4556 = vmatpush.msra.mxu0 0.0
        %4557 = vmatpush.msra.mxu0 0.0
        %4558 = vmatpush.msra.mxu0 0.0
        %4559 = vmatpush.msra.mxu0 0.0
        %4560 = vmatpush.msra.mxu0 %v4344
        %4561 = vmatpush.msra.mxu0 %v4296
        %4562 = vmatpush.msra.mxu0 %v4284
        %4563 = vmatpush.msra.mxu0 %v4272
        %4564 = vmatpush.msra.mxu0 %v4260
        %4565 = vmatmul.f32.gmra.mxu0 %v4311
        %v4566 = vpop.f32.mrf.mxu0
        %v4567 = vadd.f32 0.0, %v4566
        %4568 = vdwg.mxu0
        %4569 = vmatpush.msra.mxu0 0.0
        %4570 = vmatpush.msra.mxu0 0.0
        %4571 = vmatpush.msra.mxu0 0.0
        %4572 = vmatpush.msra.mxu0 0.0
        %4573 = vmatpush.msra.mxu0 0.0
        %4574 = vmatpush.msra.mxu0 0.0
        %4575 = vmatpush.msra.mxu0 0.0
        %4576 = vmatpush.msra.mxu0 0.0
        %4577 = vmatpush.msra.mxu0 0.0
        %4578 = vmatpush.msra.mxu0 0.0
        %4579 = vmatpush.msra.mxu0 0.0
        %4580 = vmatpush.msra.mxu0 %v4347
        %4581 = vmatpush.msra.mxu0 %v4297
        %4582 = vmatpush.msra.mxu0 %v4285
        %4583 = vmatpush.msra.mxu0 %v4273
        %4584 = vmatpush.msra.mxu0 %v4261
        %4585 = vmatmul.f32.gmra.mxu0 %v4311
        %v4586 = vpop.f32.mrf.mxu0
        %v4587 = vadd.f32 0.0, %v4586
        %4588 = vdwg.mxu0
        %v4589 = vadd.f32 %v3173, %v4367
        %v4590 = vadd.f32 %v3193, %v4387
        %v4591 = vadd.f32 %v3213, %v4407
        %v4592 = vadd.f32 %v3233, %v4427
        %v4593 = vadd.f32 %v3253, %v4447
        %v4594 = vadd.f32 %v3273, %v4467
        %v4595 = vadd.f32 %v3293, %v4487
        %v4596 = vadd.f32 %v3313, %v4507
        %v4597 = vadd.f32 %v3333, %v4527
        %v4598 = vadd.f32 %v3353, %v4547
        %v4599 = vadd.f32 %v3373, %v4567
        %v4600 = vadd.f32 %v3393, %v4587
        %v4601 = vld [vmem:[%s7] sm:$0xf]
        %4603 = vset.pattern.permute.xlu0 0
        %4604 = vperm.xlu0 %4603, %v4601
        %v4605 = vpop.permute.xlu0 %4604
        %v4607 = vadd.f32 %v4589, %v4605
        %v4608 = vadd.f32 %v4590, %v4605
        %v4609 = vadd.f32 %v4591, %v4605
        %v4610 = vadd.f32 %v4592, %v4605
        %v4611 = vadd.f32 %v4593, %v4605
        %v4612 = vadd.f32 %v4594, %v4605
        %v4613 = vadd.f32 %v4595, %v4605
        %v4614 = vadd.f32 %v4596, %v4605
        %v4615 = vadd.f32 %v4597, %v4605
        %v4616 = vadd.f32 %v4598, %v4605
        %v4617 = vadd.f32 %v4599, %v4605
        %v4618 = vadd.f32 %v4600, %v4605
        %v4619 = vmax.f32 %v4607, 0.0
        %v4620 = vmax.f32 %v4608, 0.0
        %v4621 = vmax.f32 %v4609, 0.0
        %v4622 = vmax.f32 %v4610, 0.0
        %v4623 = vmax.f32 %v4611, 0.0
        %v4624 = vmax.f32 %v4612, 0.0
        %v4625 = vmax.f32 %v4613, 0.0
        %v4626 = vmax.f32 %v4614, 0.0
        %v4627 = vmax.f32 %v4615, 0.0
        %v4628 = vmax.f32 %v4616, 0.0
        %v4629 = vmax.f32 %v4617, 0.0
        %v4630 = vmax.f32 %v4618, 0.0
        %v4631 = vld [vmem:[%s8] sm:$0xff]
        %v4632 = vld [vmem:[%s9] sm:$0xff]
        %4634 = vset.pattern.permute.xlu0 0
        %4635 = vperm.xlu0 %4634, %v4632
        %v4636 = vpop.permute.xlu0 %4635
        %v4639 = vsel %vm452, %v4631, 0
        %v4642 = vsel %vm456, %v4619, 0
        %v4645 = vsel %vm456, %v4620, 0
        %v4648 = vsel %vm456, %v4621, 0
        %v4651 = vsel %vm456, %v4622, 0
        %v4654 = vsel %vm456, %v4623, 0
        %v4657 = vsel %vm456, %v4624, 0
        %v4660 = vsel %vm456, %v4625, 0
        %v4663 = vsel %vm456, %v4626, 0
        %v4666 = vsel %vm456, %v4627, 0
        %v4669 = vsel %vm456, %v4628, 0
        %v4672 = vsel %vm456, %v4629, 0
        %v4675 = vsel %vm456, %v4630, 0
        %4677 = vmatpush.msra.mxu0 0.0
        %4678 = vmatpush.msra.mxu0 0.0
        %4679 = vmatpush.msra.mxu0 0.0
        %4680 = vmatpush.msra.mxu0 0.0
        %4681 = vmatpush.msra.mxu0 0.0
        %4682 = vmatpush.msra.mxu0 0.0
        %4683 = vmatpush.msra.mxu0 0.0
        %4684 = vmatpush.msra.mxu0 0.0
        %4685 = vmatpush.msra.mxu0 0.0
        %4686 = vmatpush.msra.mxu0 0.0
        %4687 = vmatpush.msra.mxu0 0.0
        %4688 = vmatpush.msra.mxu0 0.0
        %4689 = vmatpush.msra.mxu0 0.0
        %4690 = vmatpush.msra.mxu0 0.0
        %4691 = vmatpush.msra.mxu0 0.0
        %4692 = vmatpush.msra.mxu0 %v4642
        %4693 = vmatmul.f32.gmra.mxu0 %v4639
        %v4694 = vpop.f32.mrf.mxu0
        %v4695 = vadd.f32 %v4636, %v4694
        %4696 = vdwg.mxu0
        %4697 = vmatpush.msra.mxu0 0.0
        %4698 = vmatpush.msra.mxu0 0.0
        %4699 = vmatpush.msra.mxu0 0.0
        %4700 = vmatpush.msra.mxu0 0.0
        %4701 = vmatpush.msra.mxu0 0.0
        %4702 = vmatpush.msra.mxu0 0.0
        %4703 = vmatpush.msra.mxu0 0.0
        %4704 = vmatpush.msra.mxu0 0.0
        %4705 = vmatpush.msra.mxu0 0.0
        %4706 = vmatpush.msra.mxu0 0.0
        %4707 = vmatpush.msra.mxu0 0.0
        %4708 = vmatpush.msra.mxu0 0.0
        %4709 = vmatpush.msra.mxu0 0.0
        %4710 = vmatpush.msra.mxu0 0.0
        %4711 = vmatpush.msra.mxu0 0.0
        %4712 = vmatpush.msra.mxu0 %v4645
        %4713 = vmatmul.f32.gmra.mxu0 %v4639
        %v4714 = vpop.f32.mrf.mxu0
        %v4715 = vadd.f32 %v4636, %v4714
        %4716 = vdwg.mxu0
        %4717 = vmatpush.msra.mxu0 0.0
        %4718 = vmatpush.msra.mxu0 0.0
        %4719 = vmatpush.msra.mxu0 0.0
        %4720 = vmatpush.msra.mxu0 0.0
        %4721 = vmatpush.msra.mxu0 0.0
        %4722 = vmatpush.msra.mxu0 0.0
        %4723 = vmatpush.msra.mxu0 0.0
        %4724 = vmatpush.msra.mxu0 0.0
        %4725 = vmatpush.msra.mxu0 0.0
        %4726 = vmatpush.msra.mxu0 0.0
        %4727 = vmatpush.msra.mxu0 0.0
        %4728 = vmatpush.msra.mxu0 0.0
        %4729 = vmatpush.msra.mxu0 0.0
        %4730 = vmatpush.msra.mxu0 0.0
        %4731 = vmatpush.msra.mxu0 0.0
        %4732 = vmatpush.msra.mxu0 %v4648
        %4733 = vmatmul.f32.gmra.mxu0 %v4639
        %v4734 = vpop.f32.mrf.mxu0
        %v4735 = vadd.f32 %v4636, %v4734
        %4736 = vdwg.mxu0
        %4737 = vmatpush.msra.mxu0 0.0
        %4738 = vmatpush.msra.mxu0 0.0
        %4739 = vmatpush.msra.mxu0 0.0
        %4740 = vmatpush.msra.mxu0 0.0
        %4741 = vmatpush.msra.mxu0 0.0
        %4742 = vmatpush.msra.mxu0 0.0
        %4743 = vmatpush.msra.mxu0 0.0
        %4744 = vmatpush.msra.mxu0 0.0
        %4745 = vmatpush.msra.mxu0 0.0
        %4746 = vmatpush.msra.mxu0 0.0
        %4747 = vmatpush.msra.mxu0 0.0
        %4748 = vmatpush.msra.mxu0 0.0
        %4749 = vmatpush.msra.mxu0 0.0
        %4750 = vmatpush.msra.mxu0 0.0
        %4751 = vmatpush.msra.mxu0 0.0
        %4752 = vmatpush.msra.mxu0 %v4651
        %4753 = vmatmul.f32.gmra.mxu0 %v4639
        %v4754 = vpop.f32.mrf.mxu0
        %v4755 = vadd.f32 %v4636, %v4754
        %4756 = vdwg.mxu0
        %4757 = vmatpush.msra.mxu0 0.0
        %4758 = vmatpush.msra.mxu0 0.0
        %4759 = vmatpush.msra.mxu0 0.0
        %4760 = vmatpush.msra.mxu0 0.0
        %4761 = vmatpush.msra.mxu0 0.0
        %4762 = vmatpush.msra.mxu0 0.0
        %4763 = vmatpush.msra.mxu0 0.0
        %4764 = vmatpush.msra.mxu0 0.0
        %4765 = vmatpush.msra.mxu0 0.0
        %4766 = vmatpush.msra.mxu0 0.0
        %4767 = vmatpush.msra.mxu0 0.0
        %4768 = vmatpush.msra.mxu0 0.0
        %4769 = vmatpush.msra.mxu0 0.0
        %4770 = vmatpush.msra.mxu0 0.0
        %4771 = vmatpush.msra.mxu0 0.0
        %4772 = vmatpush.msra.mxu0 %v4654
        %4773 = vmatmul.f32.gmra.mxu0 %v4639
        %v4774 = vpop.f32.mrf.mxu0
        %v4775 = vadd.f32 %v4636, %v4774
        %4776 = vdwg.mxu0
        %4777 = vmatpush.msra.mxu0 0.0
        %4778 = vmatpush.msra.mxu0 0.0
        %4779 = vmatpush.msra.mxu0 0.0
        %4780 = vmatpush.msra.mxu0 0.0
        %4781 = vmatpush.msra.mxu0 0.0
        %4782 = vmatpush.msra.mxu0 0.0
        %4783 = vmatpush.msra.mxu0 0.0
        %4784 = vmatpush.msra.mxu0 0.0
        %4785 = vmatpush.msra.mxu0 0.0
        %4786 = vmatpush.msra.mxu0 0.0
        %4787 = vmatpush.msra.mxu0 0.0
        %4788 = vmatpush.msra.mxu0 0.0
        %4789 = vmatpush.msra.mxu0 0.0
        %4790 = vmatpush.msra.mxu0 0.0
        %4791 = vmatpush.msra.mxu0 0.0
        %4792 = vmatpush.msra.mxu0 %v4657
        %4793 = vmatmul.f32.gmra.mxu0 %v4639
        %v4794 = vpop.f32.mrf.mxu0
        %v4795 = vadd.f32 %v4636, %v4794
        %4796 = vdwg.mxu0
        %4797 = vmatpush.msra.mxu0 0.0
        %4798 = vmatpush.msra.mxu0 0.0
        %4799 = vmatpush.msra.mxu0 0.0
        %4800 = vmatpush.msra.mxu0 0.0
        %4801 = vmatpush.msra.mxu0 0.0
        %4802 = vmatpush.msra.mxu0 0.0
        %4803 = vmatpush.msra.mxu0 0.0
        %4804 = vmatpush.msra.mxu0 0.0
        %4805 = vmatpush.msra.mxu0 0.0
        %4806 = vmatpush.msra.mxu0 0.0
        %4807 = vmatpush.msra.mxu0 0.0
        %4808 = vmatpush.msra.mxu0 0.0
        %4809 = vmatpush.msra.mxu0 0.0
        %4810 = vmatpush.msra.mxu0 0.0
        %4811 = vmatpush.msra.mxu0 0.0
        %4812 = vmatpush.msra.mxu0 %v4660
        %4813 = vmatmul.f32.gmra.mxu0 %v4639
        %v4814 = vpop.f32.mrf.mxu0
        %v4815 = vadd.f32 %v4636, %v4814
        %4816 = vdwg.mxu0
        %4817 = vmatpush.msra.mxu0 0.0
        %4818 = vmatpush.msra.mxu0 0.0
        %4819 = vmatpush.msra.mxu0 0.0
        %4820 = vmatpush.msra.mxu0 0.0
        %4821 = vmatpush.msra.mxu0 0.0
        %4822 = vmatpush.msra.mxu0 0.0
        %4823 = vmatpush.msra.mxu0 0.0
        %4824 = vmatpush.msra.mxu0 0.0
        %4825 = vmatpush.msra.mxu0 0.0
        %4826 = vmatpush.msra.mxu0 0.0
        %4827 = vmatpush.msra.mxu0 0.0
        %4828 = vmatpush.msra.mxu0 0.0
        %4829 = vmatpush.msra.mxu0 0.0
        %4830 = vmatpush.msra.mxu0 0.0
        %4831 = vmatpush.msra.mxu0 0.0
        %4832 = vmatpush.msra.mxu0 %v4663
        %4833 = vmatmul.f32.gmra.mxu0 %v4639
        %v4834 = vpop.f32.mrf.mxu0
        %v4835 = vadd.f32 %v4636, %v4834
        %4836 = vdwg.mxu0
        %4837 = vmatpush.msra.mxu0 0.0
        %4838 = vmatpush.msra.mxu0 0.0
        %4839 = vmatpush.msra.mxu0 0.0
        %4840 = vmatpush.msra.mxu0 0.0
        %4841 = vmatpush.msra.mxu0 0.0
        %4842 = vmatpush.msra.mxu0 0.0
        %4843 = vmatpush.msra.mxu0 0.0
        %4844 = vmatpush.msra.mxu0 0.0
        %4845 = vmatpush.msra.mxu0 0.0
        %4846 = vmatpush.msra.mxu0 0.0
        %4847 = vmatpush.msra.mxu0 0.0
        %4848 = vmatpush.msra.mxu0 0.0
        %4849 = vmatpush.msra.mxu0 0.0
        %4850 = vmatpush.msra.mxu0 0.0
        %4851 = vmatpush.msra.mxu0 0.0
        %4852 = vmatpush.msra.mxu0 %v4666
        %4853 = vmatmul.f32.gmra.mxu0 %v4639
        %v4854 = vpop.f32.mrf.mxu0
        %v4855 = vadd.f32 %v4636, %v4854
        %4856 = vdwg.mxu0
        %4857 = vmatpush.msra.mxu0 0.0
        %4858 = vmatpush.msra.mxu0 0.0
        %4859 = vmatpush.msra.mxu0 0.0
        %4860 = vmatpush.msra.mxu0 0.0
        %4861 = vmatpush.msra.mxu0 0.0
        %4862 = vmatpush.msra.mxu0 0.0
        %4863 = vmatpush.msra.mxu0 0.0
        %4864 = vmatpush.msra.mxu0 0.0
        %4865 = vmatpush.msra.mxu0 0.0
        %4866 = vmatpush.msra.mxu0 0.0
        %4867 = vmatpush.msra.mxu0 0.0
        %4868 = vmatpush.msra.mxu0 0.0
        %4869 = vmatpush.msra.mxu0 0.0
        %4870 = vmatpush.msra.mxu0 0.0
        %4871 = vmatpush.msra.mxu0 0.0
        %4872 = vmatpush.msra.mxu0 %v4669
        %4873 = vmatmul.f32.gmra.mxu0 %v4639
        %v4874 = vpop.f32.mrf.mxu0
        %v4875 = vadd.f32 %v4636, %v4874
        %4876 = vdwg.mxu0
        %4877 = vmatpush.msra.mxu0 0.0
        %4878 = vmatpush.msra.mxu0 0.0
        %4879 = vmatpush.msra.mxu0 0.0
        %4880 = vmatpush.msra.mxu0 0.0
        %4881 = vmatpush.msra.mxu0 0.0
        %4882 = vmatpush.msra.mxu0 0.0
        %4883 = vmatpush.msra.mxu0 0.0
        %4884 = vmatpush.msra.mxu0 0.0
        %4885 = vmatpush.msra.mxu0 0.0
        %4886 = vmatpush.msra.mxu0 0.0
        %4887 = vmatpush.msra.mxu0 0.0
        %4888 = vmatpush.msra.mxu0 0.0
        %4889 = vmatpush.msra.mxu0 0.0
        %4890 = vmatpush.msra.mxu0 0.0
        %4891 = vmatpush.msra.mxu0 0.0
        %4892 = vmatpush.msra.mxu0 %v4672
        %4893 = vmatmul.f32.gmra.mxu0 %v4639
        %v4894 = vpop.f32.mrf.mxu0
        %v4895 = vadd.f32 %v4636, %v4894
        %4896 = vdwg.mxu0
        %4897 = vmatpush.msra.mxu0 0.0
        %4898 = vmatpush.msra.mxu0 0.0
        %4899 = vmatpush.msra.mxu0 0.0
        %4900 = vmatpush.msra.mxu0 0.0
        %4901 = vmatpush.msra.mxu0 0.0
        %4902 = vmatpush.msra.mxu0 0.0
        %4903 = vmatpush.msra.mxu0 0.0
        %4904 = vmatpush.msra.mxu0 0.0
        %4905 = vmatpush.msra.mxu0 0.0
        %4906 = vmatpush.msra.mxu0 0.0
        %4907 = vmatpush.msra.mxu0 0.0
        %4908 = vmatpush.msra.mxu0 0.0
        %4909 = vmatpush.msra.mxu0 0.0
        %4910 = vmatpush.msra.mxu0 0.0
        %4911 = vmatpush.msra.mxu0 0.0
        %4912 = vmatpush.msra.mxu0 %v4675
        %4913 = vmatmul.f32.gmra.mxu0 %v4639
        %v4914 = vpop.f32.mrf.mxu0
        %v4915 = vadd.f32 %v4636, %v4914
        %4916 = vdwg.mxu0
        %v4917 = vmax.f32 %v4695, 0.0
        %v4918 = vmax.f32 %v4715, 0.0
        %v4919 = vmax.f32 %v4735, 0.0
        %v4920 = vmax.f32 %v4755, 0.0
        %v4921 = vmax.f32 %v4775, 0.0
        %v4922 = vmax.f32 %v4795, 0.0
        %v4923 = vmax.f32 %v4815, 0.0
        %v4924 = vmax.f32 %v4835, 0.0
        %v4925 = vmax.f32 %v4855, 0.0
        %v4926 = vmax.f32 %v4875, 0.0
        %v4927 = vmax.f32 %v4895, 0.0
        %v4928 = vmax.f32 %v4915, 0.0
        %v4929 = vld [vmem:[%s4] sm:$0xff]
        %v4930 = vld [vmem:[%s5] sm:$0xff]
        %4932 = vset.pattern.permute.xlu0 0
        %4933 = vperm.xlu0 %4932, %v4930
        %v4934 = vpop.permute.xlu0 %4933
        %4936 = vst [vmem:[#allocation1] ss:$2 sm:$0xff] %v398
        %s4937 = scalar_lea.vmem [#allocation1], 16
        %4938 = vst [vmem:[%s4937] ss:$2 sm:$0xff] %v399
        %s4939 = scalar_lea.vmem [#allocation1], 32
        %4940 = vst [vmem:[%s4939] ss:$2 sm:$0xff] %v400
        %s4941 = scalar_lea.vmem [#allocation1], 48
        %4942 = vst [vmem:[%s4941] ss:$2 sm:$0xff] %v401
        %v4943 = vld.sshfl [vmem:[#allocation1 + $0x8] sm:$0xff pattern:$0x75316420]
        %v4944 = vld.sshfl [vmem:[#allocation1 + $0x10] sm:$0xff pattern:$0x75316420]
        %v4945 = vld.sshfl [vmem:[#allocation1 + $0x18] sm:$0xff pattern:$0x75316420]
        %v4946 = vld.sshfl [vmem:[#allocation1 + $0x20] sm:$0xff pattern:$0x75316420]
        %v4947 = vld.sshfl [vmem:[#allocation1 + $0x28] sm:$0xff pattern:$0x75316420]
        %v4948 = vld.sshfl [vmem:[#allocation1 + $0x30] sm:$0xff pattern:$0x75316420]
        %v4949 = vld.sshfl [vmem:[#allocation1 + $0x38] sm:$0xff pattern:$0x75316420]
        %4950 = vst [vmem:[#allocation1] ss:$2 sm:$0xff] %v402
        %4951 = vst [vmem:[%s4937] ss:$2 sm:$0xff] %v403
        %4952 = vst [vmem:[%s4939] ss:$2 sm:$0xff] %v404
        %v4953 = vld.sshfl [vmem:[#allocation1] sm:$0xff pattern:$0x75316420]
        %v4954 = vld.sshfl [vmem:[#allocation1 + $0x8] sm:$0xff pattern:$0x75316420]
        %v4955 = vld.sshfl [vmem:[#allocation1 + $0x10] sm:$0xff pattern:$0x75316420]
        %v4956 = vld.sshfl [vmem:[#allocation1 + $0x18] sm:$0xff pattern:$0x75316420]
        %v4957 = vld.sshfl [vmem:[#allocation1 + $0x20] sm:$0xff pattern:$0x75316420]
        %v4959 = vsel %vm452, %v4929, 0
        %v4961 = vsel %vm456, %v4943, 0
        %v4963 = vsel %vm456, %v4944, 0
        %v4965 = vsel %vm456, %v4945, 0
        %v4967 = vsel %vm456, %v4946, 0
        %v4969 = vsel %vm456, %v4947, 0
        %v4971 = vsel %vm456, %v4948, 0
        %v4973 = vsel %vm456, %v4949, 0
        %v4975 = vsel %vm456, %v4953, 0
        %v4977 = vsel %vm456, %v4954, 0
        %v4979 = vsel %vm456, %v4955, 0
        %v4981 = vsel %vm456, %v4956, 0
        %v4983 = vsel %vm456, %v4957, 0
        %4985 = vmatpush.msra.mxu0 0.0
        %4986 = vmatpush.msra.mxu0 0.0
        %4987 = vmatpush.msra.mxu0 0.0
        %4988 = vmatpush.msra.mxu0 0.0
        %4989 = vmatpush.msra.mxu0 0.0
        %4990 = vmatpush.msra.mxu0 0.0
        %4991 = vmatpush.msra.mxu0 0.0
        %4992 = vmatpush.msra.mxu0 0.0
        %4993 = vmatpush.msra.mxu0 0.0
        %4994 = vmatpush.msra.mxu0 0.0
        %4995 = vmatpush.msra.mxu0 0.0
        %4996 = vmatpush.msra.mxu0 0.0
        %4997 = vmatpush.msra.mxu0 0.0
        %4998 = vmatpush.msra.mxu0 0.0
        %4999 = vmatpush.msra.mxu0 0.0
        %5000 = vmatpush.msra.mxu0 %v4961
        %5001 = vmatmul.f32.gmra.mxu0 %v4959
        %v5002 = vpop.f32.mrf.mxu0
        %v5003 = vadd.f32 %v4934, %v5002
        %5004 = vdwg.mxu0
        %5005 = vmatpush.msra.mxu0 0.0
        %5006 = vmatpush.msra.mxu0 0.0
        %5007 = vmatpush.msra.mxu0 0.0
        %5008 = vmatpush.msra.mxu0 0.0
        %5009 = vmatpush.msra.mxu0 0.0
        %5010 = vmatpush.msra.mxu0 0.0
        %5011 = vmatpush.msra.mxu0 0.0
        %5012 = vmatpush.msra.mxu0 0.0
        %5013 = vmatpush.msra.mxu0 0.0
        %5014 = vmatpush.msra.mxu0 0.0
        %5015 = vmatpush.msra.mxu0 0.0
        %5016 = vmatpush.msra.mxu0 0.0
        %5017 = vmatpush.msra.mxu0 0.0
        %5018 = vmatpush.msra.mxu0 0.0
        %5019 = vmatpush.msra.mxu0 0.0
        %5020 = vmatpush.msra.mxu0 %v4963
        %5021 = vmatmul.f32.gmra.mxu0 %v4959
        %v5022 = vpop.f32.mrf.mxu0
        %v5023 = vadd.f32 %v4934, %v5022
        %5024 = vdwg.mxu0
        %5025 = vmatpush.msra.mxu0 0.0
        %5026 = vmatpush.msra.mxu0 0.0
        %5027 = vmatpush.msra.mxu0 0.0
        %5028 = vmatpush.msra.mxu0 0.0
        %5029 = vmatpush.msra.mxu0 0.0
        %5030 = vmatpush.msra.mxu0 0.0
        %5031 = vmatpush.msra.mxu0 0.0
        %5032 = vmatpush.msra.mxu0 0.0
        %5033 = vmatpush.msra.mxu0 0.0
        %5034 = vmatpush.msra.mxu0 0.0
        %5035 = vmatpush.msra.mxu0 0.0
        %5036 = vmatpush.msra.mxu0 0.0
        %5037 = vmatpush.msra.mxu0 0.0
        %5038 = vmatpush.msra.mxu0 0.0
        %5039 = vmatpush.msra.mxu0 0.0
        %5040 = vmatpush.msra.mxu0 %v4965
        %5041 = vmatmul.f32.gmra.mxu0 %v4959
        %v5042 = vpop.f32.mrf.mxu0
        %v5043 = vadd.f32 %v4934, %v5042
        %5044 = vdwg.mxu0
        %5045 = vmatpush.msra.mxu0 0.0
        %5046 = vmatpush.msra.mxu0 0.0
        %5047 = vmatpush.msra.mxu0 0.0
        %5048 = vmatpush.msra.mxu0 0.0
        %5049 = vmatpush.msra.mxu0 0.0
        %5050 = vmatpush.msra.mxu0 0.0
        %5051 = vmatpush.msra.mxu0 0.0
        %5052 = vmatpush.msra.mxu0 0.0
        %5053 = vmatpush.msra.mxu0 0.0
        %5054 = vmatpush.msra.mxu0 0.0
        %5055 = vmatpush.msra.mxu0 0.0
        %5056 = vmatpush.msra.mxu0 0.0
        %5057 = vmatpush.msra.mxu0 0.0
        %5058 = vmatpush.msra.mxu0 0.0
        %5059 = vmatpush.msra.mxu0 0.0
        %5060 = vmatpush.msra.mxu0 %v4967
        %5061 = vmatmul.f32.gmra.mxu0 %v4959
        %v5062 = vpop.f32.mrf.mxu0
        %v5063 = vadd.f32 %v4934, %v5062
        %5064 = vdwg.mxu0
        %5065 = vmatpush.msra.mxu0 0.0
        %5066 = vmatpush.msra.mxu0 0.0
        %5067 = vmatpush.msra.mxu0 0.0
        %5068 = vmatpush.msra.mxu0 0.0
        %5069 = vmatpush.msra.mxu0 0.0
        %5070 = vmatpush.msra.mxu0 0.0
        %5071 = vmatpush.msra.mxu0 0.0
        %5072 = vmatpush.msra.mxu0 0.0
        %5073 = vmatpush.msra.mxu0 0.0
        %5074 = vmatpush.msra.mxu0 0.0
        %5075 = vmatpush.msra.mxu0 0.0
        %5076 = vmatpush.msra.mxu0 0.0
        %5077 = vmatpush.msra.mxu0 0.0
        %5078 = vmatpush.msra.mxu0 0.0
        %5079 = vmatpush.msra.mxu0 0.0
        %5080 = vmatpush.msra.mxu0 %v4969
        %5081 = vmatmul.f32.gmra.mxu0 %v4959
        %v5082 = vpop.f32.mrf.mxu0
        %v5083 = vadd.f32 %v4934, %v5082
        %5084 = vdwg.mxu0
        %5085 = vmatpush.msra.mxu0 0.0
        %5086 = vmatpush.msra.mxu0 0.0
        %5087 = vmatpush.msra.mxu0 0.0
        %5088 = vmatpush.msra.mxu0 0.0
        %5089 = vmatpush.msra.mxu0 0.0
        %5090 = vmatpush.msra.mxu0 0.0
        %5091 = vmatpush.msra.mxu0 0.0
        %5092 = vmatpush.msra.mxu0 0.0
        %5093 = vmatpush.msra.mxu0 0.0
        %5094 = vmatpush.msra.mxu0 0.0
        %5095 = vmatpush.msra.mxu0 0.0
        %5096 = vmatpush.msra.mxu0 0.0
        %5097 = vmatpush.msra.mxu0 0.0
        %5098 = vmatpush.msra.mxu0 0.0
        %5099 = vmatpush.msra.mxu0 0.0
        %5100 = vmatpush.msra.mxu0 %v4971
        %5101 = vmatmul.f32.gmra.mxu0 %v4959
        %v5102 = vpop.f32.mrf.mxu0
        %v5103 = vadd.f32 %v4934, %v5102
        %5104 = vdwg.mxu0
        %5105 = vmatpush.msra.mxu0 0.0
        %5106 = vmatpush.msra.mxu0 0.0
        %5107 = vmatpush.msra.mxu0 0.0
        %5108 = vmatpush.msra.mxu0 0.0
        %5109 = vmatpush.msra.mxu0 0.0
        %5110 = vmatpush.msra.mxu0 0.0
        %5111 = vmatpush.msra.mxu0 0.0
        %5112 = vmatpush.msra.mxu0 0.0
        %5113 = vmatpush.msra.mxu0 0.0
        %5114 = vmatpush.msra.mxu0 0.0
        %5115 = vmatpush.msra.mxu0 0.0
        %5116 = vmatpush.msra.mxu0 0.0
        %5117 = vmatpush.msra.mxu0 0.0
        %5118 = vmatpush.msra.mxu0 0.0
        %5119 = vmatpush.msra.mxu0 0.0
        %5120 = vmatpush.msra.mxu0 %v4973
        %5121 = vmatmul.f32.gmra.mxu0 %v4959
        %v5122 = vpop.f32.mrf.mxu0
        %v5123 = vadd.f32 %v4934, %v5122
        %5124 = vdwg.mxu0
        %5125 = vmatpush.msra.mxu0 0.0
        %5126 = vmatpush.msra.mxu0 0.0
        %5127 = vmatpush.msra.mxu0 0.0
        %5128 = vmatpush.msra.mxu0 0.0
        %5129 = vmatpush.msra.mxu0 0.0
        %5130 = vmatpush.msra.mxu0 0.0
        %5131 = vmatpush.msra.mxu0 0.0
        %5132 = vmatpush.msra.mxu0 0.0
        %5133 = vmatpush.msra.mxu0 0.0
        %5134 = vmatpush.msra.mxu0 0.0
        %5135 = vmatpush.msra.mxu0 0.0
        %5136 = vmatpush.msra.mxu0 0.0
        %5137 = vmatpush.msra.mxu0 0.0
        %5138 = vmatpush.msra.mxu0 0.0
        %5139 = vmatpush.msra.mxu0 0.0
        %5140 = vmatpush.msra.mxu0 %v4975
        %5141 = vmatmul.f32.gmra.mxu0 %v4959
        %v5142 = vpop.f32.mrf.mxu0
        %v5143 = vadd.f32 %v4934, %v5142
        %5144 = vdwg.mxu0
        %5145 = vmatpush.msra.mxu0 0.0
        %5146 = vmatpush.msra.mxu0 0.0
        %5147 = vmatpush.msra.mxu0 0.0
        %5148 = vmatpush.msra.mxu0 0.0
        %5149 = vmatpush.msra.mxu0 0.0
        %5150 = vmatpush.msra.mxu0 0.0
        %5151 = vmatpush.msra.mxu0 0.0
        %5152 = vmatpush.msra.mxu0 0.0
        %5153 = vmatpush.msra.mxu0 0.0
        %5154 = vmatpush.msra.mxu0 0.0
        %5155 = vmatpush.msra.mxu0 0.0
        %5156 = vmatpush.msra.mxu0 0.0
        %5157 = vmatpush.msra.mxu0 0.0
        %5158 = vmatpush.msra.mxu0 0.0
        %5159 = vmatpush.msra.mxu0 0.0
        %5160 = vmatpush.msra.mxu0 %v4977
        %5161 = vmatmul.f32.gmra.mxu0 %v4959
        %v5162 = vpop.f32.mrf.mxu0
        %v5163 = vadd.f32 %v4934, %v5162
        %5164 = vdwg.mxu0
        %5165 = vmatpush.msra.mxu0 0.0
        %5166 = vmatpush.msra.mxu0 0.0
        %5167 = vmatpush.msra.mxu0 0.0
        %5168 = vmatpush.msra.mxu0 0.0
        %5169 = vmatpush.msra.mxu0 0.0
        %5170 = vmatpush.msra.mxu0 0.0
        %5171 = vmatpush.msra.mxu0 0.0
        %5172 = vmatpush.msra.mxu0 0.0
        %5173 = vmatpush.msra.mxu0 0.0
        %5174 = vmatpush.msra.mxu0 0.0
        %5175 = vmatpush.msra.mxu0 0.0
        %5176 = vmatpush.msra.mxu0 0.0
        %5177 = vmatpush.msra.mxu0 0.0
        %5178 = vmatpush.msra.mxu0 0.0
        %5179 = vmatpush.msra.mxu0 0.0
        %5180 = vmatpush.msra.mxu0 %v4979
        %5181 = vmatmul.f32.gmra.mxu0 %v4959
        %v5182 = vpop.f32.mrf.mxu0
        %v5183 = vadd.f32 %v4934, %v5182
        %5184 = vdwg.mxu0
        %5185 = vmatpush.msra.mxu0 0.0
        %5186 = vmatpush.msra.mxu0 0.0
        %5187 = vmatpush.msra.mxu0 0.0
        %5188 = vmatpush.msra.mxu0 0.0
        %5189 = vmatpush.msra.mxu0 0.0
        %5190 = vmatpush.msra.mxu0 0.0
        %5191 = vmatpush.msra.mxu0 0.0
        %5192 = vmatpush.msra.mxu0 0.0
        %5193 = vmatpush.msra.mxu0 0.0
        %5194 = vmatpush.msra.mxu0 0.0
        %5195 = vmatpush.msra.mxu0 0.0
        %5196 = vmatpush.msra.mxu0 0.0
        %5197 = vmatpush.msra.mxu0 0.0
        %5198 = vmatpush.msra.mxu0 0.0
        %5199 = vmatpush.msra.mxu0 0.0
        %5200 = vmatpush.msra.mxu0 %v4981
        %5201 = vmatmul.f32.gmra.mxu0 %v4959
        %v5202 = vpop.f32.mrf.mxu0
        %v5203 = vadd.f32 %v4934, %v5202
        %5204 = vdwg.mxu0
        %5205 = vmatpush.msra.mxu0 0.0
        %5206 = vmatpush.msra.mxu0 0.0
        %5207 = vmatpush.msra.mxu0 0.0
        %5208 = vmatpush.msra.mxu0 0.0
        %5209 = vmatpush.msra.mxu0 0.0
        %5210 = vmatpush.msra.mxu0 0.0
        %5211 = vmatpush.msra.mxu0 0.0
        %5212 = vmatpush.msra.mxu0 0.0
        %5213 = vmatpush.msra.mxu0 0.0
        %5214 = vmatpush.msra.mxu0 0.0
        %5215 = vmatpush.msra.mxu0 0.0
        %5216 = vmatpush.msra.mxu0 0.0
        %5217 = vmatpush.msra.mxu0 0.0
        %5218 = vmatpush.msra.mxu0 0.0
        %5219 = vmatpush.msra.mxu0 0.0
        %5220 = vmatpush.msra.mxu0 %v4983
        %5221 = vmatmul.f32.gmra.mxu0 %v4959
        %v5222 = vpop.f32.mrf.mxu0
        %v5223 = vadd.f32 %v4934, %v5222
        %5224 = vdwg.mxu0
        %v5225 = vmax.f32 %v5003, 0.0
        %v5226 = vmax.f32 %v5023, 0.0
        %v5227 = vmax.f32 %v5043, 0.0
        %v5228 = vmax.f32 %v5063, 0.0
        %v5229 = vmax.f32 %v5083, 0.0
        %v5230 = vmax.f32 %v5103, 0.0
        %v5231 = vmax.f32 %v5123, 0.0
        %v5232 = vmax.f32 %v5143, 0.0
        %v5233 = vmax.f32 %v5163, 0.0
        %v5234 = vmax.f32 %v5183, 0.0
        %v5235 = vmax.f32 %v5203, 0.0
        %v5236 = vmax.f32 %v5223, 0.0
        %v5237 = vadd.f32 %v4917, %v5225
        %v5238 = vadd.f32 %v4918, %v5226
        %v5239 = vadd.f32 %v4919, %v5227
        %v5240 = vadd.f32 %v4920, %v5228
        %v5241 = vadd.f32 %v4921, %v5229
        %v5242 = vadd.f32 %v4922, %v5230
        %v5243 = vadd.f32 %v4923, %v5231
        %v5244 = vadd.f32 %v4924, %v5232
        %v5245 = vadd.f32 %v4925, %v5233
        %v5246 = vadd.f32 %v4926, %v5234
        %v5247 = vadd.f32 %v4927, %v5235
        %v5248 = vadd.f32 %v4928, %v5236
        %v5249 = vmax.f32 %v5237, 0.0
        %v5250 = vmax.f32 %v5238, 0.0
        %v5251 = vmax.f32 %v5239, 0.0
        %v5252 = vmax.f32 %v5240, 0.0
        %v5253 = vmax.f32 %v5241, 0.0
        %v5254 = vmax.f32 %v5242, 0.0
        %v5255 = vmax.f32 %v5243, 0.0
        %v5256 = vmax.f32 %v5244, 0.0
        %v5257 = vmax.f32 %v5245, 0.0
        %v5258 = vmax.f32 %v5246, 0.0
        %v5259 = vmax.f32 %v5247, 0.0
        %v5260 = vmax.f32 %v5248, 0.0
        %5261 = vst [vmem:[%s395] sm:$0xff] %v5249
        %5262 = vst [vmem:[%s395 + $0x8] sm:$0xff] %v5250
        %5263 = vst [vmem:[%s395 + $0x10] sm:$0xff] %v5251
        %5264 = vst [vmem:[%s395 + $0x18] sm:$0xff] %v5252
        %5265 = vst [vmem:[%s395 + $0x20] sm:$0xff] %v5253
        %5266 = vst [vmem:[%s395 + $0x28] sm:$0xff] %v5254
        %5267 = vst [vmem:[%s395 + $0x30] sm:$0xff] %v5255
        %5268 = vst [vmem:[%s395 + $0x38] sm:$0xff] %v5256
        %5269 = vst [vmem:[%s395 + $0x40] sm:$0xff] %v5257
        %5270 = vst [vmem:[%s395 + $0x48] sm:$0xff] %v5258
        %5271 = vst [vmem:[%s395 + $0x50] sm:$0xff] %v5259
        %5272 = vst [vmem:[%s395 + $0x58] sm:$0xff] %v5260
        %s5273 = sand.u32 %s266, 1
        %s5274 = scalar_lea.sflag [#allocation6], %s5273
        %s5275 = sand.u32 %s266, 1
        %s5276 = smul.addr %s5275, 96
        %s5277 = scalar_lea.vmem [#allocation7], %s5276
        // Predicated region
        $region73: #{tpu_custom_call.1} parent=59 // pred_check
          %p5278 = pneg %p276
        $region74: #{tpu_custom_call.1} parent=59 // pred_check_branch
          %5280 = sbr.rel (%p5278) target = $region76
        $region75: #{tpu_custom_call.1} parent=59 // pred_region
          %s5281 = smul.u32 12, %s32
          %5283 = vsyncadd %s5274, 0
          %s5284 = smul.addr %s31, 24
          %s5285 = sadd.s32 %s5281, %s5284
          %s5286 = smul.addr %s5285, 8
          %s5287 = scalar_lea.hbm %s10, %s5286
          %s5289 = sshll.u32 %s5277, 4
          %s5290 = int_to_ptr.vmem [resolvable:$true] %s5289
          %s5291 = sshll.u32 %s5287, 4
          %s5292 = int_to_ptr.hbm [resolvable:$true] %s5291
          %5294 = dma.vmem_to_hbm [thread:$0]  %s5290, 1536, %s5292, %s5274
        $region76: #{tpu_custom_call.1} parent=59 // pred_fallthru
          _
      $region60: #{tpu_custom_call.1} parent=5 // pred_fallthru
        _
      %p5295 = scmp.le.s32.totalorder 2, %s22
      // Predicated region
      $region77: #{tpu_custom_call.1} parent=5 // pred_check
        %p5296 = pneg %p5295
      $region78: #{tpu_custom_call.1} parent=5 // pred_check_branch
        %5298 = sbr.rel (%p5296) target = $region80
      $region79: #{tpu_custom_call.1} parent=5 // pred_region
        %s5299 = ssub.s32 %s22, 2
        // Predicated region
        $region81: #{tpu_custom_call.1} parent=79 // pred_check
          %p5300 = pneg %p282
        $region82: #{tpu_custom_call.1} parent=79 // pred_check_branch
          %5302 = sbr.rel (%p5300) target = $region84
        $region83: #{tpu_custom_call.1} parent=79 // pred_region
          %s5303 = sand.u32 %s267, 1
          %s5304 = scalar_lea.sflag [#allocation6], %s5303
          %s5305 = sand.u32 %s267, 1
          %s5306 = smul.addr %s5305, 96
          %s5307 = scalar_lea.vmem [#allocation7], %s5306
          %5309 = dma.done %s5304, 1536
        $region84: #{tpu_custom_call.1} parent=79 // pred_fallthru
          _
      $region80: #{tpu_custom_call.1} parent=5 // pred_fallthru
        _
    $region6: #{tpu_custom_call.1} parent=1 // loop_footer
      %s26 = sadd.s32 1, %s22
    $region7: #{tpu_custom_call.1} parent=1 // loop_footer_branch
      %21 = sbr.rel target = $region3
    $region8: #{tpu_custom_call.1} parent=1 // loop_exit
      _
    %5310 = vsyncpa [#allocation5], 1
    %s5311 = scalar_lea.sflag [#allocation5], 1
    %5312 = vsyncpa %s5311, 1
    %5313 = vsyncpa [#allocation6], 1
    %s5314 = scalar_lea.sflag [#allocation6], 1
    %5315 = vsyncpa %s5314, 1

</llo_original>
